<compile_context>
chip_gen: v5e
topology: v5e:2x2
jax: 0.10.0
libtpu: 0.0.40
codegen_flags: <defaults>
</compile_context>

<pallas_src>
import functools

import jax
import jax.numpy as jnp
import numpy as np
from jax import lax
from jax.experimental import pallas as pl
from jax.experimental.pallas import tpu as pltpu

_DTYPES = {"float32": jnp.float32, "bfloat16": jnp.bfloat16}


def _round_up(x, m):
    return (x + m - 1) // m * m


def _vmem_budget_bytes():
    """Per-generation scoped-VMEM budget: ~half of physical, capped at 64 MiB
    (=> 64 MiB on v5e/v6e 128-MiB parts, 32 MiB on v7x's 64-MiB part)."""
    try:
        cap = int(pltpu.get_tpu_info().vmem_capacity_bytes)
    except Exception:
        cap = 64 << 20                      # conservative (v7x-sized) default
    return min(cap // 2, 64 << 20)


def _estimate_vmem(nb, tile_co, *, hp, wpad, w_keep, h_out, c_in, kmax,
                   mm_itemsize, out_itemsize):
    """Rough per-step VMEM footprint: double-buffered pipeline blocks + slab
    temporaries + tree-summed f32 contributions + fixed compiler headroom."""
    bx = nb * hp * wpad * c_in * mm_itemsize
    bw = kmax * kmax * c_in * tile_co * mm_itemsize
    bb = tile_co * 4
    bo = nb * h_out * w_keep * tile_co * out_itemsize
    slab = nb * hp * w_keep * kmax * c_in * mm_itemsize
    acc = nb * h_out * w_keep * tile_co * 4
    return 2 * (bx + bw + bb + bo) + 2 * slab + (kmax + 1) * acc + (4 << 20)


# ----------------------------- Pallas kernel -------------------------------- #
def _fused_conv_kernel(x_ref, w_ref, b_ref, o_ref, *, kmax, h_out, w_keep,
                       c_in, nb):
    """One (batch-tile, branch, cout-tile) grid step of the fused same-conv.

    x_ref : (Nb, Hp, Wpad, Cin)        mm dtype (bf16 or f32)
    w_ref : (1, kmax, kmax*Cin, Tco)   mm dtype (dx-major flattened taps)
    b_ref : (1, 1, Tco)                float32
    o_ref : (Nb, H, Wk, Tco)           output dtype (lane-dense, W padded)
    """
    x = x_ref[...]                       # stays in mm dtype: no f32 round trip
    hp = x.shape[1]

    # dx-shifted, channel-stacked slab built once per grid step:
    #   slab[b, h'*Wk + w, dx*Cin + c] = x[b, h', w + dx, c]
    slab = jnp.concatenate(
        [x[:, :, dx:dx + w_keep, :] for dx in range(kmax)], axis=-1)
    # Wk % 16 == 0 -> merging Hp into the sublane dim is layout-free (bf16/f32).
    slab = slab.reshape(nb, hp * w_keep, kmax * c_in)

    # dy taps are free, sublane-aligned row windows of the flattened slab;
    # each tap is one fat-K MXU matmul with f32 accumulation.
    m = h_out * w_keep
    contribs = []
    for dy in range(kmax):
        lhs = slab[:, dy * w_keep:dy * w_keep + m, :].reshape(nb * m,
                                                              kmax * c_in)
        contribs.append(jnp.dot(lhs, w_ref[0, dy],
                                preferred_element_type=jnp.float32))

    # Pairwise tree-sum of the tap contributions as VALUES (no scratch
    # read-modify-write): fewer serialized VMEM round trips on v5e's single
    # vst slot, MRB-friendly in-place accumulation on v7x.
    while len(contribs) > 1:
        nxt = [contribs[i] + contribs[i + 1]
               for i in range(0, len(contribs) - 1, 2)]
        if len(contribs) % 2:
            nxt.append(contribs[-1])
        contribs = nxt

    out = contribs[0].reshape(nb, h_out, w_keep, -1) + b_ref[0]   # bias (f32)
    o_ref[...] = out.astype(o_ref.dtype)   # full, unmasked, lane-dense store


# --------------------------- fused pallas_call ------------------------------- #
def _fused_forward(x_all, w_all, b_all, *, n_branch, batch, nb, h_out, w_keep,
                   tile_co, out_dtype, vmem_limit):
    kmax = w_all.shape[1]
    c_in = x_all.shape[-1]
    c_out_pad = w_all.shape[-1]
    hp, wpad = x_all.shape[1], x_all.shape[2]
    n_bt = batch // nb
    n_co = c_out_pad // tile_co
    grid = (n_bt, n_branch, n_co)        # batch-tile outermost, cout innermost

    kern = functools.partial(_fused_conv_kernel, kmax=kmax, h_out=h_out,
                             w_keep=w_keep, c_in=c_in, nb=nb)

    return pl.pallas_call(
        kern,
        out_shape=jax.ShapeDtypeStruct(
            (n_branch * batch, h_out, w_keep, c_out_pad), out_dtype),
        grid=grid,
        in_specs=[
            # x block indexed by (branch, batch_tile): held across cout tiles.
            pl.BlockSpec((nb, hp, wpad, c_in),
                         lambda bt, br, c: (br * n_bt + bt, 0, 0, 0)),
            pl.BlockSpec((1, kmax, kmax * c_in, tile_co),
                         lambda bt, br, c: (br, 0, 0, c)),
            pl.BlockSpec((1, 1, tile_co),
                         lambda bt, br, c: (br, 0, c)),
        ],
        out_specs=pl.BlockSpec((nb, h_out, w_keep, tile_co),
                               lambda bt, br, c: (br * n_bt + bt, 0, 0, c)),
        compiler_params=pltpu.CompilerParams(
            dimension_semantics=("parallel", "parallel", "parallel"),
            vmem_limit_bytes=vmem_limit),
    )(x_all, w_all, b_all)


@functools.partial(jax.jit, static_argnames=("compute_dtype",))
def _forward_impl(x_list, w_all, b_all, compute_dtype):
    mm_dtype = _DTYPES[compute_dtype]
    n_branch, kmax = w_all.shape[0], w_all.shape[1]
    pad = (kmax - 1) // 2
    c_out_pad = w_all.shape[-1]

    x = jnp.stack(x_list, axis=0)                          # (n, B, C, H, W)
    n, batch, c_in, h, w = x.shape
    out_dtype = x.dtype

    # One NCHW -> NHWC transpose, one cast, one zero-pad for ALL branches.
    x = jnp.transpose(x, (0, 1, 3, 4, 2)).reshape(n * batch, h, w, c_in)
    x = x.astype(mm_dtype)
    w_keep = _round_up(w, 16)            # bf16 sublane packing: 16 rows / vreg
    x = jnp.pad(x, ((0, 0), (pad, pad), (pad, pad + (w_keep - w)), (0, 0)))
    hp, wpad = h + 2 * pad, w_keep + 2 * pad

    mm_itemsize = np.dtype(mm_dtype).itemsize
    out_itemsize = np.dtype(out_dtype).itemsize
    budget = _vmem_budget_bytes()
    est = functools.partial(_estimate_vmem, hp=hp, wpad=wpad, w_keep=w_keep,
                            h_out=h, c_in=c_in, kmax=kmax,
                            mm_itemsize=mm_itemsize, out_itemsize=out_itemsize)

    # Output-channel tile: Cout is pre-padded to a multiple of 128; use 256
    # (better MXU N fill on v6e/v7x) only when it divides and fits the budget.
    tile_co = 128
    if c_out_pad % 256 == 0 and est(1, 256) <= budget:
        tile_co = 256

    # Batch images per grid step: grow the matmul M dim to amortize the
    # ~600-cycle per-step overhead, while staying inside the VMEM budget.
    nb = 1
    for cand in range(2, batch + 1):
        if batch % cand:
            continue
        if cand * h * w_keep > 2048:          # keep value/acc blocks modest
            break
        if est(cand, tile_co) <= budget:
            nb = cand

    need = int(est(nb, tile_co))
    # Never clamp the declared limit below the real footprint; shrinking
    # tile_co / nb above is the mechanism for fitting the budget.
    vmem_limit = int(min(max(need, 16 << 20), budget)) if need <= budget \
        else need

    y = _fused_forward(x, w_all, b_all, n_branch=n_branch, batch=batch, nb=nb,
                       h_out=h, w_keep=w_keep, tile_co=tile_co,
                       out_dtype=out_dtype, vmem_limit=vmem_limit)

    # (n*B, H, Wk, Cpad) -> crop W / Cout padding and go back to NCHW; the
    # crop fuses into this single transpose for all branches.
    y = y.reshape(n, batch, h, w_keep, c_out_pad)[:, :, :, :w, :c_in]
    return jnp.transpose(y, (0, 1, 4, 2, 3))


# ----------------------------- Module wrapper -------------------------------- #
class MultiScaleAugmentationBack:
    """JAX/Pallas port; forward semantics preserved: res[i] = kernels[i](x[i])."""

    def __init__(self, d_model, num_kernels=2, key=jax.random.PRNGKey(0)):
        self.d_model = d_model
        self.num_kernels = num_kernels

        # Same construction order / kernel sizes as the PyTorch module; every
        # conv is "same"-padded (padding = (k-1)//2).
        sizes = [2 * i + 1 for i in range(num_kernels, 0, -1)]
        sizes.append(1)
        sizes += [2 * i - 1 for i in range(1, num_kernels + 1)]
        self.kernel_sizes = sizes
        self.paddings = [(k - 1) // 2 for k in sizes]
        kmax = max(sizes)
        self.kmax = kmax
        c_out_pad = _round_up(d_model, 128)     # lane-dense output channels

        # PyTorch Conv2d default init (kaiming-uniform, a=sqrt(5)).  The
        # reference's _initialize_weights() only touches ConvTranspose2d layers
        # (there are none), so the Conv2d defaults are what we match here.
        self.weights = []     # per-branch OIHW, kept for the XLA reference
        self.biases = []
        packed = []
        for idx, k in enumerate(sizes):
            wkey, bkey = jax.random.split(jax.random.fold_in(key, idx))
            fan_in = d_model * k * k
            bound = float(1.0 / np.sqrt(fan_in))
            w_oihw = jax.random.uniform(
                wkey, (d_model, d_model, k, k), jnp.float32, -bound, bound)
            b = jax.random.uniform(bkey, (d_model,), jnp.float32, -bound, bound)
            self.weights.append(w_oihw)
            self.biases.append(b)

            # OIHW -> (kh, kw, Cin, Cout), zero-pad spatially to kmax x kmax
            # (centred -> identical same-conv result) and Cout -> c_out_pad,
            # then flatten the dx tap axis into the contraction axis:
            # (kmax, kmax*Cin, Cout_pad).
            w_hwio = jnp.transpose(w_oihw, (2, 3, 1, 0))
            off = (kmax - k) // 2
            w_hwio = jnp.pad(w_hwio, ((off, off), (off, off), (0, 0),
                                      (0, c_out_pad - d_model)))
            packed.append(w_hwio.reshape(kmax, kmax * d_model, c_out_pad))

        w_all = jnp.stack(packed, axis=0)          # (n, kmax, kmax*C, Cpad)
        # Cache both MXU dtypes once (no per-call HBM cast of the weights).
        self._w_packed = {
            "float32": w_all.astype(jnp.float32),
            "bfloat16": w_all.astype(jnp.bfloat16),
        }
        b_pad = jnp.pad(jnp.stack(self.biases, axis=0),
                        ((0, 0), (0, c_out_pad - d_model)))
        self.b_all = b_pad[:, None, :].astype(jnp.float32)   # (n, 1, Cpad)

    def __call__(self, x_list, compute_dtype="bfloat16"):
        # NOTE: the reference forward contains a stray `breakpoint()` debug
        # call which is intentionally dropped.
        y = _forward_impl(list(x_list), self._w_packed[compute_dtype],
                          self.b_all, compute_dtype=compute_dtype)
        return [y[i] for i in range(y.shape[0])]


# ----------------------------- Reference (XLA) ------------------------------- #
def _ref_conv(x, w_oihw, b, pad):
    y = lax.conv_general_dilated(
        x, w_oihw, window_strides=(1, 1),
        padding=[(pad, pad), (pad, pad)],
        dimension_numbers=("NCHW", "OIHW", "NCHW"))
    return y + b[None, :, None, None]


if __name__ == "__main__":
    B, d_model, H, W = 2, 32, 16, 16
    num_kernels = 2
    mod = MultiScaleAugmentationBack(d_model, num_kernels,
                                     key=jax.random.PRNGKey(42))

    # x is a list of tensors, one per conv branch (all NCHW).
    key = jax.random.PRNGKey(0)
    xs = []
    for _ in range(len(mod.kernel_sizes)):
        key, sub = jax.random.split(key)
        xs.append(jax.random.normal(sub, (B, d_model, H, W), jnp.float32))

    refs = [np.asarray(_ref_conv(xi, w, b, p))
            for xi, w, b, p in zip(xs, mod.weights, mod.biases, mod.paddings)]

    # Exact path (f32 MXU operands) -- validates the algorithm tightly.
    outs = [jax.block_until_ready(o) for o in mod(xs, compute_dtype="float32")]
    for y, r in zip(outs, refs):
        assert y.shape == r.shape, (y.shape, r.shape)
        np.testing.assert_allclose(np.asarray(y), r, rtol=1e-3, atol=1e-3)

    # Optimised path (bf16 MXU operands, f32 accumulation; inputs/weights are
    # pre-quantized to bf16, hence the relaxed tolerance).
    outs = [jax.block_until_ready(o) for o in mod(xs, compute_dtype="bfloat16")]
    for y, r in zip(outs, refs):
        np.testing.assert_allclose(np.asarray(y), r, rtol=2e-2, atol=2e-2)

    print("KERNEL_OK")
</pallas_src>

<mosaic_0001>
module attributes {stable_mosaic.version = 11 : i64} {
  func.func @_fused_conv_kernel(%arg0: i32, %arg1: i32, %arg2: i32, %arg3: memref<2x20x20x32xf32, #tpu.memory_space<vmem>>, %arg4: memref<1x5x160x128xf32, #tpu.memory_space<vmem>>, %arg5: memref<1x1x128xf32, #tpu.memory_space<vmem>>, %arg6: memref<2x16x16x128xf32, #tpu.memory_space<vmem>>) attributes {dimension_semantics = [#tpu.dimension_semantics<parallel>, #tpu.dimension_semantics<parallel>, #tpu.dimension_semantics<parallel>], iteration_bounds = array<i64: 1, 5, 1>, scalar_prefetch = 0 : i64, scratch_operands = 0 : i64, tpu.core_type = #tpu.core_type<tc>, window_params = [{transform_indices = @transform_0, window_bounds = array<i64: 2, 20, 20, 32>}, {transform_indices = @transform_1, window_bounds = array<i64: 1, 5, 160, 128>}, {transform_indices = @transform_2, window_bounds = array<i64: 1, 1, 128>}, {transform_indices = @transform_3, window_bounds = array<i64: 2, 16, 16, 128>}]} {
    %c0 = arith.constant 0 : index
    %c0_0 = arith.constant 0 : index
    %c0_1 = arith.constant 0 : index
    %c0_2 = arith.constant 0 : index
    %0 = vector.load %arg3[%c0, %c0_0, %c0_1, %c0_2] : memref<2x20x20x32xf32, #tpu.memory_space<vmem>>, vector<2x20x20x32xf32>
    %1 = vector.extract_strided_slice %0 {offsets = [0, 0, 0, 0], sizes = [2, 20, 16, 32], strides = [1, 1, 1, 1]} : vector<2x20x20x32xf32> to vector<2x20x16x32xf32>
    %2 = vector.extract_strided_slice %0 {offsets = [0, 0, 1, 0], sizes = [2, 20, 16, 32], strides = [1, 1, 1, 1]} : vector<2x20x20x32xf32> to vector<2x20x16x32xf32>
    %3 = vector.extract_strided_slice %0 {offsets = [0, 0, 2, 0], sizes = [2, 20, 16, 32], strides = [1, 1, 1, 1]} : vector<2x20x20x32xf32> to vector<2x20x16x32xf32>
    %4 = vector.extract_strided_slice %0 {offsets = [0, 0, 3, 0], sizes = [2, 20, 16, 32], strides = [1, 1, 1, 1]} : vector<2x20x20x32xf32> to vector<2x20x16x32xf32>
    %5 = vector.extract_strided_slice %0 {offsets = [0, 0, 4, 0], sizes = [2, 20, 16, 32], strides = [1, 1, 1, 1]} : vector<2x20x20x32xf32> to vector<2x20x16x32xf32>
    %6 = tpu.concatenate %1, %2, %3, %4, %5 in 3 : vector<2x20x16x32xf32>, vector<2x20x16x32xf32>, vector<2x20x16x32xf32>, vector<2x20x16x32xf32>, vector<2x20x16x32xf32> -> vector<2x20x16x160xf32>
    %7 = vector.shape_cast %6 : vector<2x20x16x160xf32> to vector<2x320x160xf32>
    %8 = vector.extract_strided_slice %7 {offsets = [0, 0, 0], sizes = [2, 256, 160], strides = [1, 1, 1]} : vector<2x320x160xf32> to vector<2x256x160xf32>
    %9 = vector.shape_cast %8 : vector<2x256x160xf32> to vector<512x160xf32>
    %c0_3 = arith.constant 0 : index
    %c0_4 = arith.constant 0 : index
    %c0_5 = arith.constant 0 : index
    %c0_6 = arith.constant 0 : index
    %10 = vector.load %arg4[%c0_3, %c0_4, %c0_5, %c0_6] : memref<1x5x160x128xf32, #tpu.memory_space<vmem>>, vector<1x1x160x128xf32>
    %11 = vector.shape_cast %10 : vector<1x1x160x128xf32> to vector<160x128xf32>
    %cst = arith.constant dense<0.000000e+00> : vector<512x128xf32>
    %12 = tpu.matmul %9, %11, %cst {dimension_numbers = #tpu.dot_dimension_numbers<[1], [0], [0], [1], [0, 0, 1, 1], [], []>} : vector<512x160xf32>, vector<160x128xf32>, vector<512x128xf32> -> vector<512x128xf32>
    %13 = vector.extract_strided_slice %7 {offsets = [0, 16, 0], sizes = [2, 256, 160], strides = [1, 1, 1]} : vector<2x320x160xf32> to vector<2x256x160xf32>
    %14 = vector.shape_cast %13 : vector<2x256x160xf32> to vector<512x160xf32>
    %c0_7 = arith.constant 0 : index
    %c1 = arith.constant 1 : index
    %c0_8 = arith.constant 0 : index
    %c0_9 = arith.constant 0 : index
    %15 = vector.load %arg4[%c0_7, %c1, %c0_8, %c0_9] : memref<1x5x160x128xf32, #tpu.memory_space<vmem>>, vector<1x1x160x128xf32>
    %16 = vector.shape_cast %15 : vector<1x1x160x128xf32> to vector<160x128xf32>
    %cst_10 = arith.constant dense<0.000000e+00> : vector<512x128xf32>
    %17 = tpu.matmul %14, %16, %cst_10 {dimension_numbers = #tpu.dot_dimension_numbers<[1], [0], [0], [1], [0, 0, 1, 1], [], []>} : vector<512x160xf32>, vector<160x128xf32>, vector<512x128xf32> -> vector<512x128xf32>
    %18 = vector.extract_strided_slice %7 {offsets = [0, 32, 0], sizes = [2, 256, 160], strides = [1, 1, 1]} : vector<2x320x160xf32> to vector<2x256x160xf32>
    %19 = vector.shape_cast %18 : vector<2x256x160xf32> to vector<512x160xf32>
    %c0_11 = arith.constant 0 : index
    %c2 = arith.constant 2 : index
    %c0_12 = arith.constant 0 : index
    %c0_13 = arith.constant 0 : index
    %20 = vector.load %arg4[%c0_11, %c2, %c0_12, %c0_13] : memref<1x5x160x128xf32, #tpu.memory_space<vmem>>, vector<1x1x160x128xf32>
    %21 = vector.shape_cast %20 : vector<1x1x160x128xf32> to vector<160x128xf32>
    %cst_14 = arith.constant dense<0.000000e+00> : vector<512x128xf32>
    %22 = tpu.matmul %19, %21, %cst_14 {dimension_numbers = #tpu.dot_dimension_numbers<[1], [0], [0], [1], [0, 0, 1, 1], [], []>} : vector<512x160xf32>, vector<160x128xf32>, vector<512x128xf32> -> vector<512x128xf32>
    %23 = vector.extract_strided_slice %7 {offsets = [0, 48, 0], sizes = [2, 256, 160], strides = [1, 1, 1]} : vector<2x320x160xf32> to vector<2x256x160xf32>
    %24 = vector.shape_cast %23 : vector<2x256x160xf32> to vector<512x160xf32>
    %c0_15 = arith.constant 0 : index
    %c3 = arith.constant 3 : index
    %c0_16 = arith.constant 0 : index
    %c0_17 = arith.constant 0 : index
    %25 = vector.load %arg4[%c0_15, %c3, %c0_16, %c0_17] : memref<1x5x160x128xf32, #tpu.memory_space<vmem>>, vector<1x1x160x128xf32>
    %26 = vector.shape_cast %25 : vector<1x1x160x128xf32> to vector<160x128xf32>
    %cst_18 = arith.constant dense<0.000000e+00> : vector<512x128xf32>
    %27 = tpu.matmul %24, %26, %cst_18 {dimension_numbers = #tpu.dot_dimension_numbers<[1], [0], [0], [1], [0, 0, 1, 1], [], []>} : vector<512x160xf32>, vector<160x128xf32>, vector<512x128xf32> -> vector<512x128xf32>
    %28 = vector.extract_strided_slice %7 {offsets = [0, 64, 0], sizes = [2, 256, 160], strides = [1, 1, 1]} : vector<2x320x160xf32> to vector<2x256x160xf32>
    %29 = vector.shape_cast %28 : vector<2x256x160xf32> to vector<512x160xf32>
    %c0_19 = arith.constant 0 : index
    %c4 = arith.constant 4 : index
    %c0_20 = arith.constant 0 : index
    %c0_21 = arith.constant 0 : index
    %30 = vector.load %arg4[%c0_19, %c4, %c0_20, %c0_21] : memref<1x5x160x128xf32, #tpu.memory_space<vmem>>, vector<1x1x160x128xf32>
    %31 = vector.shape_cast %30 : vector<1x1x160x128xf32> to vector<160x128xf32>
    %cst_22 = arith.constant dense<0.000000e+00> : vector<512x128xf32>
    %32 = tpu.matmul %29, %31, %cst_22 {dimension_numbers = #tpu.dot_dimension_numbers<[1], [0], [0], [1], [0, 0, 1, 1], [], []>} : vector<512x160xf32>, vector<160x128xf32>, vector<512x128xf32> -> vector<512x128xf32>
    %33 = arith.addf %12, %17 : vector<512x128xf32>
    %34 = arith.addf %22, %27 : vector<512x128xf32>
    %35 = arith.addf %33, %34 : vector<512x128xf32>
    %36 = arith.addf %35, %32 : vector<512x128xf32>
    %37 = vector.shape_cast %36 : vector<512x128xf32> to vector<2x16x16x128xf32>
    %c0_23 = arith.constant 0 : index
    %c0_24 = arith.constant 0 : index
    %c0_25 = arith.constant 0 : index
    %38 = vector.load %arg5[%c0_23, %c0_24, %c0_25] : memref<1x1x128xf32, #tpu.memory_space<vmem>>, vector<1x1x128xf32>
    %39 = vector.shape_cast %38 : vector<1x1x128xf32> to vector<1x128xf32>
    %40 = vector.shape_cast %39 : vector<1x128xf32> to vector<1x1x1x128xf32>
    %41 = vector.broadcast %40 : vector<1x1x1x128xf32> to vector<2x16x16x128xf32>
    %42 = arith.addf %37, %41 : vector<2x16x16x128xf32>
    %c0_26 = arith.constant 0 : index
    %c0_27 = arith.constant 0 : index
    %c0_28 = arith.constant 0 : index
    %c0_29 = arith.constant 0 : index
    %43 = vector.load %arg6[%c0_26, %c0_27, %c0_28, %c0_29] : memref<2x16x16x128xf32, #tpu.memory_space<vmem>>, vector<2x16x16x128xf32>
    tpu.vector_store %arg6[%c0_26, %c0_27, %c0_28, %c0_29], %42 {strides = array<i32>} : memref<2x16x16x128xf32, #tpu.memory_space<vmem>>, vector<2x16x16x128xf32>,
    return
  }
  func.func @transform_0(%arg0: i32, %arg1: i32, %arg2: i32) -> (i32, i32, i32, i32) {
    %c1_i32 = arith.constant 1 : i32
    %0 = arith.muli %arg1, %c1_i32 : i32
    %1 = arith.addi %0, %arg0 : i32
    %c0_i32 = arith.constant 0 : i32
    %c0_i32_0 = arith.constant 0 : i32
    %c0_i32_1 = arith.constant 0 : i32
    %c0_i32_2 = arith.constant 0 : i32
    return %1, %c0_i32, %c0_i32_0, %c0_i32_1 : i32, i32, i32, i32
  }
  func.func @transform_1(%arg0: i32, %arg1: i32, %arg2: i32) -> (i32, i32, i32, i32) {
    %c0_i32 = arith.constant 0 : i32
    %c0_i32_0 = arith.constant 0 : i32
    %c0_i32_1 = arith.constant 0 : i32
    return %arg1, %c0_i32, %c0_i32_0, %arg2 : i32, i32, i32, i32
  }
  func.func @transform_2(%arg0: i32, %arg1: i32, %arg2: i32) -> (i32, i32, i32) {
    %c0_i32 = arith.constant 0 : i32
    %c0_i32_0 = arith.constant 0 : i32
    return %arg1, %c0_i32, %arg2 : i32, i32, i32
  }
  func.func @transform_3(%arg0: i32, %arg1: i32, %arg2: i32) -> (i32, i32, i32, i32) {
    %c1_i32 = arith.constant 1 : i32
    %0 = arith.muli %arg1, %c1_i32 : i32
    %1 = arith.addi %0, %arg0 : i32
    %c0_i32 = arith.constant 0 : i32
    %c0_i32_0 = arith.constant 0 : i32
    %c0_i32_1 = arith.constant 0 : i32
    return %1, %c0_i32, %c0_i32_0, %arg2 : i32, i32, i32, i32
  }
}

</mosaic_0001>

<llo_original>
// kernel: _forward_impl.1
$region0: #{_forward_impl.1}
  #allocation0 [shape = 'u32[]', space=smem, size = 0x4, offset = 0x4, fixed_abs, tag = 'smem constant byte address 0x4 - core index']
  #allocation1 [shape = 'u32[72,128]{1,0:T(1,128)}', space=vmem, size = 0x9000, scoped, tag = 'internal scratch']
  %s0 = inlined_call_operand.vmem [shape: f32[10,20,20,32], index: 0, kind: input, shape index: {}]
  %s1 = inlined_call_operand.vmem [shape: f32[5,5,160,128], index: 1, kind: input, shape index: {}]
  %s2 = inlined_call_operand.vmem [shape: f32[5,1,128], index: 2, kind: input, shape index: {}]
  %s3 = inlined_call_operand.vmem [shape: f32[10,16,16,128], index: 3, kind: output, shape index: {}]
  %s4 = sld [smem:[#allocation0]]
  $region45: #{_forward_impl.1} parent=0
    _
  %s6 = ssub.s32 1, %s4
  %s7 = scalar_select 0, %s6, %s4
  loop: start=0, step=1, limit=7
  $region2: #{_forward_impl.1} parent=0 // loop_pre_header
    _
  $region3: #{_forward_impl.1} parent=0 // loop_header
    %s9 = sphi 0, %s13
    %p10 = scmp.ge.s32.totalorder %s9, 7
    %s16 = sphi 0, %s35
    %s17 = sphi 0, %s31
    %s18 = sphi 0, %s27
    %s19 = sphi 0, %s16
    %s20 = sphi 0, %s17
    %s21 = sphi 0, %s18
    %s22 = sphi 0, %s19
    %s23 = sphi 0, %s20
    %s24 = sphi 0, %s21
    %s40 = sphi 0, %s42
    %s43 = sphi 0, %s40
    %s44 = sphi 0, %s43
    %s60 = sphi 0, %s44
    %s68 = sphi 0, %s70
    %s71 = sphi 0, %s68
    %s72 = sphi 0, %s71
    %s88 = sphi 0, %s72
    %s96 = sphi 0, %s98
    %s99 = sphi 0, %s96
    %s100 = sphi 0, %s99
    %s116 = sphi 0, %s100
    %s126 = sphi 0, %s128
    %s129 = sphi 0, %s126
    %s130 = sphi 0, %s129
    %s146 = sphi 0, %s130
  $region4: #{_forward_impl.1} parent=0 // loop_header_branch
    %12 = sbr.rel (%p10) target = $region8
  $region5: #{_forward_impl.1} parent=0 // loop_body
    %s14 = ssub.s32 %s9, 1
    %s15 = ssub.s32 %s9, 2
    %s25 = sadd.s32 1, %s18
    %p26 = scmp.ge.s32.totalorder %s25, 1
    %s27 = scalar_select %p26, 0, %s25
    %s28 = sadd.s32 1, %s17
    %s29 = scalar_select %p26, %s28, %s17
    %p30 = scmp.ge.s32.totalorder %s29, 5
    %s31 = scalar_select %p30, 0, %s29
    %s32 = sadd.s32 1, %s16
    %s33 = scalar_select %p30, %s32, %s16
    %p34 = scmp.ge.s32.totalorder %s33, 1
    %s35 = scalar_select %p34, 0, %s33
    %s36 = sadd.s32 %s17, %s16
    %s37 = sadd.s32 %s31, %s35
    %s38 = ssub.s32 %s36, %s37
    %p39 = scmp.eq.s32.totalorder %s38, 0
    %s41 = sadd.s32 %s40, 1
    %s42 = scalar_select %p39, %s40, %s41
    %p45 = pneg %p39
    %p46 = scmp.eq.s32.totalorder %s9, 4
    %p47 = por %p45, %p46
    %p48 = scmp.ne.s32.totalorder %s40, %s43
    %p49 = scmp.eq.s32.totalorder %s9, 0
    %p50 = por %p48, %p49
    %p51 = scmp.ne.s32.totalorder %s40, %s43
    %p52 = scmp.eq.s32.totalorder %s14, 4
    %p53 = por %p51, %p52
    %p54 = scmp.ne.s32.totalorder %s43, %s44
    %p55 = scmp.eq.s32.totalorder %s14, 0
    %p56 = por %p54, %p55
    %p57 = scmp.ne.s32.totalorder %s43, %s44
    %p58 = scmp.eq.s32.totalorder %s15, 4
    %p59 = por %p57, %p58
    %p61 = scmp.ne.s32.totalorder %s44, %s60
    %p62 = scmp.eq.s32.totalorder %s15, 0
    %p63 = por %p61, %p62
    %s64 = ssub.s32 %s17, %s31
    %s65 = ssub.s32 %s18, %s27
    %s66 = sor.u32 %s64, %s65
    %p67 = scmp.eq.s32.totalorder %s66, 0
    %s69 = sadd.s32 %s68, 1
    %s70 = scalar_select %p67, %s68, %s69
    %p73 = pneg %p67
    %p74 = scmp.eq.s32.totalorder %s9, 4
    %p75 = por %p73, %p74
    %p76 = scmp.ne.s32.totalorder %s68, %s71
    %p77 = scmp.eq.s32.totalorder %s9, 0
    %p78 = por %p76, %p77
    %p79 = scmp.ne.s32.totalorder %s68, %s71
    %p80 = scmp.eq.s32.totalorder %s14, 4
    %p81 = por %p79, %p80
    %p82 = scmp.ne.s32.totalorder %s71, %s72
    %p83 = scmp.eq.s32.totalorder %s14, 0
    %p84 = por %p82, %p83
    %p85 = scmp.ne.s32.totalorder %s71, %s72
    %p86 = scmp.eq.s32.totalorder %s15, 4
    %p87 = por %p85, %p86
    %p89 = scmp.ne.s32.totalorder %s72, %s88
    %p90 = scmp.eq.s32.totalorder %s15, 0
    %p91 = por %p89, %p90
    %s92 = ssub.s32 %s17, %s31
    %s93 = ssub.s32 %s18, %s27
    %s94 = sor.u32 %s92, %s93
    %p95 = scmp.eq.s32.totalorder %s94, 0
    %s97 = sadd.s32 %s96, 1
    %s98 = scalar_select %p95, %s96, %s97
    %p101 = pneg %p95
    %p102 = scmp.eq.s32.totalorder %s9, 4
    %p103 = por %p101, %p102
    %p104 = scmp.ne.s32.totalorder %s96, %s99
    %p105 = scmp.eq.s32.totalorder %s9, 0
    %p106 = por %p104, %p105
    %p107 = scmp.ne.s32.totalorder %s96, %s99
    %p108 = scmp.eq.s32.totalorder %s14, 4
    %p109 = por %p107, %p108
    %p110 = scmp.ne.s32.totalorder %s99, %s100
    %p111 = scmp.eq.s32.totalorder %s14, 0
    %p112 = por %p110, %p111
    %p113 = scmp.ne.s32.totalorder %s99, %s100
    %p114 = scmp.eq.s32.totalorder %s15, 4
    %p115 = por %p113, %p114
    %p117 = scmp.ne.s32.totalorder %s100, %s116
    %p118 = scmp.eq.s32.totalorder %s15, 0
    %p119 = por %p117, %p118
    %s120 = sadd.s32 %s17, %s16
    %s121 = sadd.s32 %s31, %s35
    %s122 = ssub.s32 %s120, %s121
    %s123 = ssub.s32 %s18, %s27
    %s124 = sor.u32 %s122, %s123
    %p125 = scmp.eq.s32.totalorder %s124, 0
    %s127 = sadd.s32 %s126, 1
    %s128 = scalar_select %p125, %s126, %s127
    %p131 = pneg %p125
    %p132 = scmp.eq.s32.totalorder %s9, 4
    %p133 = por %p131, %p132
    %p134 = scmp.ne.s32.totalorder %s126, %s129
    %p135 = scmp.eq.s32.totalorder %s9, 0
    %p136 = por %p134, %p135
    %p137 = scmp.ne.s32.totalorder %s126, %s129
    %p138 = scmp.eq.s32.totalorder %s14, 4
    %p139 = por %p137, %p138
    %p140 = scmp.ne.s32.totalorder %s129, %s130
    %p141 = scmp.eq.s32.totalorder %s14, 0
    %p142 = por %p140, %p141
    %p143 = scmp.ne.s32.totalorder %s129, %s130
    %p144 = scmp.eq.s32.totalorder %s15, 4
    %p145 = por %p143, %p144
    %p147 = scmp.ne.s32.totalorder %s130, %s146
    %p148 = scmp.eq.s32.totalorder %s15, 0
    %p149 = por %p147, %p148
    %p150 = scmp.le.s32.totalorder 1, %s9
    %p151 = scmp.lt.s32.totalorder %s9, 6
    %p152 = pnand %p150, %p151
    %p153 = pneg %p152
    // Predicated region
    $region9: #{_forward_impl.1} parent=5 // pred_check
      _
    $region10: #{_forward_impl.1} parent=5 // pred_check_branch
      %155 = sbr.rel (%p152) target = $region12
    $region11: #{_forward_impl.1} parent=5 // pred_region
      %s156 = ssub.s32 %s9, 1
    $region12: #{_forward_impl.1} parent=5 // pred_fallthru
      _
    %p157 = scmp.lt.s32.totalorder %s9, 5
    // Predicated region
    $region13: #{_forward_impl.1} parent=5 // pred_check
      %p158 = pneg %p157
    $region14: #{_forward_impl.1} parent=5 // pred_check_branch
      %160 = sbr.rel (%p158) target = $region16
    $region15: #{_forward_impl.1} parent=5 // pred_region
      // Predicated region
      $region17: #{_forward_impl.1} parent=15 // pred_check
        %p161 = pneg %p50
      $region18: #{_forward_impl.1} parent=15 // pred_check_branch
        %163 = sbr.rel (%p161) target = $region20
      $region19: #{_forward_impl.1} parent=15 // pred_region
        %s164 = sadd.s32 %s17, %s16
        %s165 = smul.u32 2, %s164
        %p166 = scmp.lt.s32.totalorder %s165, 9
        %s167 = scalar_select %p166, %s165, 9
        %s168 = smul.addr %s167, 60
        %s169 = smul.addr %s168, 8
        %s170 = scalar_lea.vmem %s0, %s169
        %s171 = sadd.s32 %s17, %s16
        %s172 = smul.u32 2, %s171
      $region20: #{_forward_impl.1} parent=15 // pred_fallthru
        _
      // Predicated region
      $region21: #{_forward_impl.1} parent=15 // pred_check
        %p173 = pneg %p78
      $region22: #{_forward_impl.1} parent=15 // pred_check_branch
        %175 = sbr.rel (%p173) target = $region24
      $region23: #{_forward_impl.1} parent=15 // pred_region
        %p176 = scmp.lt.s32.totalorder %s17, 4
        %s177 = scalar_select %p176, %s17, 4
        %p178 = scmp.lt.s32.totalorder %s18, 0
        %s179 = scalar_select %p178, %s18, 0
        %s180 = smul.addr %s177, 100
        %s181 = sadd.s32 %s179, %s180
        %s182 = smul.addr %s181, 8
        %s183 = scalar_lea.vmem %s1, %s182
      $region24: #{_forward_impl.1} parent=15 // pred_fallthru
        _
      // Predicated region
      $region25: #{_forward_impl.1} parent=15 // pred_check
        %p184 = pneg %p106
      $region26: #{_forward_impl.1} parent=15 // pred_check_branch
        %186 = sbr.rel (%p184) target = $region28
      $region27: #{_forward_impl.1} parent=15 // pred_region
        %p187 = scmp.lt.s32.totalorder %s17, 4
        %s188 = scalar_select %p187, %s17, 4
        %p189 = scmp.lt.s32.totalorder %s18, 0
        %s190 = scalar_select %p189, %s18, 0
        %s191 = sadd.s32 %s190, %s188
        %s192 = scalar_lea.vmem %s2, %s191
      $region28: #{_forward_impl.1} parent=15 // pred_fallthru
        _
    $region16: #{_forward_impl.1} parent=5 // pred_fallthru
      _
    %p193 = scmp.le.s32.totalorder 1, %s9
    %p194 = scmp.lt.s32.totalorder %s9, 6
    %p195 = pnand %p193, %p194
    %p196 = pneg %p195
    // Predicated region
    $region29: #{_forward_impl.1} parent=5 // pred_check
      _
    $region30: #{_forward_impl.1} parent=5 // pred_check_branch
      %198 = sbr.rel (%p195) target = $region32
    $region31: #{_forward_impl.1} parent=5 // pred_region
      %s199 = ssub.s32 %s9, 1
      %s200 = sadd.s32 %s20, %s19
      %s201 = smul.u32 2, %s200
      %p202 = scmp.lt.s32.totalorder %s201, 9
      %s203 = scalar_select %p202, %s201, 9
      %s204 = smul.addr %s203, 60
      %s205 = smul.addr %s204, 8
      %s206 = scalar_lea.vmem %s0, %s205
      %p207 = pneg %p56
      %p208 = pneg %p53
      %p209 = scmp.lt.s32.totalorder %s20, 4
      %s210 = scalar_select %p209, %s20, 4
      %p211 = scmp.lt.s32.totalorder %s21, 0
      %s212 = scalar_select %p211, %s21, 0
      %s213 = smul.addr %s210, 100
      %s214 = sadd.s32 %s212, %s213
      %s215 = smul.addr %s214, 8
      %s216 = scalar_lea.vmem %s1, %s215
      %p217 = pneg %p84
      %p218 = pneg %p81
      %p219 = scmp.lt.s32.totalorder %s20, 4
      %s220 = scalar_select %p219, %s20, 4
      %p221 = scmp.lt.s32.totalorder %s21, 0
      %s222 = scalar_select %p221, %s21, 0
      %s223 = sadd.s32 %s222, %s220
      %s224 = scalar_lea.vmem %s2, %s223
      %p225 = pneg %p112
      %p226 = pneg %p109
      %p227 = pneg %p142
      %p228 = pneg %p139
      %s229 = sadd.s32 %s20, %s19
      %s230 = smul.u32 2, %s229
      %p231 = scmp.lt.s32.totalorder %s230, 9
      %s232 = scalar_select %p231, %s230, 9
      %p233 = scmp.lt.s32.totalorder %s21, 0
      %s234 = scalar_select %p233, %s21, 0
      %s235 = smul.addr %s232, 32
      %s236 = sadd.s32 %s234, %s235
      %s237 = smul.addr %s236, 8
      %s238 = scalar_lea.vmem %s3, %s237
      %s239 = sadd.s32 %s20, %s19
      %s240 = smul.u32 2, %s239
      %p241 = scmp.lt.s32.totalorder %s240, 9
      %s242 = scalar_select %p241, %s240, 9
      %s243 = smul.addr %s242, 60
      %s244 = smul.addr %s243, 8
      %s245 = scalar_lea.vmem %s0, %s244
      %s246 = sadd.s32 %s20, %s19
      %s247 = smul.u32 2, %s246
      %p248 = scmp.lt.s32.totalorder %s20, 4
      %s249 = scalar_select %p248, %s20, 4
      %p250 = scmp.lt.s32.totalorder %s21, 0
      %s251 = scalar_select %p250, %s21, 0
      %s252 = smul.addr %s249, 100
      %s253 = sadd.s32 %s251, %s252
      %s254 = smul.addr %s253, 8
      %s255 = scalar_lea.vmem %s1, %s254
      %p256 = scmp.lt.s32.totalorder %s20, 4
      %s257 = scalar_select %p256, %s20, 4
      %p258 = scmp.lt.s32.totalorder %s21, 0
      %s259 = scalar_select %p258, %s21, 0
      %s260 = sadd.s32 %s259, %s257
      %s261 = scalar_lea.vmem %s2, %s260
      %s262 = sadd.s32 %s20, %s19
      %s263 = smul.u32 2, %s262
      %p264 = scmp.lt.s32.totalorder %s263, 9
      %s265 = scalar_select %p264, %s263, 9
      %p266 = scmp.lt.s32.totalorder %s21, 0
      %s267 = scalar_select %p266, %s21, 0
      %s268 = smul.addr %s265, 32
      %s269 = sadd.s32 %s267, %s268
      %s270 = smul.addr %s269, 8
      %s271 = scalar_lea.vmem %s3, %s270
      %s272 = sadd.s32 %s20, %s19
      %s273 = smul.u32 2, %s272
      %v274 = vld [vmem:[%s245] sm:$0xff]
      %v275 = vld [vmem:[%s245 + $0x8] sm:$0xff]
      %v276 = vld [vmem:[%s245 + $0x10] sm:$0xf]
      %v277 = vld [vmem:[%s245 + $0x18] sm:$0xff]
      %v278 = vld [vmem:[%s245 + $0x20] sm:$0xff]
      %v279 = vld [vmem:[%s245 + $0x28] sm:$0xf]
      %v280 = vld [vmem:[%s245 + $0x30] sm:$0xff]
      %v281 = vld [vmem:[%s245 + $0x38] sm:$0xff]
      %v282 = vld [vmem:[%s245 + $0x40] sm:$0xf]
      %v283 = vld [vmem:[%s245 + $0x48] sm:$0xff]
      %v284 = vld [vmem:[%s245 + $0x50] sm:$0xff]
      %v285 = vld [vmem:[%s245 + $0x58] sm:$0xf]
      %v286 = vld [vmem:[%s245 + $0x60] sm:$0xff]
      %v287 = vld [vmem:[%s245 + $0x68] sm:$0xff]
      %v288 = vld [vmem:[%s245 + $0x70] sm:$0xf]
      %v289 = vld [vmem:[%s245 + $0x78] sm:$0xff]
      %v290 = vld [vmem:[%s245 + $0x80] sm:$0xff]
      %v291 = vld [vmem:[%s245 + $0x88] sm:$0xf]
      %v292 = vld [vmem:[%s245 + $0x90] sm:$0xff]
      %v293 = vld [vmem:[%s245 + $0x98] sm:$0xff]
      %v294 = vld [vmem:[%s245 + $0xa0] sm:$0xf]
      %v295 = vld [vmem:[%s245 + $0xa8] sm:$0xff]
      %v296 = vld [vmem:[%s245 + $0xb0] sm:$0xff]
      %v297 = vld [vmem:[%s245 + $0xb8] sm:$0xf]
      %v298 = vld [vmem:[%s245 + $0xc0] sm:$0xff]
      %v299 = vld [vmem:[%s245 + $0xc8] sm:$0xff]
      %v300 = vld [vmem:[%s245 + $0xd0] sm:$0xf]
      %v301 = vld [vmem:[%s245 + $0xd8] sm:$0xff]
      %v302 = vld [vmem:[%s245 + $0xe0] sm:$0xff]
      %v303 = vld [vmem:[%s245 + $0xe8] sm:$0xf]
      %v304 = vld [vmem:[%s245 + $0xf0] sm:$0xff]
      %v305 = vld [vmem:[%s245 + $0xf8] sm:$0xff]
      %v306 = vld [vmem:[%s245 + $0x100] sm:$0xf]
      %v307 = vld [vmem:[%s245 + $0x108] sm:$0xff]
      %v308 = vld [vmem:[%s245 + $0x110] sm:$0xff]
      %v309 = vld [vmem:[%s245 + $0x118] sm:$0xf]
      %v310 = vld [vmem:[%s245 + $0x120] sm:$0xff]
      %v311 = vld [vmem:[%s245 + $0x128] sm:$0xff]
      %v312 = vld [vmem:[%s245 + $0x130] sm:$0xf]
      %v313 = vld [vmem:[%s245 + $0x138] sm:$0xff]
      %v314 = vld [vmem:[%s245 + $0x140] sm:$0xff]
      %v315 = vld [vmem:[%s245 + $0x148] sm:$0xf]
      %v316 = vld [vmem:[%s245 + $0x150] sm:$0xff]
      %v317 = vld [vmem:[%s245 + $0x158] sm:$0xff]
      %v318 = vld [vmem:[%s245 + $0x160] sm:$0xf]
      %v319 = vld [vmem:[%s245 + $0x168] sm:$0xff]
      %v320 = vld [vmem:[%s245 + $0x170] sm:$0xff]
      %v321 = vld [vmem:[%s245 + $0x178] sm:$0xf]
      %v322 = vld [vmem:[%s245 + $0x180] sm:$0xff]
      %v323 = vld [vmem:[%s245 + $0x188] sm:$0xff]
      %v324 = vld [vmem:[%s245 + $0x190] sm:$0xf]
      %v325 = vld [vmem:[%s245 + $0x198] sm:$0xff]
      %v326 = vld [vmem:[%s245 + $0x1a0] sm:$0xff]
      %v327 = vld [vmem:[%s245 + $0x1a8] sm:$0xf]
      %v328 = vld [vmem:[%s245 + $0x1b0] sm:$0xff]
      %v329 = vld [vmem:[%s245 + $0x1b8] sm:$0xff]
      %v330 = vld [vmem:[%s245 + $0x1c0] sm:$0xf]
      %v331 = vld [vmem:[%s245 + $0x1c8] sm:$0xff]
      %v332 = vld [vmem:[%s245 + $0x1d0] sm:$0xff]
      %v333 = vld [vmem:[%s245 + $0x1d8] sm:$0xf]
      %v334 = vld [vmem:[%s245 + $0x1e0] sm:$0xff]
      %v335 = vld [vmem:[%s245 + $0x1e8] sm:$0xff]
      %v336 = vld [vmem:[%s245 + $0x1f0] sm:$0xf]
      %v337 = vld [vmem:[%s245 + $0x1f8] sm:$0xff]
      %v338 = vld [vmem:[%s245 + $0x200] sm:$0xff]
      %v339 = vld [vmem:[%s245 + $0x208] sm:$0xf]
      %v340 = vld [vmem:[%s245 + $0x210] sm:$0xff]
      %v341 = vld [vmem:[%s245 + $0x218] sm:$0xff]
      %v342 = vld [vmem:[%s245 + $0x220] sm:$0xf]
      %v343 = vld [vmem:[%s245 + $0x228] sm:$0xff]
      %v344 = vld [vmem:[%s245 + $0x230] sm:$0xff]
      %v345 = vld [vmem:[%s245 + $0x238] sm:$0xf]
      %v346 = vld [vmem:[%s245 + $0x240] sm:$0xff]
      %v347 = vld [vmem:[%s245 + $0x248] sm:$0xff]
      %v348 = vld [vmem:[%s245 + $0x250] sm:$0xf]
      %v349 = vld [vmem:[%s245 + $0x258] sm:$0xff]
      %v350 = vld [vmem:[%s245 + $0x260] sm:$0xff]
      %v351 = vld [vmem:[%s245 + $0x268] sm:$0xf]
      %v352 = vld [vmem:[%s245 + $0x270] sm:$0xff]
      %v353 = vld [vmem:[%s245 + $0x278] sm:$0xff]
      %v354 = vld [vmem:[%s245 + $0x280] sm:$0xf]
      %v355 = vld [vmem:[%s245 + $0x288] sm:$0xff]
      %v356 = vld [vmem:[%s245 + $0x290] sm:$0xff]
      %v357 = vld [vmem:[%s245 + $0x298] sm:$0xf]
      %v358 = vld [vmem:[%s245 + $0x2a0] sm:$0xff]
      %v359 = vld [vmem:[%s245 + $0x2a8] sm:$0xff]
      %v360 = vld [vmem:[%s245 + $0x2b0] sm:$0xf]
      %v361 = vld [vmem:[%s245 + $0x2b8] sm:$0xff]
      %v362 = vld [vmem:[%s245 + $0x2c0] sm:$0xff]
      %v363 = vld [vmem:[%s245 + $0x2c8] sm:$0xf]
      %v364 = vld [vmem:[%s245 + $0x2d0] sm:$0xff]
      %v365 = vld [vmem:[%s245 + $0x2d8] sm:$0xff]
      %v366 = vld [vmem:[%s245 + $0x2e0] sm:$0xf]
      %v367 = vld [vmem:[%s245 + $0x2e8] sm:$0xff]
      %v368 = vld [vmem:[%s245 + $0x2f0] sm:$0xff]
      %v369 = vld [vmem:[%s245 + $0x2f8] sm:$0xf]
      %v370 = vld [vmem:[%s245 + $0x300] sm:$0xff]
      %v371 = vld [vmem:[%s245 + $0x308] sm:$0xff]
      %v372 = vld [vmem:[%s245 + $0x310] sm:$0xf]
      %v373 = vld [vmem:[%s245 + $0x318] sm:$0xff]
      %v374 = vld [vmem:[%s245 + $0x320] sm:$0xff]
      %v375 = vld [vmem:[%s245 + $0x328] sm:$0xf]
      %v376 = vld [vmem:[%s245 + $0x330] sm:$0xff]
      %v377 = vld [vmem:[%s245 + $0x338] sm:$0xff]
      %v378 = vld [vmem:[%s245 + $0x340] sm:$0xf]
      %v379 = vld [vmem:[%s245 + $0x348] sm:$0xff]
      %v380 = vld [vmem:[%s245 + $0x350] sm:$0xff]
      %v381 = vld [vmem:[%s245 + $0x358] sm:$0xf]
      %v382 = vld [vmem:[%s245 + $0x360] sm:$0xff]
      %v383 = vld [vmem:[%s245 + $0x368] sm:$0xff]
      %v384 = vld [vmem:[%s245 + $0x370] sm:$0xf]
      %v385 = vld [vmem:[%s245 + $0x378] sm:$0xff]
      %v386 = vld [vmem:[%s245 + $0x380] sm:$0xff]
      %v387 = vld [vmem:[%s245 + $0x388] sm:$0xf]
      %v388 = vld [vmem:[%s245 + $0x390] sm:$0xff]
      %v389 = vld [vmem:[%s245 + $0x398] sm:$0xff]
      %v390 = vld [vmem:[%s245 + $0x3a0] sm:$0xf]
      %v391 = vld [vmem:[%s245 + $0x3a8] sm:$0xff]
      %v392 = vld [vmem:[%s245 + $0x3b0] sm:$0xff]
      %v393 = vld [vmem:[%s245 + $0x3b8] sm:$0xf]
      %vm514 = vcmask 1046528
      %v515 = vrot.slane %v274, 1
      %v516 = vrot.slane %v275, 1
      %v517 = vsel %vm514, %v515, %v516
      %v518 = vrot.slane %v276, 1
      %v519 = vsel %vm514, %v516, %v518
      %v520 = vrot.slane %v277, 1
      %v521 = vrot.slane %v278, 1
      %v522 = vsel %vm514, %v520, %v521
      %v523 = vrot.slane %v279, 1
      %v524 = vsel %vm514, %v521, %v523
      %v525 = vrot.slane %v280, 1
      %v526 = vrot.slane %v281, 1
      %v527 = vsel %vm514, %v525, %v526
      %v528 = vrot.slane %v282, 1
      %v529 = vsel %vm514, %v526, %v528
      %v530 = vrot.slane %v283, 1
      %v531 = vrot.slane %v284, 1
      %v532 = vsel %vm514, %v530, %v531
      %v533 = vrot.slane %v285, 1
      %v534 = vsel %vm514, %v531, %v533
      %v535 = vrot.slane %v286, 1
      %v536 = vrot.slane %v287, 1
      %v537 = vsel %vm514, %v535, %v536
      %v538 = vrot.slane %v288, 1
      %v539 = vsel %vm514, %v536, %v538
      %v540 = vrot.slane %v289, 1
      %v541 = vrot.slane %v290, 1
      %v542 = vsel %vm514, %v540, %v541
      %v543 = vrot.slane %v291, 1
      %v544 = vsel %vm514, %v541, %v543
      %v545 = vrot.slane %v292, 1
      %v546 = vrot.slane %v293, 1
      %v547 = vsel %vm514, %v545, %v546
      %v548 = vrot.slane %v294, 1
      %v549 = vsel %vm514, %v546, %v548
      %v550 = vrot.slane %v295, 1
      %v551 = vrot.slane %v296, 1
      %v552 = vsel %vm514, %v550, %v551
      %v553 = vrot.slane %v297, 1
      %v554 = vsel %vm514, %v551, %v553
      %v555 = vrot.slane %v298, 1
      %v556 = vrot.slane %v299, 1
      %v557 = vsel %vm514, %v555, %v556
      %v558 = vrot.slane %v300, 1
      %v559 = vsel %vm514, %v556, %v558
      %v560 = vrot.slane %v301, 1
      %v561 = vrot.slane %v302, 1
      %v562 = vsel %vm514, %v560, %v561
      %v563 = vrot.slane %v303, 1
      %v564 = vsel %vm514, %v561, %v563
      %v565 = vrot.slane %v304, 1
      %v566 = vrot.slane %v305, 1
      %v567 = vsel %vm514, %v565, %v566
      %v568 = vrot.slane %v306, 1
      %v569 = vsel %vm514, %v566, %v568
      %v570 = vrot.slane %v307, 1
      %v571 = vrot.slane %v308, 1
      %v572 = vsel %vm514, %v570, %v571
      %v573 = vrot.slane %v309, 1
      %v574 = vsel %vm514, %v571, %v573
      %v575 = vrot.slane %v310, 1
      %v576 = vrot.slane %v311, 1
      %v577 = vsel %vm514, %v575, %v576
      %v578 = vrot.slane %v312, 1
      %v579 = vsel %vm514, %v576, %v578
      %v580 = vrot.slane %v313, 1
      %v581 = vrot.slane %v314, 1
      %v582 = vsel %vm514, %v580, %v581
      %v583 = vrot.slane %v315, 1
      %v584 = vsel %vm514, %v581, %v583
      %v585 = vrot.slane %v316, 1
      %v586 = vrot.slane %v317, 1
      %v587 = vsel %vm514, %v585, %v586
      %v588 = vrot.slane %v318, 1
      %v589 = vsel %vm514, %v586, %v588
      %v590 = vrot.slane %v319, 1
      %v591 = vrot.slane %v320, 1
      %v592 = vsel %vm514, %v590, %v591
      %v593 = vrot.slane %v321, 1
      %v594 = vsel %vm514, %v591, %v593
      %v595 = vrot.slane %v322, 1
      %v596 = vrot.slane %v323, 1
      %v597 = vsel %vm514, %v595, %v596
      %v598 = vrot.slane %v324, 1
      %v599 = vsel %vm514, %v596, %v598
      %v600 = vrot.slane %v325, 1
      %v601 = vrot.slane %v326, 1
      %v602 = vsel %vm514, %v600, %v601
      %v603 = vrot.slane %v327, 1
      %v604 = vsel %vm514, %v601, %v603
      %v605 = vrot.slane %v328, 1
      %v606 = vrot.slane %v329, 1
      %v607 = vsel %vm514, %v605, %v606
      %v608 = vrot.slane %v330, 1
      %v609 = vsel %vm514, %v606, %v608
      %v610 = vrot.slane %v331, 1
      %v611 = vrot.slane %v332, 1
      %v612 = vsel %vm514, %v610, %v611
      %v613 = vrot.slane %v333, 1
      %v614 = vsel %vm514, %v611, %v613
      %v615 = vrot.slane %v334, 1
      %v616 = vrot.slane %v335, 1
      %v617 = vsel %vm514, %v615, %v616
      %v618 = vrot.slane %v336, 1
      %v619 = vsel %vm514, %v616, %v618
      %v620 = vrot.slane %v337, 1
      %v621 = vrot.slane %v338, 1
      %v622 = vsel %vm514, %v620, %v621
      %v623 = vrot.slane %v339, 1
      %v624 = vsel %vm514, %v621, %v623
      %v625 = vrot.slane %v340, 1
      %v626 = vrot.slane %v341, 1
      %v627 = vsel %vm514, %v625, %v626
      %v628 = vrot.slane %v342, 1
      %v629 = vsel %vm514, %v626, %v628
      %v630 = vrot.slane %v343, 1
      %v631 = vrot.slane %v344, 1
      %v632 = vsel %vm514, %v630, %v631
      %v633 = vrot.slane %v345, 1
      %v634 = vsel %vm514, %v631, %v633
      %v635 = vrot.slane %v346, 1
      %v636 = vrot.slane %v347, 1
      %v637 = vsel %vm514, %v635, %v636
      %v638 = vrot.slane %v348, 1
      %v639 = vsel %vm514, %v636, %v638
      %v640 = vrot.slane %v349, 1
      %v641 = vrot.slane %v350, 1
      %v642 = vsel %vm514, %v640, %v641
      %v643 = vrot.slane %v351, 1
      %v644 = vsel %vm514, %v641, %v643
      %v645 = vrot.slane %v352, 1
      %v646 = vrot.slane %v353, 1
      %v647 = vsel %vm514, %v645, %v646
      %v648 = vrot.slane %v354, 1
      %v649 = vsel %vm514, %v646, %v648
      %v650 = vrot.slane %v355, 1
      %v651 = vrot.slane %v356, 1
      %v652 = vsel %vm514, %v650, %v651
      %v653 = vrot.slane %v357, 1
      %v654 = vsel %vm514, %v651, %v653
      %v655 = vrot.slane %v358, 1
      %v656 = vrot.slane %v359, 1
      %v657 = vsel %vm514, %v655, %v656
      %v658 = vrot.slane %v360, 1
      %v659 = vsel %vm514, %v656, %v658
      %v660 = vrot.slane %v361, 1
      %v661 = vrot.slane %v362, 1
      %v662 = vsel %vm514, %v660, %v661
      %v663 = vrot.slane %v363, 1
      %v664 = vsel %vm514, %v661, %v663
      %v665 = vrot.slane %v364, 1
      %v666 = vrot.slane %v365, 1
      %v667 = vsel %vm514, %v665, %v666
      %v668 = vrot.slane %v366, 1
      %v669 = vsel %vm514, %v666, %v668
      %v670 = vrot.slane %v367, 1
      %v671 = vrot.slane %v368, 1
      %v672 = vsel %vm514, %v670, %v671
      %v673 = vrot.slane %v369, 1
      %v674 = vsel %vm514, %v671, %v673
      %v675 = vrot.slane %v370, 1
      %v676 = vrot.slane %v371, 1
      %v677 = vsel %vm514, %v675, %v676
      %v678 = vrot.slane %v372, 1
      %v679 = vsel %vm514, %v676, %v678
      %v680 = vrot.slane %v373, 1
      %v681 = vrot.slane %v374, 1
      %v682 = vsel %vm514, %v680, %v681
      %v683 = vrot.slane %v375, 1
      %v684 = vsel %vm514, %v681, %v683
      %v685 = vrot.slane %v376, 1
      %v686 = vrot.slane %v377, 1
      %v687 = vsel %vm514, %v685, %v686
      %v688 = vrot.slane %v378, 1
      %v689 = vsel %vm514, %v686, %v688
      %v690 = vrot.slane %v379, 1
      %v691 = vrot.slane %v380, 1
      %v692 = vsel %vm514, %v690, %v691
      %v693 = vrot.slane %v381, 1
      %v694 = vsel %vm514, %v691, %v693
      %v695 = vrot.slane %v382, 1
      %v696 = vrot.slane %v383, 1
      %v697 = vsel %vm514, %v695, %v696
      %v698 = vrot.slane %v384, 1
      %v699 = vsel %vm514, %v696, %v698
      %v700 = vrot.slane %v385, 1
      %v701 = vrot.slane %v386, 1
      %v702 = vsel %vm514, %v700, %v701
      %v703 = vrot.slane %v387, 1
      %v704 = vsel %vm514, %v701, %v703
      %v705 = vrot.slane %v388, 1
      %v706 = vrot.slane %v389, 1
      %v707 = vsel %vm514, %v705, %v706
      %v708 = vrot.slane %v390, 1
      %v709 = vsel %vm514, %v706, %v708
      %v710 = vrot.slane %v391, 1
      %v711 = vrot.slane %v392, 1
      %v712 = vsel %vm514, %v710, %v711
      %v713 = vrot.slane %v393, 1
      %v714 = vsel %vm514, %v711, %v713
      %715 = vrot.lane.b32.xlu0 %v517, 32
      %v716 = vpop.permute.xlu0 %715
      %717 = vrot.lane.b32.xlu0 %v519, 32
      %v718 = vpop.permute.xlu0 %717
      %719 = vrot.lane.b32.xlu0 %v522, 32
      %v720 = vpop.permute.xlu0 %719
      %721 = vrot.lane.b32.xlu0 %v524, 32
      %v722 = vpop.permute.xlu0 %721
      %723 = vrot.lane.b32.xlu0 %v527, 32
      %v724 = vpop.permute.xlu0 %723
      %725 = vrot.lane.b32.xlu0 %v529, 32
      %v726 = vpop.permute.xlu0 %725
      %727 = vrot.lane.b32.xlu0 %v532, 32
      %v728 = vpop.permute.xlu0 %727
      %729 = vrot.lane.b32.xlu0 %v534, 32
      %v730 = vpop.permute.xlu0 %729
      %731 = vrot.lane.b32.xlu0 %v537, 32
      %v732 = vpop.permute.xlu0 %731
      %733 = vrot.lane.b32.xlu0 %v539, 32
      %v734 = vpop.permute.xlu0 %733
      %735 = vrot.lane.b32.xlu0 %v542, 32
      %v736 = vpop.permute.xlu0 %735
      %737 = vrot.lane.b32.xlu0 %v544, 32
      %v738 = vpop.permute.xlu0 %737
      %739 = vrot.lane.b32.xlu0 %v547, 32
      %v740 = vpop.permute.xlu0 %739
      %741 = vrot.lane.b32.xlu0 %v549, 32
      %v742 = vpop.permute.xlu0 %741
      %743 = vrot.lane.b32.xlu0 %v552, 32
      %v744 = vpop.permute.xlu0 %743
      %745 = vrot.lane.b32.xlu0 %v554, 32
      %v746 = vpop.permute.xlu0 %745
      %747 = vrot.lane.b32.xlu0 %v557, 32
      %v748 = vpop.permute.xlu0 %747
      %749 = vrot.lane.b32.xlu0 %v559, 32
      %v750 = vpop.permute.xlu0 %749
      %751 = vrot.lane.b32.xlu0 %v562, 32
      %v752 = vpop.permute.xlu0 %751
      %753 = vrot.lane.b32.xlu0 %v564, 32
      %v754 = vpop.permute.xlu0 %753
      %755 = vrot.lane.b32.xlu0 %v567, 32
      %v756 = vpop.permute.xlu0 %755
      %757 = vrot.lane.b32.xlu0 %v569, 32
      %v758 = vpop.permute.xlu0 %757
      %759 = vrot.lane.b32.xlu0 %v572, 32
      %v760 = vpop.permute.xlu0 %759
      %761 = vrot.lane.b32.xlu0 %v574, 32
      %v762 = vpop.permute.xlu0 %761
      %763 = vrot.lane.b32.xlu0 %v577, 32
      %v764 = vpop.permute.xlu0 %763
      %765 = vrot.lane.b32.xlu0 %v579, 32
      %v766 = vpop.permute.xlu0 %765
      %767 = vrot.lane.b32.xlu0 %v582, 32
      %v768 = vpop.permute.xlu0 %767
      %769 = vrot.lane.b32.xlu0 %v584, 32
      %v770 = vpop.permute.xlu0 %769
      %771 = vrot.lane.b32.xlu0 %v587, 32
      %v772 = vpop.permute.xlu0 %771
      %773 = vrot.lane.b32.xlu0 %v589, 32
      %v774 = vpop.permute.xlu0 %773
      %775 = vrot.lane.b32.xlu0 %v592, 32
      %v776 = vpop.permute.xlu0 %775
      %777 = vrot.lane.b32.xlu0 %v594, 32
      %v778 = vpop.permute.xlu0 %777
      %779 = vrot.lane.b32.xlu0 %v597, 32
      %v780 = vpop.permute.xlu0 %779
      %781 = vrot.lane.b32.xlu0 %v599, 32
      %v782 = vpop.permute.xlu0 %781
      %783 = vrot.lane.b32.xlu0 %v602, 32
      %v784 = vpop.permute.xlu0 %783
      %785 = vrot.lane.b32.xlu0 %v604, 32
      %v786 = vpop.permute.xlu0 %785
      %787 = vrot.lane.b32.xlu0 %v607, 32
      %v788 = vpop.permute.xlu0 %787
      %789 = vrot.lane.b32.xlu0 %v609, 32
      %v790 = vpop.permute.xlu0 %789
      %791 = vrot.lane.b32.xlu0 %v612, 32
      %v792 = vpop.permute.xlu0 %791
      %793 = vrot.lane.b32.xlu0 %v614, 32
      %v794 = vpop.permute.xlu0 %793
      %795 = vrot.lane.b32.xlu0 %v617, 32
      %v796 = vpop.permute.xlu0 %795
      %797 = vrot.lane.b32.xlu0 %v619, 32
      %v798 = vpop.permute.xlu0 %797
      %799 = vrot.lane.b32.xlu0 %v622, 32
      %v800 = vpop.permute.xlu0 %799
      %801 = vrot.lane.b32.xlu0 %v624, 32
      %v802 = vpop.permute.xlu0 %801
      %803 = vrot.lane.b32.xlu0 %v627, 32
      %v804 = vpop.permute.xlu0 %803
      %805 = vrot.lane.b32.xlu0 %v629, 32
      %v806 = vpop.permute.xlu0 %805
      %807 = vrot.lane.b32.xlu0 %v632, 32
      %v808 = vpop.permute.xlu0 %807
      %809 = vrot.lane.b32.xlu0 %v634, 32
      %v810 = vpop.permute.xlu0 %809
      %811 = vrot.lane.b32.xlu0 %v637, 32
      %v812 = vpop.permute.xlu0 %811
      %813 = vrot.lane.b32.xlu0 %v639, 32
      %v814 = vpop.permute.xlu0 %813
      %815 = vrot.lane.b32.xlu0 %v642, 32
      %v816 = vpop.permute.xlu0 %815
      %817 = vrot.lane.b32.xlu0 %v644, 32
      %v818 = vpop.permute.xlu0 %817
      %819 = vrot.lane.b32.xlu0 %v647, 32
      %v820 = vpop.permute.xlu0 %819
      %821 = vrot.lane.b32.xlu0 %v649, 32
      %v822 = vpop.permute.xlu0 %821
      %823 = vrot.lane.b32.xlu0 %v652, 32
      %v824 = vpop.permute.xlu0 %823
      %825 = vrot.lane.b32.xlu0 %v654, 32
      %v826 = vpop.permute.xlu0 %825
      %827 = vrot.lane.b32.xlu0 %v657, 32
      %v828 = vpop.permute.xlu0 %827
      %829 = vrot.lane.b32.xlu0 %v659, 32
      %v830 = vpop.permute.xlu0 %829
      %831 = vrot.lane.b32.xlu0 %v662, 32
      %v832 = vpop.permute.xlu0 %831
      %833 = vrot.lane.b32.xlu0 %v664, 32
      %v834 = vpop.permute.xlu0 %833
      %835 = vrot.lane.b32.xlu0 %v667, 32
      %v836 = vpop.permute.xlu0 %835
      %837 = vrot.lane.b32.xlu0 %v669, 32
      %v838 = vpop.permute.xlu0 %837
      %839 = vrot.lane.b32.xlu0 %v672, 32
      %v840 = vpop.permute.xlu0 %839
      %841 = vrot.lane.b32.xlu0 %v674, 32
      %v842 = vpop.permute.xlu0 %841
      %843 = vrot.lane.b32.xlu0 %v677, 32
      %v844 = vpop.permute.xlu0 %843
      %845 = vrot.lane.b32.xlu0 %v679, 32
      %v846 = vpop.permute.xlu0 %845
      %847 = vrot.lane.b32.xlu0 %v682, 32
      %v848 = vpop.permute.xlu0 %847
      %849 = vrot.lane.b32.xlu0 %v684, 32
      %v850 = vpop.permute.xlu0 %849
      %851 = vrot.lane.b32.xlu0 %v687, 32
      %v852 = vpop.permute.xlu0 %851
      %853 = vrot.lane.b32.xlu0 %v689, 32
      %v854 = vpop.permute.xlu0 %853
      %855 = vrot.lane.b32.xlu0 %v692, 32
      %v856 = vpop.permute.xlu0 %855
      %857 = vrot.lane.b32.xlu0 %v694, 32
      %v858 = vpop.permute.xlu0 %857
      %859 = vrot.lane.b32.xlu0 %v697, 32
      %v860 = vpop.permute.xlu0 %859
      %861 = vrot.lane.b32.xlu0 %v699, 32
      %v862 = vpop.permute.xlu0 %861
      %863 = vrot.lane.b32.xlu0 %v702, 32
      %v864 = vpop.permute.xlu0 %863
      %865 = vrot.lane.b32.xlu0 %v704, 32
      %v866 = vpop.permute.xlu0 %865
      %867 = vrot.lane.b32.xlu0 %v707, 32
      %v868 = vpop.permute.xlu0 %867
      %869 = vrot.lane.b32.xlu0 %v709, 32
      %v870 = vpop.permute.xlu0 %869
      %871 = vrot.lane.b32.xlu0 %v712, 32
      %v872 = vpop.permute.xlu0 %871
      %873 = vrot.lane.b32.xlu0 %v714, 32
      %v874 = vpop.permute.xlu0 %873
      %vm955 = vcmask 1045504
      %v956 = vrot.slane %v274, 2
      %v957 = vrot.slane %v275, 2
      %v958 = vsel %vm955, %v956, %v957
      %v959 = vrot.slane %v276, 2
      %v960 = vsel %vm955, %v957, %v959
      %v961 = vrot.slane %v277, 2
      %v962 = vrot.slane %v278, 2
      %v963 = vsel %vm955, %v961, %v962
      %v964 = vrot.slane %v279, 2
      %v965 = vsel %vm955, %v962, %v964
      %v966 = vrot.slane %v280, 2
      %v967 = vrot.slane %v281, 2
      %v968 = vsel %vm955, %v966, %v967
      %v969 = vrot.slane %v282, 2
      %v970 = vsel %vm955, %v967, %v969
      %v971 = vrot.slane %v283, 2
      %v972 = vrot.slane %v284, 2
      %v973 = vsel %vm955, %v971, %v972
      %v974 = vrot.slane %v285, 2
      %v975 = vsel %vm955, %v972, %v974
      %v976 = vrot.slane %v286, 2
      %v977 = vrot.slane %v287, 2
      %v978 = vsel %vm955, %v976, %v977
      %v979 = vrot.slane %v288, 2
      %v980 = vsel %vm955, %v977, %v979
      %v981 = vrot.slane %v289, 2
      %v982 = vrot.slane %v290, 2
      %v983 = vsel %vm955, %v981, %v982
      %v984 = vrot.slane %v291, 2
      %v985 = vsel %vm955, %v982, %v984
      %v986 = vrot.slane %v292, 2
      %v987 = vrot.slane %v293, 2
      %v988 = vsel %vm955, %v986, %v987
      %v989 = vrot.slane %v294, 2
      %v990 = vsel %vm955, %v987, %v989
      %v991 = vrot.slane %v295, 2
      %v992 = vrot.slane %v296, 2
      %v993 = vsel %vm955, %v991, %v992
      %v994 = vrot.slane %v297, 2
      %v995 = vsel %vm955, %v992, %v994
      %v996 = vrot.slane %v298, 2
      %v997 = vrot.slane %v299, 2
      %v998 = vsel %vm955, %v996, %v997
      %v999 = vrot.slane %v300, 2
      %v1000 = vsel %vm955, %v997, %v999
      %v1001 = vrot.slane %v301, 2
      %v1002 = vrot.slane %v302, 2
      %v1003 = vsel %vm955, %v1001, %v1002
      %v1004 = vrot.slane %v303, 2
      %v1005 = vsel %vm955, %v1002, %v1004
      %v1006 = vrot.slane %v304, 2
      %v1007 = vrot.slane %v305, 2
      %v1008 = vsel %vm955, %v1006, %v1007
      %v1009 = vrot.slane %v306, 2
      %v1010 = vsel %vm955, %v1007, %v1009
      %v1011 = vrot.slane %v307, 2
      %v1012 = vrot.slane %v308, 2
      %v1013 = vsel %vm955, %v1011, %v1012
      %v1014 = vrot.slane %v309, 2
      %v1015 = vsel %vm955, %v1012, %v1014
      %v1016 = vrot.slane %v310, 2
      %v1017 = vrot.slane %v311, 2
      %v1018 = vsel %vm955, %v1016, %v1017
      %v1019 = vrot.slane %v312, 2
      %v1020 = vsel %vm955, %v1017, %v1019
      %v1021 = vrot.slane %v313, 2
      %v1022 = vrot.slane %v314, 2
      %v1023 = vsel %vm955, %v1021, %v1022
      %v1024 = vrot.slane %v315, 2
      %v1025 = vsel %vm955, %v1022, %v1024
      %v1026 = vrot.slane %v316, 2
      %v1027 = vrot.slane %v317, 2
      %v1028 = vsel %vm955, %v1026, %v1027
      %v1029 = vrot.slane %v318, 2
      %v1030 = vsel %vm955, %v1027, %v1029
      %v1031 = vrot.slane %v319, 2
      %v1032 = vrot.slane %v320, 2
      %v1033 = vsel %vm955, %v1031, %v1032
      %v1034 = vrot.slane %v321, 2
      %v1035 = vsel %vm955, %v1032, %v1034
      %v1036 = vrot.slane %v322, 2
      %v1037 = vrot.slane %v323, 2
      %v1038 = vsel %vm955, %v1036, %v1037
      %v1039 = vrot.slane %v324, 2
      %v1040 = vsel %vm955, %v1037, %v1039
      %v1041 = vrot.slane %v325, 2
      %v1042 = vrot.slane %v326, 2
      %v1043 = vsel %vm955, %v1041, %v1042
      %v1044 = vrot.slane %v327, 2
      %v1045 = vsel %vm955, %v1042, %v1044
      %v1046 = vrot.slane %v328, 2
      %v1047 = vrot.slane %v329, 2
      %v1048 = vsel %vm955, %v1046, %v1047
      %v1049 = vrot.slane %v330, 2
      %v1050 = vsel %vm955, %v1047, %v1049
      %v1051 = vrot.slane %v331, 2
      %v1052 = vrot.slane %v332, 2
      %v1053 = vsel %vm955, %v1051, %v1052
      %v1054 = vrot.slane %v333, 2
      %v1055 = vsel %vm955, %v1052, %v1054
      %v1056 = vrot.slane %v334, 2
      %v1057 = vrot.slane %v335, 2
      %v1058 = vsel %vm955, %v1056, %v1057
      %v1059 = vrot.slane %v336, 2
      %v1060 = vsel %vm955, %v1057, %v1059
      %v1061 = vrot.slane %v337, 2
      %v1062 = vrot.slane %v338, 2
      %v1063 = vsel %vm955, %v1061, %v1062
      %v1064 = vrot.slane %v339, 2
      %v1065 = vsel %vm955, %v1062, %v1064
      %v1066 = vrot.slane %v340, 2
      %v1067 = vrot.slane %v341, 2
      %v1068 = vsel %vm955, %v1066, %v1067
      %v1069 = vrot.slane %v342, 2
      %v1070 = vsel %vm955, %v1067, %v1069
      %v1071 = vrot.slane %v343, 2
      %v1072 = vrot.slane %v344, 2
      %v1073 = vsel %vm955, %v1071, %v1072
      %v1074 = vrot.slane %v345, 2
      %v1075 = vsel %vm955, %v1072, %v1074
      %v1076 = vrot.slane %v346, 2
      %v1077 = vrot.slane %v347, 2
      %v1078 = vsel %vm955, %v1076, %v1077
      %v1079 = vrot.slane %v348, 2
      %v1080 = vsel %vm955, %v1077, %v1079
      %v1081 = vrot.slane %v349, 2
      %v1082 = vrot.slane %v350, 2
      %v1083 = vsel %vm955, %v1081, %v1082
      %v1084 = vrot.slane %v351, 2
      %v1085 = vsel %vm955, %v1082, %v1084
      %v1086 = vrot.slane %v352, 2
      %v1087 = vrot.slane %v353, 2
      %v1088 = vsel %vm955, %v1086, %v1087
      %v1089 = vrot.slane %v354, 2
      %v1090 = vsel %vm955, %v1087, %v1089
      %v1091 = vrot.slane %v355, 2
      %v1092 = vrot.slane %v356, 2
      %v1093 = vsel %vm955, %v1091, %v1092
      %v1094 = vrot.slane %v357, 2
      %v1095 = vsel %vm955, %v1092, %v1094
      %v1096 = vrot.slane %v358, 2
      %v1097 = vrot.slane %v359, 2
      %v1098 = vsel %vm955, %v1096, %v1097
      %v1099 = vrot.slane %v360, 2
      %v1100 = vsel %vm955, %v1097, %v1099
      %v1101 = vrot.slane %v361, 2
      %v1102 = vrot.slane %v362, 2
      %v1103 = vsel %vm955, %v1101, %v1102
      %v1104 = vrot.slane %v363, 2
      %v1105 = vsel %vm955, %v1102, %v1104
      %v1106 = vrot.slane %v364, 2
      %v1107 = vrot.slane %v365, 2
      %v1108 = vsel %vm955, %v1106, %v1107
      %v1109 = vrot.slane %v366, 2
      %v1110 = vsel %vm955, %v1107, %v1109
      %v1111 = vrot.slane %v367, 2
      %v1112 = vrot.slane %v368, 2
      %v1113 = vsel %vm955, %v1111, %v1112
      %v1114 = vrot.slane %v369, 2
      %v1115 = vsel %vm955, %v1112, %v1114
      %v1116 = vrot.slane %v370, 2
      %v1117 = vrot.slane %v371, 2
      %v1118 = vsel %vm955, %v1116, %v1117
      %v1119 = vrot.slane %v372, 2
      %v1120 = vsel %vm955, %v1117, %v1119
      %v1121 = vrot.slane %v373, 2
      %v1122 = vrot.slane %v374, 2
      %v1123 = vsel %vm955, %v1121, %v1122
      %v1124 = vrot.slane %v375, 2
      %v1125 = vsel %vm955, %v1122, %v1124
      %v1126 = vrot.slane %v376, 2
      %v1127 = vrot.slane %v377, 2
      %v1128 = vsel %vm955, %v1126, %v1127
      %v1129 = vrot.slane %v378, 2
      %v1130 = vsel %vm955, %v1127, %v1129
      %v1131 = vrot.slane %v379, 2
      %v1132 = vrot.slane %v380, 2
      %v1133 = vsel %vm955, %v1131, %v1132
      %v1134 = vrot.slane %v381, 2
      %v1135 = vsel %vm955, %v1132, %v1134
      %v1136 = vrot.slane %v382, 2
      %v1137 = vrot.slane %v383, 2
      %v1138 = vsel %vm955, %v1136, %v1137
      %v1139 = vrot.slane %v384, 2
      %v1140 = vsel %vm955, %v1137, %v1139
      %v1141 = vrot.slane %v385, 2
      %v1142 = vrot.slane %v386, 2
      %v1143 = vsel %vm955, %v1141, %v1142
      %v1144 = vrot.slane %v387, 2
      %v1145 = vsel %vm955, %v1142, %v1144
      %v1146 = vrot.slane %v388, 2
      %v1147 = vrot.slane %v389, 2
      %v1148 = vsel %vm955, %v1146, %v1147
      %v1149 = vrot.slane %v390, 2
      %v1150 = vsel %vm955, %v1147, %v1149
      %v1151 = vrot.slane %v391, 2
      %v1152 = vrot.slane %v392, 2
      %v1153 = vsel %vm955, %v1151, %v1152
      %v1154 = vrot.slane %v393, 2
      %v1155 = vsel %vm955, %v1152, %v1154
      %1156 = vrot.lane.b32.xlu0 %v958, 64
      %v1157 = vpop.permute.xlu0 %1156
      %1158 = vrot.lane.b32.xlu0 %v960, 64
      %v1159 = vpop.permute.xlu0 %1158
      %1160 = vrot.lane.b32.xlu0 %v963, 64
      %v1161 = vpop.permute.xlu0 %1160
      %1162 = vrot.lane.b32.xlu0 %v965, 64
      %v1163 = vpop.permute.xlu0 %1162
      %1164 = vrot.lane.b32.xlu0 %v968, 64
      %v1165 = vpop.permute.xlu0 %1164
      %1166 = vrot.lane.b32.xlu0 %v970, 64
      %v1167 = vpop.permute.xlu0 %1166
      %1168 = vrot.lane.b32.xlu0 %v973, 64
      %v1169 = vpop.permute.xlu0 %1168
      %1170 = vrot.lane.b32.xlu0 %v975, 64
      %v1171 = vpop.permute.xlu0 %1170
      %1172 = vrot.lane.b32.xlu0 %v978, 64
      %v1173 = vpop.permute.xlu0 %1172
      %1174 = vrot.lane.b32.xlu0 %v980, 64
      %v1175 = vpop.permute.xlu0 %1174
      %1176 = vrot.lane.b32.xlu0 %v983, 64
      %v1177 = vpop.permute.xlu0 %1176
      %1178 = vrot.lane.b32.xlu0 %v985, 64
      %v1179 = vpop.permute.xlu0 %1178
      %1180 = vrot.lane.b32.xlu0 %v988, 64
      %v1181 = vpop.permute.xlu0 %1180
      %1182 = vrot.lane.b32.xlu0 %v990, 64
      %v1183 = vpop.permute.xlu0 %1182
      %1184 = vrot.lane.b32.xlu0 %v993, 64
      %v1185 = vpop.permute.xlu0 %1184
      %1186 = vrot.lane.b32.xlu0 %v995, 64
      %v1187 = vpop.permute.xlu0 %1186
      %1188 = vrot.lane.b32.xlu0 %v998, 64
      %v1189 = vpop.permute.xlu0 %1188
      %1190 = vrot.lane.b32.xlu0 %v1000, 64
      %v1191 = vpop.permute.xlu0 %1190
      %1192 = vrot.lane.b32.xlu0 %v1003, 64
      %v1193 = vpop.permute.xlu0 %1192
      %1194 = vrot.lane.b32.xlu0 %v1005, 64
      %v1195 = vpop.permute.xlu0 %1194
      %1196 = vrot.lane.b32.xlu0 %v1008, 64
      %v1197 = vpop.permute.xlu0 %1196
      %1198 = vrot.lane.b32.xlu0 %v1010, 64
      %v1199 = vpop.permute.xlu0 %1198
      %1200 = vrot.lane.b32.xlu0 %v1013, 64
      %v1201 = vpop.permute.xlu0 %1200
      %1202 = vrot.lane.b32.xlu0 %v1015, 64
      %v1203 = vpop.permute.xlu0 %1202
      %1204 = vrot.lane.b32.xlu0 %v1018, 64
      %v1205 = vpop.permute.xlu0 %1204
      %1206 = vrot.lane.b32.xlu0 %v1020, 64
      %v1207 = vpop.permute.xlu0 %1206
      %1208 = vrot.lane.b32.xlu0 %v1023, 64
      %v1209 = vpop.permute.xlu0 %1208
      %1210 = vrot.lane.b32.xlu0 %v1025, 64
      %v1211 = vpop.permute.xlu0 %1210
      %1212 = vrot.lane.b32.xlu0 %v1028, 64
      %v1213 = vpop.permute.xlu0 %1212
      %1214 = vrot.lane.b32.xlu0 %v1030, 64
      %v1215 = vpop.permute.xlu0 %1214
      %1216 = vrot.lane.b32.xlu0 %v1033, 64
      %v1217 = vpop.permute.xlu0 %1216
      %1218 = vrot.lane.b32.xlu0 %v1035, 64
      %v1219 = vpop.permute.xlu0 %1218
      %1220 = vrot.lane.b32.xlu0 %v1038, 64
      %v1221 = vpop.permute.xlu0 %1220
      %1222 = vrot.lane.b32.xlu0 %v1040, 64
      %v1223 = vpop.permute.xlu0 %1222
      %1224 = vrot.lane.b32.xlu0 %v1043, 64
      %v1225 = vpop.permute.xlu0 %1224
      %1226 = vrot.lane.b32.xlu0 %v1045, 64
      %v1227 = vpop.permute.xlu0 %1226
      %1228 = vrot.lane.b32.xlu0 %v1048, 64
      %v1229 = vpop.permute.xlu0 %1228
      %1230 = vrot.lane.b32.xlu0 %v1050, 64
      %v1231 = vpop.permute.xlu0 %1230
      %1232 = vrot.lane.b32.xlu0 %v1053, 64
      %v1233 = vpop.permute.xlu0 %1232
      %1234 = vrot.lane.b32.xlu0 %v1055, 64
      %v1235 = vpop.permute.xlu0 %1234
      %1236 = vrot.lane.b32.xlu0 %v1058, 64
      %v1237 = vpop.permute.xlu0 %1236
      %1238 = vrot.lane.b32.xlu0 %v1060, 64
      %v1239 = vpop.permute.xlu0 %1238
      %1240 = vrot.lane.b32.xlu0 %v1063, 64
      %v1241 = vpop.permute.xlu0 %1240
      %1242 = vrot.lane.b32.xlu0 %v1065, 64
      %v1243 = vpop.permute.xlu0 %1242
      %1244 = vrot.lane.b32.xlu0 %v1068, 64
      %v1245 = vpop.permute.xlu0 %1244
      %1246 = vrot.lane.b32.xlu0 %v1070, 64
      %v1247 = vpop.permute.xlu0 %1246
      %1248 = vrot.lane.b32.xlu0 %v1073, 64
      %v1249 = vpop.permute.xlu0 %1248
      %1250 = vrot.lane.b32.xlu0 %v1075, 64
      %v1251 = vpop.permute.xlu0 %1250
      %1252 = vrot.lane.b32.xlu0 %v1078, 64
      %v1253 = vpop.permute.xlu0 %1252
      %1254 = vrot.lane.b32.xlu0 %v1080, 64
      %v1255 = vpop.permute.xlu0 %1254
      %1256 = vrot.lane.b32.xlu0 %v1083, 64
      %v1257 = vpop.permute.xlu0 %1256
      %1258 = vrot.lane.b32.xlu0 %v1085, 64
      %v1259 = vpop.permute.xlu0 %1258
      %1260 = vrot.lane.b32.xlu0 %v1088, 64
      %v1261 = vpop.permute.xlu0 %1260
      %1262 = vrot.lane.b32.xlu0 %v1090, 64
      %v1263 = vpop.permute.xlu0 %1262
      %1264 = vrot.lane.b32.xlu0 %v1093, 64
      %v1265 = vpop.permute.xlu0 %1264
      %1266 = vrot.lane.b32.xlu0 %v1095, 64
      %v1267 = vpop.permute.xlu0 %1266
      %1268 = vrot.lane.b32.xlu0 %v1098, 64
      %v1269 = vpop.permute.xlu0 %1268
      %1270 = vrot.lane.b32.xlu0 %v1100, 64
      %v1271 = vpop.permute.xlu0 %1270
      %1272 = vrot.lane.b32.xlu0 %v1103, 64
      %v1273 = vpop.permute.xlu0 %1272
      %1274 = vrot.lane.b32.xlu0 %v1105, 64
      %v1275 = vpop.permute.xlu0 %1274
      %1276 = vrot.lane.b32.xlu0 %v1108, 64
      %v1277 = vpop.permute.xlu0 %1276
      %1278 = vrot.lane.b32.xlu0 %v1110, 64
      %v1279 = vpop.permute.xlu0 %1278
      %1280 = vrot.lane.b32.xlu0 %v1113, 64
      %v1281 = vpop.permute.xlu0 %1280
      %1282 = vrot.lane.b32.xlu0 %v1115, 64
      %v1283 = vpop.permute.xlu0 %1282
      %1284 = vrot.lane.b32.xlu0 %v1118, 64
      %v1285 = vpop.permute.xlu0 %1284
      %1286 = vrot.lane.b32.xlu0 %v1120, 64
      %v1287 = vpop.permute.xlu0 %1286
      %1288 = vrot.lane.b32.xlu0 %v1123, 64
      %v1289 = vpop.permute.xlu0 %1288
      %1290 = vrot.lane.b32.xlu0 %v1125, 64
      %v1291 = vpop.permute.xlu0 %1290
      %1292 = vrot.lane.b32.xlu0 %v1128, 64
      %v1293 = vpop.permute.xlu0 %1292
      %1294 = vrot.lane.b32.xlu0 %v1130, 64
      %v1295 = vpop.permute.xlu0 %1294
      %1296 = vrot.lane.b32.xlu0 %v1133, 64
      %v1297 = vpop.permute.xlu0 %1296
      %1298 = vrot.lane.b32.xlu0 %v1135, 64
      %v1299 = vpop.permute.xlu0 %1298
      %1300 = vrot.lane.b32.xlu0 %v1138, 64
      %v1301 = vpop.permute.xlu0 %1300
      %1302 = vrot.lane.b32.xlu0 %v1140, 64
      %v1303 = vpop.permute.xlu0 %1302
      %1304 = vrot.lane.b32.xlu0 %v1143, 64
      %v1305 = vpop.permute.xlu0 %1304
      %1306 = vrot.lane.b32.xlu0 %v1145, 64
      %v1307 = vpop.permute.xlu0 %1306
      %1308 = vrot.lane.b32.xlu0 %v1148, 64
      %v1309 = vpop.permute.xlu0 %1308
      %1310 = vrot.lane.b32.xlu0 %v1150, 64
      %v1311 = vpop.permute.xlu0 %1310
      %1312 = vrot.lane.b32.xlu0 %v1153, 64
      %v1313 = vpop.permute.xlu0 %1312
      %1314 = vrot.lane.b32.xlu0 %v1155, 64
      %v1315 = vpop.permute.xlu0 %1314
      %vm1396 = vcmask 1044480
      %v1397 = vrot.slane %v274, 3
      %v1398 = vrot.slane %v275, 3
      %v1399 = vsel %vm1396, %v1397, %v1398
      %v1400 = vrot.slane %v276, 3
      %v1401 = vsel %vm1396, %v1398, %v1400
      %v1402 = vrot.slane %v277, 3
      %v1403 = vrot.slane %v278, 3
      %v1404 = vsel %vm1396, %v1402, %v1403
      %v1405 = vrot.slane %v279, 3
      %v1406 = vsel %vm1396, %v1403, %v1405
      %v1407 = vrot.slane %v280, 3
      %v1408 = vrot.slane %v281, 3
      %v1409 = vsel %vm1396, %v1407, %v1408
      %v1410 = vrot.slane %v282, 3
      %v1411 = vsel %vm1396, %v1408, %v1410
      %v1412 = vrot.slane %v283, 3
      %v1413 = vrot.slane %v284, 3
      %v1414 = vsel %vm1396, %v1412, %v1413
      %v1415 = vrot.slane %v285, 3
      %v1416 = vsel %vm1396, %v1413, %v1415
      %v1417 = vrot.slane %v286, 3
      %v1418 = vrot.slane %v287, 3
      %v1419 = vsel %vm1396, %v1417, %v1418
      %v1420 = vrot.slane %v288, 3
      %v1421 = vsel %vm1396, %v1418, %v1420
      %v1422 = vrot.slane %v289, 3
      %v1423 = vrot.slane %v290, 3
      %v1424 = vsel %vm1396, %v1422, %v1423
      %v1425 = vrot.slane %v291, 3
      %v1426 = vsel %vm1396, %v1423, %v1425
      %v1427 = vrot.slane %v292, 3
      %v1428 = vrot.slane %v293, 3
      %v1429 = vsel %vm1396, %v1427, %v1428
      %v1430 = vrot.slane %v294, 3
      %v1431 = vsel %vm1396, %v1428, %v1430
      %v1432 = vrot.slane %v295, 3
      %v1433 = vrot.slane %v296, 3
      %v1434 = vsel %vm1396, %v1432, %v1433
      %v1435 = vrot.slane %v297, 3
      %v1436 = vsel %vm1396, %v1433, %v1435
      %v1437 = vrot.slane %v298, 3
      %v1438 = vrot.slane %v299, 3
      %v1439 = vsel %vm1396, %v1437, %v1438
      %v1440 = vrot.slane %v300, 3
      %v1441 = vsel %vm1396, %v1438, %v1440
      %v1442 = vrot.slane %v301, 3
      %v1443 = vrot.slane %v302, 3
      %v1444 = vsel %vm1396, %v1442, %v1443
      %v1445 = vrot.slane %v303, 3
      %v1446 = vsel %vm1396, %v1443, %v1445
      %v1447 = vrot.slane %v304, 3
      %v1448 = vrot.slane %v305, 3
      %v1449 = vsel %vm1396, %v1447, %v1448
      %v1450 = vrot.slane %v306, 3
      %v1451 = vsel %vm1396, %v1448, %v1450
      %v1452 = vrot.slane %v307, 3
      %v1453 = vrot.slane %v308, 3
      %v1454 = vsel %vm1396, %v1452, %v1453
      %v1455 = vrot.slane %v309, 3
      %v1456 = vsel %vm1396, %v1453, %v1455
      %v1457 = vrot.slane %v310, 3
      %v1458 = vrot.slane %v311, 3
      %v1459 = vsel %vm1396, %v1457, %v1458
      %v1460 = vrot.slane %v312, 3
      %v1461 = vsel %vm1396, %v1458, %v1460
      %v1462 = vrot.slane %v313, 3
      %v1463 = vrot.slane %v314, 3
      %v1464 = vsel %vm1396, %v1462, %v1463
      %v1465 = vrot.slane %v315, 3
      %v1466 = vsel %vm1396, %v1463, %v1465
      %v1467 = vrot.slane %v316, 3
      %v1468 = vrot.slane %v317, 3
      %v1469 = vsel %vm1396, %v1467, %v1468
      %v1470 = vrot.slane %v318, 3
      %v1471 = vsel %vm1396, %v1468, %v1470
      %v1472 = vrot.slane %v319, 3
      %v1473 = vrot.slane %v320, 3
      %v1474 = vsel %vm1396, %v1472, %v1473
      %v1475 = vrot.slane %v321, 3
      %v1476 = vsel %vm1396, %v1473, %v1475
      %v1477 = vrot.slane %v322, 3
      %v1478 = vrot.slane %v323, 3
      %v1479 = vsel %vm1396, %v1477, %v1478
      %v1480 = vrot.slane %v324, 3
      %v1481 = vsel %vm1396, %v1478, %v1480
      %v1482 = vrot.slane %v325, 3
      %v1483 = vrot.slane %v326, 3
      %v1484 = vsel %vm1396, %v1482, %v1483
      %v1485 = vrot.slane %v327, 3
      %v1486 = vsel %vm1396, %v1483, %v1485
      %v1487 = vrot.slane %v328, 3
      %v1488 = vrot.slane %v329, 3
      %v1489 = vsel %vm1396, %v1487, %v1488
      %v1490 = vrot.slane %v330, 3
      %v1491 = vsel %vm1396, %v1488, %v1490
      %v1492 = vrot.slane %v331, 3
      %v1493 = vrot.slane %v332, 3
      %v1494 = vsel %vm1396, %v1492, %v1493
      %v1495 = vrot.slane %v333, 3
      %v1496 = vsel %vm1396, %v1493, %v1495
      %v1497 = vrot.slane %v334, 3
      %v1498 = vrot.slane %v335, 3
      %v1499 = vsel %vm1396, %v1497, %v1498
      %v1500 = vrot.slane %v336, 3
      %v1501 = vsel %vm1396, %v1498, %v1500
      %v1502 = vrot.slane %v337, 3
      %v1503 = vrot.slane %v338, 3
      %v1504 = vsel %vm1396, %v1502, %v1503
      %v1505 = vrot.slane %v339, 3
      %v1506 = vsel %vm1396, %v1503, %v1505
      %v1507 = vrot.slane %v340, 3
      %v1508 = vrot.slane %v341, 3
      %v1509 = vsel %vm1396, %v1507, %v1508
      %v1510 = vrot.slane %v342, 3
      %v1511 = vsel %vm1396, %v1508, %v1510
      %v1512 = vrot.slane %v343, 3
      %v1513 = vrot.slane %v344, 3
      %v1514 = vsel %vm1396, %v1512, %v1513
      %v1515 = vrot.slane %v345, 3
      %v1516 = vsel %vm1396, %v1513, %v1515
      %v1517 = vrot.slane %v346, 3
      %v1518 = vrot.slane %v347, 3
      %v1519 = vsel %vm1396, %v1517, %v1518
      %v1520 = vrot.slane %v348, 3
      %v1521 = vsel %vm1396, %v1518, %v1520
      %v1522 = vrot.slane %v349, 3
      %v1523 = vrot.slane %v350, 3
      %v1524 = vsel %vm1396, %v1522, %v1523
      %v1525 = vrot.slane %v351, 3
      %v1526 = vsel %vm1396, %v1523, %v1525
      %v1527 = vrot.slane %v352, 3
      %v1528 = vrot.slane %v353, 3
      %v1529 = vsel %vm1396, %v1527, %v1528
      %v1530 = vrot.slane %v354, 3
      %v1531 = vsel %vm1396, %v1528, %v1530
      %v1532 = vrot.slane %v355, 3
      %v1533 = vrot.slane %v356, 3
      %v1534 = vsel %vm1396, %v1532, %v1533
      %v1535 = vrot.slane %v357, 3
      %v1536 = vsel %vm1396, %v1533, %v1535
      %v1537 = vrot.slane %v358, 3
      %v1538 = vrot.slane %v359, 3
      %v1539 = vsel %vm1396, %v1537, %v1538
      %v1540 = vrot.slane %v360, 3
      %v1541 = vsel %vm1396, %v1538, %v1540
      %v1542 = vrot.slane %v361, 3
      %v1543 = vrot.slane %v362, 3
      %v1544 = vsel %vm1396, %v1542, %v1543
      %v1545 = vrot.slane %v363, 3
      %v1546 = vsel %vm1396, %v1543, %v1545
      %v1547 = vrot.slane %v364, 3
      %v1548 = vrot.slane %v365, 3
      %v1549 = vsel %vm1396, %v1547, %v1548
      %v1550 = vrot.slane %v366, 3
      %v1551 = vsel %vm1396, %v1548, %v1550
      %v1552 = vrot.slane %v367, 3
      %v1553 = vrot.slane %v368, 3
      %v1554 = vsel %vm1396, %v1552, %v1553
      %v1555 = vrot.slane %v369, 3
      %v1556 = vsel %vm1396, %v1553, %v1555
      %v1557 = vrot.slane %v370, 3
      %v1558 = vrot.slane %v371, 3
      %v1559 = vsel %vm1396, %v1557, %v1558
      %v1560 = vrot.slane %v372, 3
      %v1561 = vsel %vm1396, %v1558, %v1560
      %v1562 = vrot.slane %v373, 3
      %v1563 = vrot.slane %v374, 3
      %v1564 = vsel %vm1396, %v1562, %v1563
      %v1565 = vrot.slane %v375, 3
      %v1566 = vsel %vm1396, %v1563, %v1565
      %v1567 = vrot.slane %v376, 3
      %v1568 = vrot.slane %v377, 3
      %v1569 = vsel %vm1396, %v1567, %v1568
      %v1570 = vrot.slane %v378, 3
      %v1571 = vsel %vm1396, %v1568, %v1570
      %v1572 = vrot.slane %v379, 3
      %v1573 = vrot.slane %v380, 3
      %v1574 = vsel %vm1396, %v1572, %v1573
      %v1575 = vrot.slane %v381, 3
      %v1576 = vsel %vm1396, %v1573, %v1575
      %v1577 = vrot.slane %v382, 3
      %v1578 = vrot.slane %v383, 3
      %v1579 = vsel %vm1396, %v1577, %v1578
      %v1580 = vrot.slane %v384, 3
      %v1581 = vsel %vm1396, %v1578, %v1580
      %v1582 = vrot.slane %v385, 3
      %v1583 = vrot.slane %v386, 3
      %v1584 = vsel %vm1396, %v1582, %v1583
      %v1585 = vrot.slane %v387, 3
      %v1586 = vsel %vm1396, %v1583, %v1585
      %v1587 = vrot.slane %v388, 3
      %v1588 = vrot.slane %v389, 3
      %v1589 = vsel %vm1396, %v1587, %v1588
      %v1590 = vrot.slane %v390, 3
      %v1591 = vsel %vm1396, %v1588, %v1590
      %v1592 = vrot.slane %v391, 3
      %v1593 = vrot.slane %v392, 3
      %v1594 = vsel %vm1396, %v1592, %v1593
      %v1595 = vrot.slane %v393, 3
      %v1596 = vsel %vm1396, %v1593, %v1595
      %1597 = vrot.lane.b32.xlu0 %v1399, 96
      %v1598 = vpop.permute.xlu0 %1597
      %1599 = vrot.lane.b32.xlu0 %v1401, 96
      %v1600 = vpop.permute.xlu0 %1599
      %1601 = vrot.lane.b32.xlu0 %v1404, 96
      %v1602 = vpop.permute.xlu0 %1601
      %1603 = vrot.lane.b32.xlu0 %v1406, 96
      %v1604 = vpop.permute.xlu0 %1603
      %1605 = vrot.lane.b32.xlu0 %v1409, 96
      %v1606 = vpop.permute.xlu0 %1605
      %1607 = vrot.lane.b32.xlu0 %v1411, 96
      %v1608 = vpop.permute.xlu0 %1607
      %1609 = vrot.lane.b32.xlu0 %v1414, 96
      %v1610 = vpop.permute.xlu0 %1609
      %1611 = vrot.lane.b32.xlu0 %v1416, 96
      %v1612 = vpop.permute.xlu0 %1611
      %1613 = vrot.lane.b32.xlu0 %v1419, 96
      %v1614 = vpop.permute.xlu0 %1613
      %1615 = vrot.lane.b32.xlu0 %v1421, 96
      %v1616 = vpop.permute.xlu0 %1615
      %1617 = vrot.lane.b32.xlu0 %v1424, 96
      %v1618 = vpop.permute.xlu0 %1617
      %1619 = vrot.lane.b32.xlu0 %v1426, 96
      %v1620 = vpop.permute.xlu0 %1619
      %1621 = vrot.lane.b32.xlu0 %v1429, 96
      %v1622 = vpop.permute.xlu0 %1621
      %1623 = vrot.lane.b32.xlu0 %v1431, 96
      %v1624 = vpop.permute.xlu0 %1623
      %1625 = vrot.lane.b32.xlu0 %v1434, 96
      %v1626 = vpop.permute.xlu0 %1625
      %1627 = vrot.lane.b32.xlu0 %v1436, 96
      %v1628 = vpop.permute.xlu0 %1627
      %1629 = vrot.lane.b32.xlu0 %v1439, 96
      %v1630 = vpop.permute.xlu0 %1629
      %1631 = vrot.lane.b32.xlu0 %v1441, 96
      %v1632 = vpop.permute.xlu0 %1631
      %1633 = vrot.lane.b32.xlu0 %v1444, 96
      %v1634 = vpop.permute.xlu0 %1633
      %1635 = vrot.lane.b32.xlu0 %v1446, 96
      %v1636 = vpop.permute.xlu0 %1635
      %1637 = vrot.lane.b32.xlu0 %v1449, 96
      %v1638 = vpop.permute.xlu0 %1637
      %1639 = vrot.lane.b32.xlu0 %v1451, 96
      %v1640 = vpop.permute.xlu0 %1639
      %1641 = vrot.lane.b32.xlu0 %v1454, 96
      %v1642 = vpop.permute.xlu0 %1641
      %1643 = vrot.lane.b32.xlu0 %v1456, 96
      %v1644 = vpop.permute.xlu0 %1643
      %1645 = vrot.lane.b32.xlu0 %v1459, 96
      %v1646 = vpop.permute.xlu0 %1645
      %1647 = vrot.lane.b32.xlu0 %v1461, 96
      %v1648 = vpop.permute.xlu0 %1647
      %1649 = vrot.lane.b32.xlu0 %v1464, 96
      %v1650 = vpop.permute.xlu0 %1649
      %1651 = vrot.lane.b32.xlu0 %v1466, 96
      %v1652 = vpop.permute.xlu0 %1651
      %1653 = vrot.lane.b32.xlu0 %v1469, 96
      %v1654 = vpop.permute.xlu0 %1653
      %1655 = vrot.lane.b32.xlu0 %v1471, 96
      %v1656 = vpop.permute.xlu0 %1655
      %1657 = vrot.lane.b32.xlu0 %v1474, 96
      %v1658 = vpop.permute.xlu0 %1657
      %1659 = vrot.lane.b32.xlu0 %v1476, 96
      %v1660 = vpop.permute.xlu0 %1659
      %1661 = vrot.lane.b32.xlu0 %v1479, 96
      %v1662 = vpop.permute.xlu0 %1661
      %1663 = vrot.lane.b32.xlu0 %v1481, 96
      %v1664 = vpop.permute.xlu0 %1663
      %1665 = vrot.lane.b32.xlu0 %v1484, 96
      %v1666 = vpop.permute.xlu0 %1665
      %1667 = vrot.lane.b32.xlu0 %v1486, 96
      %v1668 = vpop.permute.xlu0 %1667
      %1669 = vrot.lane.b32.xlu0 %v1489, 96
      %v1670 = vpop.permute.xlu0 %1669
      %1671 = vrot.lane.b32.xlu0 %v1491, 96
      %v1672 = vpop.permute.xlu0 %1671
      %1673 = vrot.lane.b32.xlu0 %v1494, 96
      %v1674 = vpop.permute.xlu0 %1673
      %1675 = vrot.lane.b32.xlu0 %v1496, 96
      %v1676 = vpop.permute.xlu0 %1675
      %1677 = vrot.lane.b32.xlu0 %v1499, 96
      %v1678 = vpop.permute.xlu0 %1677
      %1679 = vrot.lane.b32.xlu0 %v1501, 96
      %v1680 = vpop.permute.xlu0 %1679
      %1681 = vrot.lane.b32.xlu0 %v1504, 96
      %v1682 = vpop.permute.xlu0 %1681
      %1683 = vrot.lane.b32.xlu0 %v1506, 96
      %v1684 = vpop.permute.xlu0 %1683
      %1685 = vrot.lane.b32.xlu0 %v1509, 96
      %v1686 = vpop.permute.xlu0 %1685
      %1687 = vrot.lane.b32.xlu0 %v1511, 96
      %v1688 = vpop.permute.xlu0 %1687
      %1689 = vrot.lane.b32.xlu0 %v1514, 96
      %v1690 = vpop.permute.xlu0 %1689
      %1691 = vrot.lane.b32.xlu0 %v1516, 96
      %v1692 = vpop.permute.xlu0 %1691
      %1693 = vrot.lane.b32.xlu0 %v1519, 96
      %v1694 = vpop.permute.xlu0 %1693
      %1695 = vrot.lane.b32.xlu0 %v1521, 96
      %v1696 = vpop.permute.xlu0 %1695
      %1697 = vrot.lane.b32.xlu0 %v1524, 96
      %v1698 = vpop.permute.xlu0 %1697
      %1699 = vrot.lane.b32.xlu0 %v1526, 96
      %v1700 = vpop.permute.xlu0 %1699
      %1701 = vrot.lane.b32.xlu0 %v1529, 96
      %v1702 = vpop.permute.xlu0 %1701
      %1703 = vrot.lane.b32.xlu0 %v1531, 96
      %v1704 = vpop.permute.xlu0 %1703
      %1705 = vrot.lane.b32.xlu0 %v1534, 96
      %v1706 = vpop.permute.xlu0 %1705
      %1707 = vrot.lane.b32.xlu0 %v1536, 96
      %v1708 = vpop.permute.xlu0 %1707
      %1709 = vrot.lane.b32.xlu0 %v1539, 96
      %v1710 = vpop.permute.xlu0 %1709
      %1711 = vrot.lane.b32.xlu0 %v1541, 96
      %v1712 = vpop.permute.xlu0 %1711
      %1713 = vrot.lane.b32.xlu0 %v1544, 96
      %v1714 = vpop.permute.xlu0 %1713
      %1715 = vrot.lane.b32.xlu0 %v1546, 96
      %v1716 = vpop.permute.xlu0 %1715
      %1717 = vrot.lane.b32.xlu0 %v1549, 96
      %v1718 = vpop.permute.xlu0 %1717
      %1719 = vrot.lane.b32.xlu0 %v1551, 96
      %v1720 = vpop.permute.xlu0 %1719
      %1721 = vrot.lane.b32.xlu0 %v1554, 96
      %v1722 = vpop.permute.xlu0 %1721
      %1723 = vrot.lane.b32.xlu0 %v1556, 96
      %v1724 = vpop.permute.xlu0 %1723
      %1725 = vrot.lane.b32.xlu0 %v1559, 96
      %v1726 = vpop.permute.xlu0 %1725
      %1727 = vrot.lane.b32.xlu0 %v1561, 96
      %v1728 = vpop.permute.xlu0 %1727
      %1729 = vrot.lane.b32.xlu0 %v1564, 96
      %v1730 = vpop.permute.xlu0 %1729
      %1731 = vrot.lane.b32.xlu0 %v1566, 96
      %v1732 = vpop.permute.xlu0 %1731
      %1733 = vrot.lane.b32.xlu0 %v1569, 96
      %v1734 = vpop.permute.xlu0 %1733
      %1735 = vrot.lane.b32.xlu0 %v1571, 96
      %v1736 = vpop.permute.xlu0 %1735
      %1737 = vrot.lane.b32.xlu0 %v1574, 96
      %v1738 = vpop.permute.xlu0 %1737
      %1739 = vrot.lane.b32.xlu0 %v1576, 96
      %v1740 = vpop.permute.xlu0 %1739
      %1741 = vrot.lane.b32.xlu0 %v1579, 96
      %v1742 = vpop.permute.xlu0 %1741
      %1743 = vrot.lane.b32.xlu0 %v1581, 96
      %v1744 = vpop.permute.xlu0 %1743
      %1745 = vrot.lane.b32.xlu0 %v1584, 96
      %v1746 = vpop.permute.xlu0 %1745
      %1747 = vrot.lane.b32.xlu0 %v1586, 96
      %v1748 = vpop.permute.xlu0 %1747
      %1749 = vrot.lane.b32.xlu0 %v1589, 96
      %v1750 = vpop.permute.xlu0 %1749
      %1751 = vrot.lane.b32.xlu0 %v1591, 96
      %v1752 = vpop.permute.xlu0 %1751
      %1753 = vrot.lane.b32.xlu0 %v1594, 96
      %v1754 = vpop.permute.xlu0 %1753
      %1755 = vrot.lane.b32.xlu0 %v1596, 96
      %v1756 = vpop.permute.xlu0 %1755
      %vm1837 = vcmask 1043456
      %v1838 = vrot.slane %v274, 4
      %v1839 = vrot.slane %v275, 4
      %v1840 = vsel %vm1837, %v1838, %v1839
      %v1841 = vrot.slane %v276, 4
      %v1842 = vsel %vm1837, %v1839, %v1841
      %v1843 = vrot.slane %v277, 4
      %v1844 = vrot.slane %v278, 4
      %v1845 = vsel %vm1837, %v1843, %v1844
      %v1846 = vrot.slane %v279, 4
      %v1847 = vsel %vm1837, %v1844, %v1846
      %v1848 = vrot.slane %v280, 4
      %v1849 = vrot.slane %v281, 4
      %v1850 = vsel %vm1837, %v1848, %v1849
      %v1851 = vrot.slane %v282, 4
      %v1852 = vsel %vm1837, %v1849, %v1851
      %v1853 = vrot.slane %v283, 4
      %v1854 = vrot.slane %v284, 4
      %v1855 = vsel %vm1837, %v1853, %v1854
      %v1856 = vrot.slane %v285, 4
      %v1857 = vsel %vm1837, %v1854, %v1856
      %v1858 = vrot.slane %v286, 4
      %v1859 = vrot.slane %v287, 4
      %v1860 = vsel %vm1837, %v1858, %v1859
      %v1861 = vrot.slane %v288, 4
      %v1862 = vsel %vm1837, %v1859, %v1861
      %v1863 = vrot.slane %v289, 4
      %v1864 = vrot.slane %v290, 4
      %v1865 = vsel %vm1837, %v1863, %v1864
      %v1866 = vrot.slane %v291, 4
      %v1867 = vsel %vm1837, %v1864, %v1866
      %v1868 = vrot.slane %v292, 4
      %v1869 = vrot.slane %v293, 4
      %v1870 = vsel %vm1837, %v1868, %v1869
      %v1871 = vrot.slane %v294, 4
      %v1872 = vsel %vm1837, %v1869, %v1871
      %v1873 = vrot.slane %v295, 4
      %v1874 = vrot.slane %v296, 4
      %v1875 = vsel %vm1837, %v1873, %v1874
      %v1876 = vrot.slane %v297, 4
      %v1877 = vsel %vm1837, %v1874, %v1876
      %v1878 = vrot.slane %v298, 4
      %v1879 = vrot.slane %v299, 4
      %v1880 = vsel %vm1837, %v1878, %v1879
      %v1881 = vrot.slane %v300, 4
      %v1882 = vsel %vm1837, %v1879, %v1881
      %v1883 = vrot.slane %v301, 4
      %v1884 = vrot.slane %v302, 4
      %v1885 = vsel %vm1837, %v1883, %v1884
      %v1886 = vrot.slane %v303, 4
      %v1887 = vsel %vm1837, %v1884, %v1886
      %v1888 = vrot.slane %v304, 4
      %v1889 = vrot.slane %v305, 4
      %v1890 = vsel %vm1837, %v1888, %v1889
      %v1891 = vrot.slane %v306, 4
      %v1892 = vsel %vm1837, %v1889, %v1891
      %v1893 = vrot.slane %v307, 4
      %v1894 = vrot.slane %v308, 4
      %v1895 = vsel %vm1837, %v1893, %v1894
      %v1896 = vrot.slane %v309, 4
      %v1897 = vsel %vm1837, %v1894, %v1896
      %v1898 = vrot.slane %v310, 4
      %v1899 = vrot.slane %v311, 4
      %v1900 = vsel %vm1837, %v1898, %v1899
      %v1901 = vrot.slane %v312, 4
      %v1902 = vsel %vm1837, %v1899, %v1901
      %v1903 = vrot.slane %v313, 4
      %v1904 = vrot.slane %v314, 4
      %v1905 = vsel %vm1837, %v1903, %v1904
      %v1906 = vrot.slane %v315, 4
      %v1907 = vsel %vm1837, %v1904, %v1906
      %v1908 = vrot.slane %v316, 4
      %v1909 = vrot.slane %v317, 4
      %v1910 = vsel %vm1837, %v1908, %v1909
      %v1911 = vrot.slane %v318, 4
      %v1912 = vsel %vm1837, %v1909, %v1911
      %v1913 = vrot.slane %v319, 4
      %v1914 = vrot.slane %v320, 4
      %v1915 = vsel %vm1837, %v1913, %v1914
      %v1916 = vrot.slane %v321, 4
      %v1917 = vsel %vm1837, %v1914, %v1916
      %v1918 = vrot.slane %v322, 4
      %v1919 = vrot.slane %v323, 4
      %v1920 = vsel %vm1837, %v1918, %v1919
      %v1921 = vrot.slane %v324, 4
      %v1922 = vsel %vm1837, %v1919, %v1921
      %v1923 = vrot.slane %v325, 4
      %v1924 = vrot.slane %v326, 4
      %v1925 = vsel %vm1837, %v1923, %v1924
      %v1926 = vrot.slane %v327, 4
      %v1927 = vsel %vm1837, %v1924, %v1926
      %v1928 = vrot.slane %v328, 4
      %v1929 = vrot.slane %v329, 4
      %v1930 = vsel %vm1837, %v1928, %v1929
      %v1931 = vrot.slane %v330, 4
      %v1932 = vsel %vm1837, %v1929, %v1931
      %v1933 = vrot.slane %v331, 4
      %v1934 = vrot.slane %v332, 4
      %v1935 = vsel %vm1837, %v1933, %v1934
      %v1936 = vrot.slane %v333, 4
      %v1937 = vsel %vm1837, %v1934, %v1936
      %v1938 = vrot.slane %v334, 4
      %v1939 = vrot.slane %v335, 4
      %v1940 = vsel %vm1837, %v1938, %v1939
      %v1941 = vrot.slane %v336, 4
      %v1942 = vsel %vm1837, %v1939, %v1941
      %v1943 = vrot.slane %v337, 4
      %v1944 = vrot.slane %v338, 4
      %v1945 = vsel %vm1837, %v1943, %v1944
      %v1946 = vrot.slane %v339, 4
      %v1947 = vsel %vm1837, %v1944, %v1946
      %v1948 = vrot.slane %v340, 4
      %v1949 = vrot.slane %v341, 4
      %v1950 = vsel %vm1837, %v1948, %v1949
      %v1951 = vrot.slane %v342, 4
      %v1952 = vsel %vm1837, %v1949, %v1951
      %v1953 = vrot.slane %v343, 4
      %v1954 = vrot.slane %v344, 4
      %v1955 = vsel %vm1837, %v1953, %v1954
      %v1956 = vrot.slane %v345, 4
      %v1957 = vsel %vm1837, %v1954, %v1956
      %v1958 = vrot.slane %v346, 4
      %v1959 = vrot.slane %v347, 4
      %v1960 = vsel %vm1837, %v1958, %v1959
      %v1961 = vrot.slane %v348, 4
      %v1962 = vsel %vm1837, %v1959, %v1961
      %v1963 = vrot.slane %v349, 4
      %v1964 = vrot.slane %v350, 4
      %v1965 = vsel %vm1837, %v1963, %v1964
      %v1966 = vrot.slane %v351, 4
      %v1967 = vsel %vm1837, %v1964, %v1966
      %v1968 = vrot.slane %v352, 4
      %v1969 = vrot.slane %v353, 4
      %v1970 = vsel %vm1837, %v1968, %v1969
      %v1971 = vrot.slane %v354, 4
      %v1972 = vsel %vm1837, %v1969, %v1971
      %v1973 = vrot.slane %v355, 4
      %v1974 = vrot.slane %v356, 4
      %v1975 = vsel %vm1837, %v1973, %v1974
      %v1976 = vrot.slane %v357, 4
      %v1977 = vsel %vm1837, %v1974, %v1976
      %v1978 = vrot.slane %v358, 4
      %v1979 = vrot.slane %v359, 4
      %v1980 = vsel %vm1837, %v1978, %v1979
      %v1981 = vrot.slane %v360, 4
      %v1982 = vsel %vm1837, %v1979, %v1981
      %v1983 = vrot.slane %v361, 4
      %v1984 = vrot.slane %v362, 4
      %v1985 = vsel %vm1837, %v1983, %v1984
      %v1986 = vrot.slane %v363, 4
      %v1987 = vsel %vm1837, %v1984, %v1986
      %v1988 = vrot.slane %v364, 4
      %v1989 = vrot.slane %v365, 4
      %v1990 = vsel %vm1837, %v1988, %v1989
      %v1991 = vrot.slane %v366, 4
      %v1992 = vsel %vm1837, %v1989, %v1991
      %v1993 = vrot.slane %v367, 4
      %v1994 = vrot.slane %v368, 4
      %v1995 = vsel %vm1837, %v1993, %v1994
      %v1996 = vrot.slane %v369, 4
      %v1997 = vsel %vm1837, %v1994, %v1996
      %v1998 = vrot.slane %v370, 4
      %v1999 = vrot.slane %v371, 4
      %v2000 = vsel %vm1837, %v1998, %v1999
      %v2001 = vrot.slane %v372, 4
      %v2002 = vsel %vm1837, %v1999, %v2001
      %v2003 = vrot.slane %v373, 4
      %v2004 = vrot.slane %v374, 4
      %v2005 = vsel %vm1837, %v2003, %v2004
      %v2006 = vrot.slane %v375, 4
      %v2007 = vsel %vm1837, %v2004, %v2006
      %v2008 = vrot.slane %v376, 4
      %v2009 = vrot.slane %v377, 4
      %v2010 = vsel %vm1837, %v2008, %v2009
      %v2011 = vrot.slane %v378, 4
      %v2012 = vsel %vm1837, %v2009, %v2011
      %v2013 = vrot.slane %v379, 4
      %v2014 = vrot.slane %v380, 4
      %v2015 = vsel %vm1837, %v2013, %v2014
      %v2016 = vrot.slane %v381, 4
      %v2017 = vsel %vm1837, %v2014, %v2016
      %v2018 = vrot.slane %v382, 4
      %v2019 = vrot.slane %v383, 4
      %v2020 = vsel %vm1837, %v2018, %v2019
      %v2021 = vrot.slane %v384, 4
      %v2022 = vsel %vm1837, %v2019, %v2021
      %v2023 = vrot.slane %v385, 4
      %v2024 = vrot.slane %v386, 4
      %v2025 = vsel %vm1837, %v2023, %v2024
      %v2026 = vrot.slane %v387, 4
      %v2027 = vsel %vm1837, %v2024, %v2026
      %v2028 = vrot.slane %v388, 4
      %v2029 = vrot.slane %v389, 4
      %v2030 = vsel %vm1837, %v2028, %v2029
      %v2031 = vrot.slane %v390, 4
      %v2032 = vsel %vm1837, %v2029, %v2031
      %v2033 = vrot.slane %v391, 4
      %v2034 = vrot.slane %v392, 4
      %v2035 = vsel %vm1837, %v2033, %v2034
      %v2036 = vrot.slane %v393, 4
      %v2037 = vsel %vm1837, %v2034, %v2036
      %vm2038 = vcmask 261120
      %v2039 = vsel %vm2038, %v274, %v716
      %v2040 = vsel %vm2038, %v275, %v718
      %v2041 = vsel %vm2038, %v277, %v720
      %v2042 = vsel %vm2038, %v278, %v722
      %v2043 = vsel %vm2038, %v280, %v724
      %v2044 = vsel %vm2038, %v281, %v726
      %v2045 = vsel %vm2038, %v283, %v728
      %v2046 = vsel %vm2038, %v284, %v730
      %v2047 = vsel %vm2038, %v286, %v732
      %v2048 = vsel %vm2038, %v287, %v734
      %v2049 = vsel %vm2038, %v289, %v736
      %v2050 = vsel %vm2038, %v290, %v738
      %v2051 = vsel %vm2038, %v292, %v740
      %v2052 = vsel %vm2038, %v293, %v742
      %v2053 = vsel %vm2038, %v295, %v744
      %v2054 = vsel %vm2038, %v296, %v746
      %v2055 = vsel %vm2038, %v298, %v748
      %v2056 = vsel %vm2038, %v299, %v750
      %v2057 = vsel %vm2038, %v301, %v752
      %v2058 = vsel %vm2038, %v302, %v754
      %v2059 = vsel %vm2038, %v304, %v756
      %v2060 = vsel %vm2038, %v305, %v758
      %v2061 = vsel %vm2038, %v307, %v760
      %v2062 = vsel %vm2038, %v308, %v762
      %v2063 = vsel %vm2038, %v310, %v764
      %v2064 = vsel %vm2038, %v311, %v766
      %v2065 = vsel %vm2038, %v313, %v768
      %v2066 = vsel %vm2038, %v314, %v770
      %v2067 = vsel %vm2038, %v316, %v772
      %v2068 = vsel %vm2038, %v317, %v774
      %v2069 = vsel %vm2038, %v319, %v776
      %v2070 = vsel %vm2038, %v320, %v778
      %v2071 = vsel %vm2038, %v322, %v780
      %v2072 = vsel %vm2038, %v323, %v782
      %v2073 = vsel %vm2038, %v325, %v784
      %v2074 = vsel %vm2038, %v326, %v786
      %v2075 = vsel %vm2038, %v328, %v788
      %v2076 = vsel %vm2038, %v329, %v790
      %v2077 = vsel %vm2038, %v331, %v792
      %v2078 = vsel %vm2038, %v332, %v794
      %v2079 = vsel %vm2038, %v334, %v796
      %v2080 = vsel %vm2038, %v335, %v798
      %v2081 = vsel %vm2038, %v337, %v800
      %v2082 = vsel %vm2038, %v338, %v802
      %v2083 = vsel %vm2038, %v340, %v804
      %v2084 = vsel %vm2038, %v341, %v806
      %v2085 = vsel %vm2038, %v343, %v808
      %v2086 = vsel %vm2038, %v344, %v810
      %v2087 = vsel %vm2038, %v346, %v812
      %v2088 = vsel %vm2038, %v347, %v814
      %v2089 = vsel %vm2038, %v349, %v816
      %v2090 = vsel %vm2038, %v350, %v818
      %v2091 = vsel %vm2038, %v352, %v820
      %v2092 = vsel %vm2038, %v353, %v822
      %v2093 = vsel %vm2038, %v355, %v824
      %v2094 = vsel %vm2038, %v356, %v826
      %v2095 = vsel %vm2038, %v358, %v828
      %v2096 = vsel %vm2038, %v359, %v830
      %v2097 = vsel %vm2038, %v361, %v832
      %v2098 = vsel %vm2038, %v362, %v834
      %v2099 = vsel %vm2038, %v364, %v836
      %v2100 = vsel %vm2038, %v365, %v838
      %v2101 = vsel %vm2038, %v367, %v840
      %v2102 = vsel %vm2038, %v368, %v842
      %v2103 = vsel %vm2038, %v370, %v844
      %v2104 = vsel %vm2038, %v371, %v846
      %v2105 = vsel %vm2038, %v373, %v848
      %v2106 = vsel %vm2038, %v374, %v850
      %v2107 = vsel %vm2038, %v376, %v852
      %v2108 = vsel %vm2038, %v377, %v854
      %v2109 = vsel %vm2038, %v379, %v856
      %v2110 = vsel %vm2038, %v380, %v858
      %v2111 = vsel %vm2038, %v382, %v860
      %v2112 = vsel %vm2038, %v383, %v862
      %v2113 = vsel %vm2038, %v385, %v864
      %v2114 = vsel %vm2038, %v386, %v866
      %v2115 = vsel %vm2038, %v388, %v868
      %v2116 = vsel %vm2038, %v389, %v870
      %v2117 = vsel %vm2038, %v391, %v872
      %v2118 = vsel %vm2038, %v392, %v874
      %vm2119 = vcmask 523264
      %v2120 = vsel %vm2119, %v2039, %v1157
      %v2121 = vsel %vm2119, %v2040, %v1159
      %v2122 = vsel %vm2119, %v2041, %v1161
      %v2123 = vsel %vm2119, %v2042, %v1163
      %v2124 = vsel %vm2119, %v2043, %v1165
      %v2125 = vsel %vm2119, %v2044, %v1167
      %v2126 = vsel %vm2119, %v2045, %v1169
      %v2127 = vsel %vm2119, %v2046, %v1171
      %v2128 = vsel %vm2119, %v2047, %v1173
      %v2129 = vsel %vm2119, %v2048, %v1175
      %v2130 = vsel %vm2119, %v2049, %v1177
      %v2131 = vsel %vm2119, %v2050, %v1179
      %v2132 = vsel %vm2119, %v2051, %v1181
      %v2133 = vsel %vm2119, %v2052, %v1183
      %v2134 = vsel %vm2119, %v2053, %v1185
      %v2135 = vsel %vm2119, %v2054, %v1187
      %v2136 = vsel %vm2119, %v2055, %v1189
      %v2137 = vsel %vm2119, %v2056, %v1191
      %v2138 = vsel %vm2119, %v2057, %v1193
      %v2139 = vsel %vm2119, %v2058, %v1195
      %v2140 = vsel %vm2119, %v2059, %v1197
      %v2141 = vsel %vm2119, %v2060, %v1199
      %v2142 = vsel %vm2119, %v2061, %v1201
      %v2143 = vsel %vm2119, %v2062, %v1203
      %v2144 = vsel %vm2119, %v2063, %v1205
      %v2145 = vsel %vm2119, %v2064, %v1207
      %v2146 = vsel %vm2119, %v2065, %v1209
      %v2147 = vsel %vm2119, %v2066, %v1211
      %v2148 = vsel %vm2119, %v2067, %v1213
      %v2149 = vsel %vm2119, %v2068, %v1215
      %v2150 = vsel %vm2119, %v2069, %v1217
      %v2151 = vsel %vm2119, %v2070, %v1219
      %v2152 = vsel %vm2119, %v2071, %v1221
      %v2153 = vsel %vm2119, %v2072, %v1223
      %v2154 = vsel %vm2119, %v2073, %v1225
      %v2155 = vsel %vm2119, %v2074, %v1227
      %v2156 = vsel %vm2119, %v2075, %v1229
      %v2157 = vsel %vm2119, %v2076, %v1231
      %v2158 = vsel %vm2119, %v2077, %v1233
      %v2159 = vsel %vm2119, %v2078, %v1235
      %v2160 = vsel %vm2119, %v2079, %v1237
      %v2161 = vsel %vm2119, %v2080, %v1239
      %v2162 = vsel %vm2119, %v2081, %v1241
      %v2163 = vsel %vm2119, %v2082, %v1243
      %v2164 = vsel %vm2119, %v2083, %v1245
      %v2165 = vsel %vm2119, %v2084, %v1247
      %v2166 = vsel %vm2119, %v2085, %v1249
      %v2167 = vsel %vm2119, %v2086, %v1251
      %v2168 = vsel %vm2119, %v2087, %v1253
      %v2169 = vsel %vm2119, %v2088, %v1255
      %v2170 = vsel %vm2119, %v2089, %v1257
      %v2171 = vsel %vm2119, %v2090, %v1259
      %v2172 = vsel %vm2119, %v2091, %v1261
      %v2173 = vsel %vm2119, %v2092, %v1263
      %v2174 = vsel %vm2119, %v2093, %v1265
      %v2175 = vsel %vm2119, %v2094, %v1267
      %v2176 = vsel %vm2119, %v2095, %v1269
      %v2177 = vsel %vm2119, %v2096, %v1271
      %v2178 = vsel %vm2119, %v2097, %v1273
      %v2179 = vsel %vm2119, %v2098, %v1275
      %v2180 = vsel %vm2119, %v2099, %v1277
      %v2181 = vsel %vm2119, %v2100, %v1279
      %v2182 = vsel %vm2119, %v2101, %v1281
      %v2183 = vsel %vm2119, %v2102, %v1283
      %v2184 = vsel %vm2119, %v2103, %v1285
      %v2185 = vsel %vm2119, %v2104, %v1287
      %v2186 = vsel %vm2119, %v2105, %v1289
      %v2187 = vsel %vm2119, %v2106, %v1291
      %v2188 = vsel %vm2119, %v2107, %v1293
      %v2189 = vsel %vm2119, %v2108, %v1295
      %v2190 = vsel %vm2119, %v2109, %v1297
      %v2191 = vsel %vm2119, %v2110, %v1299
      %v2192 = vsel %vm2119, %v2111, %v1301
      %v2193 = vsel %vm2119, %v2112, %v1303
      %v2194 = vsel %vm2119, %v2113, %v1305
      %v2195 = vsel %vm2119, %v2114, %v1307
      %v2196 = vsel %vm2119, %v2115, %v1309
      %v2197 = vsel %vm2119, %v2116, %v1311
      %v2198 = vsel %vm2119, %v2117, %v1313
      %v2199 = vsel %vm2119, %v2118, %v1315
      %vm2200 = vcmask 785408
      %v2201 = vsel %vm2200, %v2120, %v1598
      %v2202 = vsel %vm2200, %v2121, %v1600
      %v2203 = vsel %vm2200, %v2122, %v1602
      %v2204 = vsel %vm2200, %v2123, %v1604
      %v2205 = vsel %vm2200, %v2124, %v1606
      %v2206 = vsel %vm2200, %v2125, %v1608
      %v2207 = vsel %vm2200, %v2126, %v1610
      %v2208 = vsel %vm2200, %v2127, %v1612
      %v2209 = vsel %vm2200, %v2128, %v1614
      %v2210 = vsel %vm2200, %v2129, %v1616
      %v2211 = vsel %vm2200, %v2130, %v1618
      %v2212 = vsel %vm2200, %v2131, %v1620
      %v2213 = vsel %vm2200, %v2132, %v1622
      %v2214 = vsel %vm2200, %v2133, %v1624
      %v2215 = vsel %vm2200, %v2134, %v1626
      %v2216 = vsel %vm2200, %v2135, %v1628
      %v2217 = vsel %vm2200, %v2136, %v1630
      %v2218 = vsel %vm2200, %v2137, %v1632
      %v2219 = vsel %vm2200, %v2138, %v1634
      %v2220 = vsel %vm2200, %v2139, %v1636
      %v2221 = vsel %vm2200, %v2140, %v1638
      %v2222 = vsel %vm2200, %v2141, %v1640
      %v2223 = vsel %vm2200, %v2142, %v1642
      %v2224 = vsel %vm2200, %v2143, %v1644
      %v2225 = vsel %vm2200, %v2144, %v1646
      %v2226 = vsel %vm2200, %v2145, %v1648
      %v2227 = vsel %vm2200, %v2146, %v1650
      %v2228 = vsel %vm2200, %v2147, %v1652
      %v2229 = vsel %vm2200, %v2148, %v1654
      %v2230 = vsel %vm2200, %v2149, %v1656
      %v2231 = vsel %vm2200, %v2150, %v1658
      %v2232 = vsel %vm2200, %v2151, %v1660
      %v2233 = vsel %vm2200, %v2152, %v1662
      %v2234 = vsel %vm2200, %v2153, %v1664
      %v2235 = vsel %vm2200, %v2154, %v1666
      %v2236 = vsel %vm2200, %v2155, %v1668
      %v2237 = vsel %vm2200, %v2156, %v1670
      %v2238 = vsel %vm2200, %v2157, %v1672
      %v2239 = vsel %vm2200, %v2158, %v1674
      %v2240 = vsel %vm2200, %v2159, %v1676
      %v2241 = vsel %vm2200, %v2160, %v1678
      %v2242 = vsel %vm2200, %v2161, %v1680
      %v2243 = vsel %vm2200, %v2162, %v1682
      %v2244 = vsel %vm2200, %v2163, %v1684
      %v2245 = vsel %vm2200, %v2164, %v1686
      %v2246 = vsel %vm2200, %v2165, %v1688
      %v2247 = vsel %vm2200, %v2166, %v1690
      %v2248 = vsel %vm2200, %v2167, %v1692
      %v2249 = vsel %vm2200, %v2168, %v1694
      %v2250 = vsel %vm2200, %v2169, %v1696
      %v2251 = vsel %vm2200, %v2170, %v1698
      %v2252 = vsel %vm2200, %v2171, %v1700
      %v2253 = vsel %vm2200, %v2172, %v1702
      %v2254 = vsel %vm2200, %v2173, %v1704
      %v2255 = vsel %vm2200, %v2174, %v1706
      %v2256 = vsel %vm2200, %v2175, %v1708
      %v2257 = vsel %vm2200, %v2176, %v1710
      %v2258 = vsel %vm2200, %v2177, %v1712
      %v2259 = vsel %vm2200, %v2178, %v1714
      %v2260 = vsel %vm2200, %v2179, %v1716
      %v2261 = vsel %vm2200, %v2180, %v1718
      %v2262 = vsel %vm2200, %v2181, %v1720
      %v2263 = vsel %vm2200, %v2182, %v1722
      %v2264 = vsel %vm2200, %v2183, %v1724
      %v2265 = vsel %vm2200, %v2184, %v1726
      %v2266 = vsel %vm2200, %v2185, %v1728
      %v2267 = vsel %vm2200, %v2186, %v1730
      %v2268 = vsel %vm2200, %v2187, %v1732
      %v2269 = vsel %vm2200, %v2188, %v1734
      %v2270 = vsel %vm2200, %v2189, %v1736
      %v2271 = vsel %vm2200, %v2190, %v1738
      %v2272 = vsel %vm2200, %v2191, %v1740
      %v2273 = vsel %vm2200, %v2192, %v1742
      %v2274 = vsel %vm2200, %v2193, %v1744
      %v2275 = vsel %vm2200, %v2194, %v1746
      %v2276 = vsel %vm2200, %v2195, %v1748
      %v2277 = vsel %vm2200, %v2196, %v1750
      %v2278 = vsel %vm2200, %v2197, %v1752
      %v2279 = vsel %vm2200, %v2198, %v1754
      %v2280 = vsel %vm2200, %v2199, %v1756
      %v2281 = vld [vmem:[%s255] sm:$0xff]
      %v2282 = vld [vmem:[%s255 + $0x8] sm:$0xff]
      %v2283 = vld [vmem:[%s255 + $0x10] sm:$0xff]
      %v2284 = vld [vmem:[%s255 + $0x18] sm:$0xff]
      %v2285 = vld [vmem:[%s255 + $0x20] sm:$0xff]
      %v2286 = vld [vmem:[%s255 + $0x28] sm:$0xff]
      %v2287 = vld [vmem:[%s255 + $0x30] sm:$0xff]
      %v2288 = vld [vmem:[%s255 + $0x38] sm:$0xff]
      %v2289 = vld [vmem:[%s255 + $0x40] sm:$0xff]
      %v2290 = vld [vmem:[%s255 + $0x48] sm:$0xff]
      %v2291 = vld [vmem:[%s255 + $0x50] sm:$0xff]
      %v2292 = vld [vmem:[%s255 + $0x58] sm:$0xff]
      %v2293 = vld [vmem:[%s255 + $0x60] sm:$0xff]
      %v2294 = vld [vmem:[%s255 + $0x68] sm:$0xff]
      %v2295 = vld [vmem:[%s255 + $0x70] sm:$0xff]
      %v2296 = vld [vmem:[%s255 + $0x78] sm:$0xff]
      %v2297 = vld [vmem:[%s255 + $0x80] sm:$0xff]
      %v2298 = vld [vmem:[%s255 + $0x88] sm:$0xff]
      %v2299 = vld [vmem:[%s255 + $0x90] sm:$0xff]
      %v2300 = vld [vmem:[%s255 + $0x98] sm:$0xff]
      %s2301 = scalar_lea.vmem %s255, 160
      %v2302 = vld [vmem:[%s2301] sm:$0xff]
      %v2303 = vld [vmem:[%s2301 + $0x8] sm:$0xff]
      %v2304 = vld [vmem:[%s2301 + $0x10] sm:$0xff]
      %v2305 = vld [vmem:[%s2301 + $0x18] sm:$0xff]
      %v2306 = vld [vmem:[%s2301 + $0x20] sm:$0xff]
      %v2307 = vld [vmem:[%s2301 + $0x28] sm:$0xff]
      %v2308 = vld [vmem:[%s2301 + $0x30] sm:$0xff]
      %v2309 = vld [vmem:[%s2301 + $0x38] sm:$0xff]
      %v2310 = vld [vmem:[%s2301 + $0x40] sm:$0xff]
      %v2311 = vld [vmem:[%s2301 + $0x48] sm:$0xff]
      %v2312 = vld [vmem:[%s2301 + $0x50] sm:$0xff]
      %v2313 = vld [vmem:[%s2301 + $0x58] sm:$0xff]
      %v2314 = vld [vmem:[%s2301 + $0x60] sm:$0xff]
      %v2315 = vld [vmem:[%s2301 + $0x68] sm:$0xff]
      %v2316 = vld [vmem:[%s2301 + $0x70] sm:$0xff]
      %v2317 = vld [vmem:[%s2301 + $0x78] sm:$0xff]
      %v2318 = vld [vmem:[%s2301 + $0x80] sm:$0xff]
      %v2319 = vld [vmem:[%s2301 + $0x88] sm:$0xff]
      %v2320 = vld [vmem:[%s2301 + $0x90] sm:$0xff]
      %v2321 = vld [vmem:[%s2301 + $0x98] sm:$0xff]
      %v2322 = vsel %vm2038, %v1845, 0
      %v2324 = vsel %vm2038, %v1847, 0
      %v2326 = vsel %vm2038, %v1850, 0
      %v2328 = vsel %vm2038, %v1852, 0
      %v2330 = vsel %vm2038, %v1855, 0
      %v2332 = vsel %vm2038, %v1857, 0
      %v2334 = vsel %vm2038, %v1860, 0
      %v2336 = vsel %vm2038, %v1862, 0
      %v2338 = vsel %vm2038, %v1865, 0
      %v2340 = vsel %vm2038, %v1867, 0
      %v2342 = vsel %vm2038, %v1870, 0
      %v2344 = vsel %vm2038, %v1872, 0
      %v2346 = vsel %vm2038, %v1875, 0
      %v2348 = vsel %vm2038, %v1877, 0
      %v2350 = vsel %vm2038, %v1880, 0
      %v2352 = vsel %vm2038, %v1882, 0
      %v2354 = vsel %vm2038, %v1885, 0
      %v2356 = vsel %vm2038, %v1887, 0
      %v2358 = vsel %vm2038, %v1890, 0
      %v2360 = vsel %vm2038, %v1892, 0
      %v2362 = vsel %vm2038, %v1895, 0
      %v2364 = vsel %vm2038, %v1897, 0
      %v2366 = vsel %vm2038, %v1900, 0
      %v2368 = vsel %vm2038, %v1902, 0
      %v2370 = vsel %vm2038, %v1905, 0
      %v2372 = vsel %vm2038, %v1907, 0
      %v2374 = vsel %vm2038, %v1910, 0
      %v2376 = vsel %vm2038, %v1912, 0
      %v2378 = vsel %vm2038, %v1915, 0
      %v2380 = vsel %vm2038, %v1917, 0
      %v2382 = vsel %vm2038, %v1920, 0
      %v2384 = vsel %vm2038, %v1922, 0
      %v2386 = vsel %vm2038, %v1945, 0
      %v2388 = vsel %vm2038, %v1947, 0
      %v2390 = vsel %vm2038, %v1950, 0
      %v2392 = vsel %vm2038, %v1952, 0
      %v2394 = vsel %vm2038, %v1955, 0
      %v2396 = vsel %vm2038, %v1957, 0
      %v2398 = vsel %vm2038, %v1960, 0
      %v2400 = vsel %vm2038, %v1962, 0
      %v2402 = vsel %vm2038, %v1965, 0
      %v2404 = vsel %vm2038, %v1967, 0
      %v2406 = vsel %vm2038, %v1970, 0
      %v2408 = vsel %vm2038, %v1972, 0
      %v2410 = vsel %vm2038, %v1975, 0
      %v2412 = vsel %vm2038, %v1977, 0
      %v2414 = vsel %vm2038, %v1980, 0
      %v2416 = vsel %vm2038, %v1982, 0
      %v2418 = vsel %vm2038, %v1985, 0
      %v2420 = vsel %vm2038, %v1987, 0
      %v2422 = vsel %vm2038, %v1990, 0
      %v2424 = vsel %vm2038, %v1992, 0
      %v2426 = vsel %vm2038, %v1995, 0
      %v2428 = vsel %vm2038, %v1997, 0
      %v2430 = vsel %vm2038, %v2000, 0
      %v2432 = vsel %vm2038, %v2002, 0
      %v2434 = vsel %vm2038, %v2005, 0
      %v2436 = vsel %vm2038, %v2007, 0
      %v2438 = vsel %vm2038, %v2010, 0
      %v2440 = vsel %vm2038, %v2012, 0
      %v2442 = vsel %vm2038, %v2015, 0
      %v2444 = vsel %vm2038, %v2017, 0
      %v2446 = vsel %vm2038, %v2020, 0
      %v2448 = vsel %vm2038, %v2022, 0
      %2450 = vmatpush.msra.mxu0 %v2317
      %2451 = vmatpush.msra.mxu0 %v2316
      %2452 = vmatpush.msra.mxu0 %v2315
      %2453 = vmatpush.msra.mxu0 %v2314
      %2454 = vmatpush.msra.mxu0 %v2313
      %2455 = vmatpush.msra.mxu0 %v2312
      %2456 = vmatpush.msra.mxu0 %v2311
      %2457 = vmatpush.msra.mxu0 %v2310
      %2458 = vmatpush.msra.mxu0 %v2309
      %2459 = vmatpush.msra.mxu0 %v2308
      %2460 = vmatpush.msra.mxu0 %v2307
      %2461 = vmatpush.msra.mxu0 %v2306
      %2462 = vmatpush.msra.mxu0 %v2305
      %2463 = vmatpush.msra.mxu0 %v2304
      %2464 = vmatpush.msra.mxu0 %v2303
      %2465 = vmatpush.msra.mxu0 %v2302
      %2466 = vmatmul.f32.gmra.mxu0 %v2203
      %v2467 = vpop.f32.mrf.mxu0
      %v2468 = vadd.f32 0.0, %v2467
      %2469 = vmatmul.f32.gmra.mxu0 %v2204
      %v2470 = vpop.f32.mrf.mxu0
      %v2471 = vadd.f32 0.0, %v2470
      %2472 = vmatmul.f32.gmra.mxu0 %v2205
      %v2473 = vpop.f32.mrf.mxu0
      %v2474 = vadd.f32 0.0, %v2473
      %2475 = vmatmul.f32.gmra.mxu0 %v2206
      %v2476 = vpop.f32.mrf.mxu0
      %v2477 = vadd.f32 0.0, %v2476
      %2478 = vmatmul.f32.gmra.mxu0 %v2207
      %v2479 = vpop.f32.mrf.mxu0
      %v2480 = vadd.f32 0.0, %v2479
      %2481 = vmatmul.f32.gmra.mxu0 %v2208
      %v2482 = vpop.f32.mrf.mxu0
      %v2483 = vadd.f32 0.0, %v2482
      %2484 = vmatmul.f32.gmra.mxu0 %v2209
      %v2485 = vpop.f32.mrf.mxu0
      %v2486 = vadd.f32 0.0, %v2485
      %2487 = vmatmul.f32.gmra.mxu0 %v2210
      %v2488 = vpop.f32.mrf.mxu0
      %v2489 = vadd.f32 0.0, %v2488
      %2490 = vmatmul.f32.gmra.mxu0 %v2211
      %v2491 = vpop.f32.mrf.mxu0
      %v2492 = vadd.f32 0.0, %v2491
      %2493 = vmatmul.f32.gmra.mxu0 %v2212
      %v2494 = vpop.f32.mrf.mxu0
      %v2495 = vadd.f32 0.0, %v2494
      %2496 = vmatmul.f32.gmra.mxu0 %v2213
      %v2497 = vpop.f32.mrf.mxu0
      %v2498 = vadd.f32 0.0, %v2497
      %2499 = vmatmul.f32.gmra.mxu0 %v2214
      %v2500 = vpop.f32.mrf.mxu0
      %v2501 = vadd.f32 0.0, %v2500
      %2502 = vmatmul.f32.gmra.mxu0 %v2215
      %v2503 = vpop.f32.mrf.mxu0
      %v2504 = vadd.f32 0.0, %v2503
      %2505 = vmatmul.f32.gmra.mxu0 %v2216
      %v2506 = vpop.f32.mrf.mxu0
      %v2507 = vadd.f32 0.0, %v2506
      %2508 = vmatmul.f32.gmra.mxu0 %v2217
      %v2509 = vpop.f32.mrf.mxu0
      %v2510 = vadd.f32 0.0, %v2509
      %2511 = vmatmul.f32.gmra.mxu0 %v2218
      %v2512 = vpop.f32.mrf.mxu0
      %v2513 = vadd.f32 0.0, %v2512
      %2514 = vmatmul.f32.gmra.mxu0 %v2219
      %v2515 = vpop.f32.mrf.mxu0
      %v2516 = vadd.f32 0.0, %v2515
      %2517 = vmatmul.f32.gmra.mxu0 %v2220
      %v2518 = vpop.f32.mrf.mxu0
      %v2519 = vadd.f32 0.0, %v2518
      %2520 = vmatmul.f32.gmra.mxu0 %v2221
      %v2521 = vpop.f32.mrf.mxu0
      %v2522 = vadd.f32 0.0, %v2521
      %2523 = vmatmul.f32.gmra.mxu0 %v2222
      %v2524 = vpop.f32.mrf.mxu0
      %v2525 = vadd.f32 0.0, %v2524
      %2526 = vmatmul.f32.gmra.mxu0 %v2223
      %v2527 = vpop.f32.mrf.mxu0
      %v2528 = vadd.f32 0.0, %v2527
      %2529 = vmatmul.f32.gmra.mxu0 %v2224
      %v2530 = vpop.f32.mrf.mxu0
      %v2531 = vadd.f32 0.0, %v2530
      %2532 = vmatmul.f32.gmra.mxu0 %v2225
      %v2533 = vpop.f32.mrf.mxu0
      %v2534 = vadd.f32 0.0, %v2533
      %2535 = vmatmul.f32.gmra.mxu0 %v2226
      %v2536 = vpop.f32.mrf.mxu0
      %v2537 = vadd.f32 0.0, %v2536
      %2538 = vmatmul.f32.gmra.mxu0 %v2227
      %v2539 = vpop.f32.mrf.mxu0
      %v2540 = vadd.f32 0.0, %v2539
      %2541 = vmatmul.f32.gmra.mxu0 %v2228
      %v2542 = vpop.f32.mrf.mxu0
      %v2543 = vadd.f32 0.0, %v2542
      %2544 = vmatmul.f32.gmra.mxu0 %v2229
      %v2545 = vpop.f32.mrf.mxu0
      %v2546 = vadd.f32 0.0, %v2545
      %2547 = vmatmul.f32.gmra.mxu0 %v2230
      %v2548 = vpop.f32.mrf.mxu0
      %v2549 = vadd.f32 0.0, %v2548
      %2550 = vmatmul.f32.gmra.mxu0 %v2231
      %v2551 = vpop.f32.mrf.mxu0
      %v2552 = vadd.f32 0.0, %v2551
      %2553 = vmatmul.f32.gmra.mxu0 %v2232
      %v2554 = vpop.f32.mrf.mxu0
      %v2555 = vadd.f32 0.0, %v2554
      %2556 = vmatmul.f32.gmra.mxu0 %v2233
      %v2557 = vpop.f32.mrf.mxu0
      %v2558 = vadd.f32 0.0, %v2557
      %2559 = vmatmul.f32.gmra.mxu0 %v2234
      %v2560 = vpop.f32.mrf.mxu0
      %v2561 = vadd.f32 0.0, %v2560
      %2562 = vmatmul.f32.gmra.mxu0 %v2243
      %v2563 = vpop.f32.mrf.mxu0
      %v2564 = vadd.f32 0.0, %v2563
      %2565 = vmatmul.f32.gmra.mxu0 %v2244
      %v2566 = vpop.f32.mrf.mxu0
      %v2567 = vadd.f32 0.0, %v2566
      %2568 = vmatmul.f32.gmra.mxu0 %v2245
      %v2569 = vpop.f32.mrf.mxu0
      %v2570 = vadd.f32 0.0, %v2569
      %2571 = vmatmul.f32.gmra.mxu0 %v2246
      %v2572 = vpop.f32.mrf.mxu0
      %v2573 = vadd.f32 0.0, %v2572
      %2574 = vmatmul.f32.gmra.mxu0 %v2247
      %v2575 = vpop.f32.mrf.mxu0
      %v2576 = vadd.f32 0.0, %v2575
      %2577 = vmatmul.f32.gmra.mxu0 %v2248
      %v2578 = vpop.f32.mrf.mxu0
      %v2579 = vadd.f32 0.0, %v2578
      %2580 = vmatmul.f32.gmra.mxu0 %v2249
      %v2581 = vpop.f32.mrf.mxu0
      %v2582 = vadd.f32 0.0, %v2581
      %2583 = vmatmul.f32.gmra.mxu0 %v2250
      %v2584 = vpop.f32.mrf.mxu0
      %v2585 = vadd.f32 0.0, %v2584
      %2586 = vmatmul.f32.gmra.mxu0 %v2251
      %v2587 = vpop.f32.mrf.mxu0
      %v2588 = vadd.f32 0.0, %v2587
      %2589 = vmatmul.f32.gmra.mxu0 %v2252
      %v2590 = vpop.f32.mrf.mxu0
      %v2591 = vadd.f32 0.0, %v2590
      %2592 = vmatmul.f32.gmra.mxu0 %v2253
      %v2593 = vpop.f32.mrf.mxu0
      %v2594 = vadd.f32 0.0, %v2593
      %2595 = vmatmul.f32.gmra.mxu0 %v2254
      %v2596 = vpop.f32.mrf.mxu0
      %v2597 = vadd.f32 0.0, %v2596
      %2598 = vmatmul.f32.gmra.mxu0 %v2255
      %v2599 = vpop.f32.mrf.mxu0
      %v2600 = vadd.f32 0.0, %v2599
      %2601 = vmatmul.f32.gmra.mxu0 %v2256
      %v2602 = vpop.f32.mrf.mxu0
      %v2603 = vadd.f32 0.0, %v2602
      %2604 = vmatmul.f32.gmra.mxu0 %v2257
      %v2605 = vpop.f32.mrf.mxu0
      %v2606 = vadd.f32 0.0, %v2605
      %2607 = vmatmul.f32.gmra.mxu0 %v2258
      %v2608 = vpop.f32.mrf.mxu0
      %v2609 = vadd.f32 0.0, %v2608
      %2610 = vmatmul.f32.gmra.mxu0 %v2259
      %v2611 = vpop.f32.mrf.mxu0
      %v2612 = vadd.f32 0.0, %v2611
      %2613 = vmatmul.f32.gmra.mxu0 %v2260
      %v2614 = vpop.f32.mrf.mxu0
      %v2615 = vadd.f32 0.0, %v2614
      %2616 = vmatmul.f32.gmra.mxu0 %v2261
      %v2617 = vpop.f32.mrf.mxu0
      %v2618 = vadd.f32 0.0, %v2617
      %2619 = vmatmul.f32.gmra.mxu0 %v2262
      %v2620 = vpop.f32.mrf.mxu0
      %v2621 = vadd.f32 0.0, %v2620
      %2622 = vmatmul.f32.gmra.mxu0 %v2263
      %v2623 = vpop.f32.mrf.mxu0
      %v2624 = vadd.f32 0.0, %v2623
      %2625 = vmatmul.f32.gmra.mxu0 %v2264
      %v2626 = vpop.f32.mrf.mxu0
      %v2627 = vadd.f32 0.0, %v2626
      %2628 = vmatmul.f32.gmra.mxu0 %v2265
      %v2629 = vpop.f32.mrf.mxu0
      %v2630 = vadd.f32 0.0, %v2629
      %2631 = vmatmul.f32.gmra.mxu0 %v2266
      %v2632 = vpop.f32.mrf.mxu0
      %v2633 = vadd.f32 0.0, %v2632
      %2634 = vmatmul.f32.gmra.mxu0 %v2267
      %v2635 = vpop.f32.mrf.mxu0
      %v2636 = vadd.f32 0.0, %v2635
      %2637 = vmatmul.f32.gmra.mxu0 %v2268
      %v2638 = vpop.f32.mrf.mxu0
      %v2639 = vadd.f32 0.0, %v2638
      %2640 = vmatmul.f32.gmra.mxu0 %v2269
      %v2641 = vpop.f32.mrf.mxu0
      %v2642 = vadd.f32 0.0, %v2641
      %2643 = vmatmul.f32.gmra.mxu0 %v2270
      %v2644 = vpop.f32.mrf.mxu0
      %v2645 = vadd.f32 0.0, %v2644
      %2646 = vmatmul.f32.gmra.mxu0 %v2271
      %v2647 = vpop.f32.mrf.mxu0
      %v2648 = vadd.f32 0.0, %v2647
      %2649 = vmatmul.f32.gmra.mxu0 %v2272
      %v2650 = vpop.f32.mrf.mxu0
      %v2651 = vadd.f32 0.0, %v2650
      %2652 = vmatmul.f32.gmra.mxu0 %v2273
      %v2653 = vpop.f32.mrf.mxu0
      %v2654 = vadd.f32 0.0, %v2653
      %2655 = vmatmul.f32.gmra.mxu0 %v2274
      %v2656 = vpop.f32.mrf.mxu0
      %v2657 = vadd.f32 0.0, %v2656
      %2658 = vdwg.mxu0
      %2659 = vmatpush.msra.mxu0 0.0
      %2660 = vmatpush.msra.mxu0 0.0
      %2661 = vmatpush.msra.mxu0 0.0
      %2662 = vmatpush.msra.mxu0 0.0
      %2663 = vmatpush.msra.mxu0 0.0
      %2664 = vmatpush.msra.mxu0 0.0
      %2665 = vmatpush.msra.mxu0 0.0
      %2666 = vmatpush.msra.mxu0 0.0
      %2667 = vmatpush.msra.mxu0 0.0
      %2668 = vmatpush.msra.mxu0 0.0
      %2669 = vmatpush.msra.mxu0 0.0
      %2670 = vmatpush.msra.mxu0 0.0
      %2671 = vmatpush.msra.mxu0 %v2321
      %2672 = vmatpush.msra.mxu0 %v2320
      %2673 = vmatpush.msra.mxu0 %v2319
      %2674 = vmatpush.msra.mxu0 %v2318
      %2675 = vmatmul.f32.gmra.mxu0 %v2322
      %v2676 = vpop.f32.mrf.mxu0
      %v2677 = vadd.f32 %v2468, %v2676
      %2678 = vmatmul.f32.gmra.mxu0 %v2324
      %v2679 = vpop.f32.mrf.mxu0
      %v2680 = vadd.f32 %v2471, %v2679
      %2681 = vmatmul.f32.gmra.mxu0 %v2326
      %v2682 = vpop.f32.mrf.mxu0
      %v2683 = vadd.f32 %v2474, %v2682
      %2684 = vmatmul.f32.gmra.mxu0 %v2328
      %v2685 = vpop.f32.mrf.mxu0
      %v2686 = vadd.f32 %v2477, %v2685
      %2687 = vmatmul.f32.gmra.mxu0 %v2330
      %v2688 = vpop.f32.mrf.mxu0
      %v2689 = vadd.f32 %v2480, %v2688
      %2690 = vmatmul.f32.gmra.mxu0 %v2332
      %v2691 = vpop.f32.mrf.mxu0
      %v2692 = vadd.f32 %v2483, %v2691
      %2693 = vmatmul.f32.gmra.mxu0 %v2334
      %v2694 = vpop.f32.mrf.mxu0
      %v2695 = vadd.f32 %v2486, %v2694
      %2696 = vmatmul.f32.gmra.mxu0 %v2336
      %v2697 = vpop.f32.mrf.mxu0
      %v2698 = vadd.f32 %v2489, %v2697
      %2699 = vmatmul.f32.gmra.mxu0 %v2338
      %v2700 = vpop.f32.mrf.mxu0
      %v2701 = vadd.f32 %v2492, %v2700
      %2702 = vmatmul.f32.gmra.mxu0 %v2340
      %v2703 = vpop.f32.mrf.mxu0
      %v2704 = vadd.f32 %v2495, %v2703
      %2705 = vmatmul.f32.gmra.mxu0 %v2342
      %v2706 = vpop.f32.mrf.mxu0
      %v2707 = vadd.f32 %v2498, %v2706
      %2708 = vmatmul.f32.gmra.mxu0 %v2344
      %v2709 = vpop.f32.mrf.mxu0
      %v2710 = vadd.f32 %v2501, %v2709
      %2711 = vmatmul.f32.gmra.mxu0 %v2346
      %v2712 = vpop.f32.mrf.mxu0
      %v2713 = vadd.f32 %v2504, %v2712
      %2714 = vmatmul.f32.gmra.mxu0 %v2348
      %v2715 = vpop.f32.mrf.mxu0
      %v2716 = vadd.f32 %v2507, %v2715
      %2717 = vmatmul.f32.gmra.mxu0 %v2350
      %v2718 = vpop.f32.mrf.mxu0
      %v2719 = vadd.f32 %v2510, %v2718
      %2720 = vmatmul.f32.gmra.mxu0 %v2352
      %v2721 = vpop.f32.mrf.mxu0
      %v2722 = vadd.f32 %v2513, %v2721
      %2723 = vmatmul.f32.gmra.mxu0 %v2354
      %v2724 = vpop.f32.mrf.mxu0
      %v2725 = vadd.f32 %v2516, %v2724
      %2726 = vmatmul.f32.gmra.mxu0 %v2356
      %v2727 = vpop.f32.mrf.mxu0
      %v2728 = vadd.f32 %v2519, %v2727
      %2729 = vmatmul.f32.gmra.mxu0 %v2358
      %v2730 = vpop.f32.mrf.mxu0
      %v2731 = vadd.f32 %v2522, %v2730
      %2732 = vmatmul.f32.gmra.mxu0 %v2360
      %v2733 = vpop.f32.mrf.mxu0
      %v2734 = vadd.f32 %v2525, %v2733
      %2735 = vmatmul.f32.gmra.mxu0 %v2362
      %v2736 = vpop.f32.mrf.mxu0
      %v2737 = vadd.f32 %v2528, %v2736
      %2738 = vmatmul.f32.gmra.mxu0 %v2364
      %v2739 = vpop.f32.mrf.mxu0
      %v2740 = vadd.f32 %v2531, %v2739
      %2741 = vmatmul.f32.gmra.mxu0 %v2366
      %v2742 = vpop.f32.mrf.mxu0
      %v2743 = vadd.f32 %v2534, %v2742
      %2744 = vmatmul.f32.gmra.mxu0 %v2368
      %v2745 = vpop.f32.mrf.mxu0
      %v2746 = vadd.f32 %v2537, %v2745
      %2747 = vmatmul.f32.gmra.mxu0 %v2370
      %v2748 = vpop.f32.mrf.mxu0
      %v2749 = vadd.f32 %v2540, %v2748
      %2750 = vmatmul.f32.gmra.mxu0 %v2372
      %v2751 = vpop.f32.mrf.mxu0
      %v2752 = vadd.f32 %v2543, %v2751
      %2753 = vmatmul.f32.gmra.mxu0 %v2374
      %v2754 = vpop.f32.mrf.mxu0
      %v2755 = vadd.f32 %v2546, %v2754
      %2756 = vmatmul.f32.gmra.mxu0 %v2376
      %v2757 = vpop.f32.mrf.mxu0
      %v2758 = vadd.f32 %v2549, %v2757
      %2759 = vmatmul.f32.gmra.mxu0 %v2378
      %v2760 = vpop.f32.mrf.mxu0
      %v2761 = vadd.f32 %v2552, %v2760
      %2762 = vmatmul.f32.gmra.mxu0 %v2380
      %v2763 = vpop.f32.mrf.mxu0
      %v2764 = vadd.f32 %v2555, %v2763
      %2765 = vmatmul.f32.gmra.mxu0 %v2382
      %v2766 = vpop.f32.mrf.mxu0
      %v2767 = vadd.f32 %v2558, %v2766
      %2768 = vmatmul.f32.gmra.mxu0 %v2384
      %v2769 = vpop.f32.mrf.mxu0
      %v2770 = vadd.f32 %v2561, %v2769
      %2771 = vmatmul.f32.gmra.mxu0 %v2386
      %v2772 = vpop.f32.mrf.mxu0
      %v2773 = vadd.f32 %v2564, %v2772
      %2774 = vmatmul.f32.gmra.mxu0 %v2388
      %v2775 = vpop.f32.mrf.mxu0
      %v2776 = vadd.f32 %v2567, %v2775
      %2777 = vmatmul.f32.gmra.mxu0 %v2390
      %v2778 = vpop.f32.mrf.mxu0
      %v2779 = vadd.f32 %v2570, %v2778
      %2780 = vmatmul.f32.gmra.mxu0 %v2392
      %v2781 = vpop.f32.mrf.mxu0
      %v2782 = vadd.f32 %v2573, %v2781
      %2783 = vmatmul.f32.gmra.mxu0 %v2394
      %v2784 = vpop.f32.mrf.mxu0
      %v2785 = vadd.f32 %v2576, %v2784
      %2786 = vmatmul.f32.gmra.mxu0 %v2396
      %v2787 = vpop.f32.mrf.mxu0
      %v2788 = vadd.f32 %v2579, %v2787
      %2789 = vmatmul.f32.gmra.mxu0 %v2398
      %v2790 = vpop.f32.mrf.mxu0
      %v2791 = vadd.f32 %v2582, %v2790
      %2792 = vmatmul.f32.gmra.mxu0 %v2400
      %v2793 = vpop.f32.mrf.mxu0
      %v2794 = vadd.f32 %v2585, %v2793
      %2795 = vmatmul.f32.gmra.mxu0 %v2402
      %v2796 = vpop.f32.mrf.mxu0
      %v2797 = vadd.f32 %v2588, %v2796
      %2798 = vmatmul.f32.gmra.mxu0 %v2404
      %v2799 = vpop.f32.mrf.mxu0
      %v2800 = vadd.f32 %v2591, %v2799
      %2801 = vmatmul.f32.gmra.mxu0 %v2406
      %v2802 = vpop.f32.mrf.mxu0
      %v2803 = vadd.f32 %v2594, %v2802
      %2804 = vmatmul.f32.gmra.mxu0 %v2408
      %v2805 = vpop.f32.mrf.mxu0
      %v2806 = vadd.f32 %v2597, %v2805
      %2807 = vmatmul.f32.gmra.mxu0 %v2410
      %v2808 = vpop.f32.mrf.mxu0
      %v2809 = vadd.f32 %v2600, %v2808
      %2810 = vmatmul.f32.gmra.mxu0 %v2412
      %v2811 = vpop.f32.mrf.mxu0
      %v2812 = vadd.f32 %v2603, %v2811
      %2813 = vmatmul.f32.gmra.mxu0 %v2414
      %v2814 = vpop.f32.mrf.mxu0
      %v2815 = vadd.f32 %v2606, %v2814
      %2816 = vmatmul.f32.gmra.mxu0 %v2416
      %v2817 = vpop.f32.mrf.mxu0
      %v2818 = vadd.f32 %v2609, %v2817
      %2819 = vmatmul.f32.gmra.mxu0 %v2418
      %v2820 = vpop.f32.mrf.mxu0
      %v2821 = vadd.f32 %v2612, %v2820
      %2822 = vmatmul.f32.gmra.mxu0 %v2420
      %v2823 = vpop.f32.mrf.mxu0
      %v2824 = vadd.f32 %v2615, %v2823
      %2825 = vmatmul.f32.gmra.mxu0 %v2422
      %v2826 = vpop.f32.mrf.mxu0
      %v2827 = vadd.f32 %v2618, %v2826
      %2828 = vmatmul.f32.gmra.mxu0 %v2424
      %v2829 = vpop.f32.mrf.mxu0
      %v2830 = vadd.f32 %v2621, %v2829
      %2831 = vmatmul.f32.gmra.mxu0 %v2426
      %v2832 = vpop.f32.mrf.mxu0
      %v2833 = vadd.f32 %v2624, %v2832
      %2834 = vmatmul.f32.gmra.mxu0 %v2428
      %v2835 = vpop.f32.mrf.mxu0
      %v2836 = vadd.f32 %v2627, %v2835
      %2837 = vmatmul.f32.gmra.mxu0 %v2430
      %v2838 = vpop.f32.mrf.mxu0
      %v2839 = vadd.f32 %v2630, %v2838
      %2840 = vmatmul.f32.gmra.mxu0 %v2432
      %v2841 = vpop.f32.mrf.mxu0
      %v2842 = vadd.f32 %v2633, %v2841
      %2843 = vmatmul.f32.gmra.mxu0 %v2434
      %v2844 = vpop.f32.mrf.mxu0
      %v2845 = vadd.f32 %v2636, %v2844
      %2846 = vmatmul.f32.gmra.mxu0 %v2436
      %v2847 = vpop.f32.mrf.mxu0
      %v2848 = vadd.f32 %v2639, %v2847
      %2849 = vmatmul.f32.gmra.mxu0 %v2438
      %v2850 = vpop.f32.mrf.mxu0
      %v2851 = vadd.f32 %v2642, %v2850
      %2852 = vmatmul.f32.gmra.mxu0 %v2440
      %v2853 = vpop.f32.mrf.mxu0
      %v2854 = vadd.f32 %v2645, %v2853
      %2855 = vmatmul.f32.gmra.mxu0 %v2442
      %v2856 = vpop.f32.mrf.mxu0
      %v2857 = vadd.f32 %v2648, %v2856
      %2858 = vmatmul.f32.gmra.mxu0 %v2444
      %v2859 = vpop.f32.mrf.mxu0
      %v2860 = vadd.f32 %v2651, %v2859
      %2861 = vmatmul.f32.gmra.mxu0 %v2446
      %v2862 = vpop.f32.mrf.mxu0
      %v2863 = vadd.f32 %v2654, %v2862
      %2864 = vmatmul.f32.gmra.mxu0 %v2448
      %v2865 = vpop.f32.mrf.mxu0
      %v2866 = vadd.f32 %v2657, %v2865
      %2867 = vdwg.mxu0
      %s2868 = scalar_lea.vmem %s255, 320
      %v2869 = vld [vmem:[%s2868] sm:$0xff]
      %v2870 = vld [vmem:[%s2868 + $0x8] sm:$0xff]
      %v2871 = vld [vmem:[%s2868 + $0x10] sm:$0xff]
      %v2872 = vld [vmem:[%s2868 + $0x18] sm:$0xff]
      %v2873 = vld [vmem:[%s2868 + $0x20] sm:$0xff]
      %v2874 = vld [vmem:[%s2868 + $0x28] sm:$0xff]
      %v2875 = vld [vmem:[%s2868 + $0x30] sm:$0xff]
      %v2876 = vld [vmem:[%s2868 + $0x38] sm:$0xff]
      %v2877 = vld [vmem:[%s2868 + $0x40] sm:$0xff]
      %v2878 = vld [vmem:[%s2868 + $0x48] sm:$0xff]
      %v2879 = vld [vmem:[%s2868 + $0x50] sm:$0xff]
      %v2880 = vld [vmem:[%s2868 + $0x58] sm:$0xff]
      %v2881 = vld [vmem:[%s2868 + $0x60] sm:$0xff]
      %v2882 = vld [vmem:[%s2868 + $0x68] sm:$0xff]
      %v2883 = vld [vmem:[%s2868 + $0x70] sm:$0xff]
      %v2884 = vld [vmem:[%s2868 + $0x78] sm:$0xff]
      %v2885 = vld [vmem:[%s2868 + $0x80] sm:$0xff]
      %v2886 = vld [vmem:[%s2868 + $0x88] sm:$0xff]
      %v2887 = vld [vmem:[%s2868 + $0x90] sm:$0xff]
      %v2888 = vld [vmem:[%s2868 + $0x98] sm:$0xff]
      %s2889 = scalar_lea.vmem %s255, 480
      %v2890 = vld [vmem:[%s2889] sm:$0xff]
      %v2891 = vld [vmem:[%s2889 + $0x8] sm:$0xff]
      %v2892 = vld [vmem:[%s2889 + $0x10] sm:$0xff]
      %v2893 = vld [vmem:[%s2889 + $0x18] sm:$0xff]
      %v2894 = vld [vmem:[%s2889 + $0x20] sm:$0xff]
      %v2895 = vld [vmem:[%s2889 + $0x28] sm:$0xff]
      %v2896 = vld [vmem:[%s2889 + $0x30] sm:$0xff]
      %v2897 = vld [vmem:[%s2889 + $0x38] sm:$0xff]
      %v2898 = vld [vmem:[%s2889 + $0x40] sm:$0xff]
      %v2899 = vld [vmem:[%s2889 + $0x48] sm:$0xff]
      %v2900 = vld [vmem:[%s2889 + $0x50] sm:$0xff]
      %v2901 = vld [vmem:[%s2889 + $0x58] sm:$0xff]
      %v2902 = vld [vmem:[%s2889 + $0x60] sm:$0xff]
      %v2903 = vld [vmem:[%s2889 + $0x68] sm:$0xff]
      %v2904 = vld [vmem:[%s2889 + $0x70] sm:$0xff]
      %v2905 = vld [vmem:[%s2889 + $0x78] sm:$0xff]
      %v2906 = vld [vmem:[%s2889 + $0x80] sm:$0xff]
      %v2907 = vld [vmem:[%s2889 + $0x88] sm:$0xff]
      %v2908 = vld [vmem:[%s2889 + $0x90] sm:$0xff]
      %v2909 = vld [vmem:[%s2889 + $0x98] sm:$0xff]
      %v2910 = vsel %vm2038, %v1925, 0
      %v2912 = vsel %vm2038, %v1927, 0
      %v2914 = vsel %vm2038, %v1930, 0
      %v2916 = vsel %vm2038, %v1932, 0
      %v2918 = vsel %vm2038, %v2025, 0
      %v2920 = vsel %vm2038, %v2027, 0
      %v2922 = vsel %vm2038, %v2030, 0
      %v2924 = vsel %vm2038, %v2032, 0
      %2926 = vmatpush.msra.mxu0 %v2905
      %2927 = vmatpush.msra.mxu0 %v2904
      %2928 = vmatpush.msra.mxu0 %v2903
      %2929 = vmatpush.msra.mxu0 %v2902
      %2930 = vmatpush.msra.mxu0 %v2901
      %2931 = vmatpush.msra.mxu0 %v2900
      %2932 = vmatpush.msra.mxu0 %v2899
      %2933 = vmatpush.msra.mxu0 %v2898
      %2934 = vmatpush.msra.mxu0 %v2897
      %2935 = vmatpush.msra.mxu0 %v2896
      %2936 = vmatpush.msra.mxu0 %v2895
      %2937 = vmatpush.msra.mxu0 %v2894
      %2938 = vmatpush.msra.mxu0 %v2893
      %2939 = vmatpush.msra.mxu0 %v2892
      %2940 = vmatpush.msra.mxu0 %v2891
      %2941 = vmatpush.msra.mxu0 %v2890
      %2942 = vmatmul.f32.gmra.mxu0 %v2207
      %v2943 = vpop.f32.mrf.mxu0
      %v2944 = vadd.f32 0.0, %v2943
      %2945 = vmatmul.f32.gmra.mxu0 %v2208
      %v2946 = vpop.f32.mrf.mxu0
      %v2947 = vadd.f32 0.0, %v2946
      %2948 = vmatmul.f32.gmra.mxu0 %v2209
      %v2949 = vpop.f32.mrf.mxu0
      %v2950 = vadd.f32 0.0, %v2949
      %2951 = vmatmul.f32.gmra.mxu0 %v2210
      %v2952 = vpop.f32.mrf.mxu0
      %v2953 = vadd.f32 0.0, %v2952
      %2954 = vmatmul.f32.gmra.mxu0 %v2211
      %v2955 = vpop.f32.mrf.mxu0
      %v2956 = vadd.f32 0.0, %v2955
      %2957 = vmatmul.f32.gmra.mxu0 %v2212
      %v2958 = vpop.f32.mrf.mxu0
      %v2959 = vadd.f32 0.0, %v2958
      %2960 = vmatmul.f32.gmra.mxu0 %v2213
      %v2961 = vpop.f32.mrf.mxu0
      %v2962 = vadd.f32 0.0, %v2961
      %2963 = vmatmul.f32.gmra.mxu0 %v2214
      %v2964 = vpop.f32.mrf.mxu0
      %v2965 = vadd.f32 0.0, %v2964
      %2966 = vmatmul.f32.gmra.mxu0 %v2215
      %v2967 = vpop.f32.mrf.mxu0
      %v2968 = vadd.f32 0.0, %v2967
      %2969 = vmatmul.f32.gmra.mxu0 %v2216
      %v2970 = vpop.f32.mrf.mxu0
      %v2971 = vadd.f32 0.0, %v2970
      %2972 = vmatmul.f32.gmra.mxu0 %v2217
      %v2973 = vpop.f32.mrf.mxu0
      %v2974 = vadd.f32 0.0, %v2973
      %2975 = vmatmul.f32.gmra.mxu0 %v2218
      %v2976 = vpop.f32.mrf.mxu0
      %v2977 = vadd.f32 0.0, %v2976
      %2978 = vmatmul.f32.gmra.mxu0 %v2219
      %v2979 = vpop.f32.mrf.mxu0
      %v2980 = vadd.f32 0.0, %v2979
      %2981 = vmatmul.f32.gmra.mxu0 %v2220
      %v2982 = vpop.f32.mrf.mxu0
      %v2983 = vadd.f32 0.0, %v2982
      %2984 = vmatmul.f32.gmra.mxu0 %v2221
      %v2985 = vpop.f32.mrf.mxu0
      %v2986 = vadd.f32 0.0, %v2985
      %2987 = vmatmul.f32.gmra.mxu0 %v2222
      %v2988 = vpop.f32.mrf.mxu0
      %v2989 = vadd.f32 0.0, %v2988
      %2990 = vmatmul.f32.gmra.mxu0 %v2223
      %v2991 = vpop.f32.mrf.mxu0
      %v2992 = vadd.f32 0.0, %v2991
      %2993 = vmatmul.f32.gmra.mxu0 %v2224
      %v2994 = vpop.f32.mrf.mxu0
      %v2995 = vadd.f32 0.0, %v2994
      %2996 = vmatmul.f32.gmra.mxu0 %v2225
      %v2997 = vpop.f32.mrf.mxu0
      %v2998 = vadd.f32 0.0, %v2997
      %2999 = vmatmul.f32.gmra.mxu0 %v2226
      %v3000 = vpop.f32.mrf.mxu0
      %v3001 = vadd.f32 0.0, %v3000
      %3002 = vmatmul.f32.gmra.mxu0 %v2227
      %v3003 = vpop.f32.mrf.mxu0
      %v3004 = vadd.f32 0.0, %v3003
      %3005 = vmatmul.f32.gmra.mxu0 %v2228
      %v3006 = vpop.f32.mrf.mxu0
      %v3007 = vadd.f32 0.0, %v3006
      %3008 = vmatmul.f32.gmra.mxu0 %v2229
      %v3009 = vpop.f32.mrf.mxu0
      %v3010 = vadd.f32 0.0, %v3009
      %3011 = vmatmul.f32.gmra.mxu0 %v2230
      %v3012 = vpop.f32.mrf.mxu0
      %v3013 = vadd.f32 0.0, %v3012
      %3014 = vmatmul.f32.gmra.mxu0 %v2231
      %v3015 = vpop.f32.mrf.mxu0
      %v3016 = vadd.f32 0.0, %v3015
      %3017 = vmatmul.f32.gmra.mxu0 %v2232
      %v3018 = vpop.f32.mrf.mxu0
      %v3019 = vadd.f32 0.0, %v3018
      %3020 = vmatmul.f32.gmra.mxu0 %v2233
      %v3021 = vpop.f32.mrf.mxu0
      %v3022 = vadd.f32 0.0, %v3021
      %3023 = vmatmul.f32.gmra.mxu0 %v2234
      %v3024 = vpop.f32.mrf.mxu0
      %v3025 = vadd.f32 0.0, %v3024
      %3026 = vmatmul.f32.gmra.mxu0 %v2235
      %v3027 = vpop.f32.mrf.mxu0
      %v3028 = vadd.f32 0.0, %v3027
      %3029 = vmatmul.f32.gmra.mxu0 %v2236
      %v3030 = vpop.f32.mrf.mxu0
      %v3031 = vadd.f32 0.0, %v3030
      %3032 = vmatmul.f32.gmra.mxu0 %v2237
      %v3033 = vpop.f32.mrf.mxu0
      %v3034 = vadd.f32 0.0, %v3033
      %3035 = vmatmul.f32.gmra.mxu0 %v2238
      %v3036 = vpop.f32.mrf.mxu0
      %v3037 = vadd.f32 0.0, %v3036
      %3038 = vmatmul.f32.gmra.mxu0 %v2247
      %v3039 = vpop.f32.mrf.mxu0
      %v3040 = vadd.f32 0.0, %v3039
      %3041 = vmatmul.f32.gmra.mxu0 %v2248
      %v3042 = vpop.f32.mrf.mxu0
      %v3043 = vadd.f32 0.0, %v3042
      %3044 = vmatmul.f32.gmra.mxu0 %v2249
      %v3045 = vpop.f32.mrf.mxu0
      %v3046 = vadd.f32 0.0, %v3045
      %3047 = vmatmul.f32.gmra.mxu0 %v2250
      %v3048 = vpop.f32.mrf.mxu0
      %v3049 = vadd.f32 0.0, %v3048
      %3050 = vmatmul.f32.gmra.mxu0 %v2251
      %v3051 = vpop.f32.mrf.mxu0
      %v3052 = vadd.f32 0.0, %v3051
      %3053 = vmatmul.f32.gmra.mxu0 %v2252
      %v3054 = vpop.f32.mrf.mxu0
      %v3055 = vadd.f32 0.0, %v3054
      %3056 = vmatmul.f32.gmra.mxu0 %v2253
      %v3057 = vpop.f32.mrf.mxu0
      %v3058 = vadd.f32 0.0, %v3057
      %3059 = vmatmul.f32.gmra.mxu0 %v2254
      %v3060 = vpop.f32.mrf.mxu0
      %v3061 = vadd.f32 0.0, %v3060
      %3062 = vmatmul.f32.gmra.mxu0 %v2255
      %v3063 = vpop.f32.mrf.mxu0
      %v3064 = vadd.f32 0.0, %v3063
      %3065 = vmatmul.f32.gmra.mxu0 %v2256
      %v3066 = vpop.f32.mrf.mxu0
      %v3067 = vadd.f32 0.0, %v3066
      %3068 = vmatmul.f32.gmra.mxu0 %v2257
      %v3069 = vpop.f32.mrf.mxu0
      %v3070 = vadd.f32 0.0, %v3069
      %3071 = vmatmul.f32.gmra.mxu0 %v2258
      %v3072 = vpop.f32.mrf.mxu0
      %v3073 = vadd.f32 0.0, %v3072
      %3074 = vmatmul.f32.gmra.mxu0 %v2259
      %v3075 = vpop.f32.mrf.mxu0
      %v3076 = vadd.f32 0.0, %v3075
      %3077 = vmatmul.f32.gmra.mxu0 %v2260
      %v3078 = vpop.f32.mrf.mxu0
      %v3079 = vadd.f32 0.0, %v3078
      %3080 = vmatmul.f32.gmra.mxu0 %v2261
      %v3081 = vpop.f32.mrf.mxu0
      %v3082 = vadd.f32 0.0, %v3081
      %3083 = vmatmul.f32.gmra.mxu0 %v2262
      %v3084 = vpop.f32.mrf.mxu0
      %v3085 = vadd.f32 0.0, %v3084
      %3086 = vmatmul.f32.gmra.mxu0 %v2263
      %v3087 = vpop.f32.mrf.mxu0
      %v3088 = vadd.f32 0.0, %v3087
      %3089 = vmatmul.f32.gmra.mxu0 %v2264
      %v3090 = vpop.f32.mrf.mxu0
      %v3091 = vadd.f32 0.0, %v3090
      %3092 = vmatmul.f32.gmra.mxu0 %v2265
      %v3093 = vpop.f32.mrf.mxu0
      %v3094 = vadd.f32 0.0, %v3093
      %3095 = vmatmul.f32.gmra.mxu0 %v2266
      %v3096 = vpop.f32.mrf.mxu0
      %v3097 = vadd.f32 0.0, %v3096
      %3098 = vmatmul.f32.gmra.mxu0 %v2267
      %v3099 = vpop.f32.mrf.mxu0
      %v3100 = vadd.f32 0.0, %v3099
      %3101 = vmatmul.f32.gmra.mxu0 %v2268
      %v3102 = vpop.f32.mrf.mxu0
      %v3103 = vadd.f32 0.0, %v3102
      %3104 = vmatmul.f32.gmra.mxu0 %v2269
      %v3105 = vpop.f32.mrf.mxu0
      %v3106 = vadd.f32 0.0, %v3105
      %3107 = vmatmul.f32.gmra.mxu0 %v2270
      %v3108 = vpop.f32.mrf.mxu0
      %v3109 = vadd.f32 0.0, %v3108
      %3110 = vmatmul.f32.gmra.mxu0 %v2271
      %v3111 = vpop.f32.mrf.mxu0
      %v3112 = vadd.f32 0.0, %v3111
      %3113 = vmatmul.f32.gmra.mxu0 %v2272
      %v3114 = vpop.f32.mrf.mxu0
      %v3115 = vadd.f32 0.0, %v3114
      %3116 = vmatmul.f32.gmra.mxu0 %v2273
      %v3117 = vpop.f32.mrf.mxu0
      %v3118 = vadd.f32 0.0, %v3117
      %3119 = vmatmul.f32.gmra.mxu0 %v2274
      %v3120 = vpop.f32.mrf.mxu0
      %v3121 = vadd.f32 0.0, %v3120
      %3122 = vmatmul.f32.gmra.mxu0 %v2275
      %v3123 = vpop.f32.mrf.mxu0
      %v3124 = vadd.f32 0.0, %v3123
      %3125 = vmatmul.f32.gmra.mxu0 %v2276
      %v3126 = vpop.f32.mrf.mxu0
      %v3127 = vadd.f32 0.0, %v3126
      %3128 = vmatmul.f32.gmra.mxu0 %v2277
      %v3129 = vpop.f32.mrf.mxu0
      %v3130 = vadd.f32 0.0, %v3129
      %3131 = vmatmul.f32.gmra.mxu0 %v2278
      %v3132 = vpop.f32.mrf.mxu0
      %v3133 = vadd.f32 0.0, %v3132
      %3134 = vdwg.mxu0
      %3135 = vmatpush.msra.mxu0 0.0
      %3136 = vmatpush.msra.mxu0 0.0
      %3137 = vmatpush.msra.mxu0 0.0
      %3138 = vmatpush.msra.mxu0 0.0
      %3139 = vmatpush.msra.mxu0 0.0
      %3140 = vmatpush.msra.mxu0 0.0
      %3141 = vmatpush.msra.mxu0 0.0
      %3142 = vmatpush.msra.mxu0 0.0
      %3143 = vmatpush.msra.mxu0 0.0
      %3144 = vmatpush.msra.mxu0 0.0
      %3145 = vmatpush.msra.mxu0 0.0
      %3146 = vmatpush.msra.mxu0 0.0
      %3147 = vmatpush.msra.mxu0 %v2909
      %3148 = vmatpush.msra.mxu0 %v2908
      %3149 = vmatpush.msra.mxu0 %v2907
      %3150 = vmatpush.msra.mxu0 %v2906
      %3151 = vmatmul.f32.gmra.mxu0 %v2330
      %v3152 = vpop.f32.mrf.mxu0
      %v3153 = vadd.f32 %v2944, %v3152
      %3154 = vmatmul.f32.gmra.mxu0 %v2332
      %v3155 = vpop.f32.mrf.mxu0
      %v3156 = vadd.f32 %v2947, %v3155
      %3157 = vmatmul.f32.gmra.mxu0 %v2334
      %v3158 = vpop.f32.mrf.mxu0
      %v3159 = vadd.f32 %v2950, %v3158
      %3160 = vmatmul.f32.gmra.mxu0 %v2336
      %v3161 = vpop.f32.mrf.mxu0
      %v3162 = vadd.f32 %v2953, %v3161
      %3163 = vmatmul.f32.gmra.mxu0 %v2338
      %v3164 = vpop.f32.mrf.mxu0
      %v3165 = vadd.f32 %v2956, %v3164
      %3166 = vmatmul.f32.gmra.mxu0 %v2340
      %v3167 = vpop.f32.mrf.mxu0
      %v3168 = vadd.f32 %v2959, %v3167
      %3169 = vmatmul.f32.gmra.mxu0 %v2342
      %v3170 = vpop.f32.mrf.mxu0
      %v3171 = vadd.f32 %v2962, %v3170
      %3172 = vmatmul.f32.gmra.mxu0 %v2344
      %v3173 = vpop.f32.mrf.mxu0
      %v3174 = vadd.f32 %v2965, %v3173
      %3175 = vmatmul.f32.gmra.mxu0 %v2346
      %v3176 = vpop.f32.mrf.mxu0
      %v3177 = vadd.f32 %v2968, %v3176
      %3178 = vmatmul.f32.gmra.mxu0 %v2348
      %v3179 = vpop.f32.mrf.mxu0
      %v3180 = vadd.f32 %v2971, %v3179
      %3181 = vmatmul.f32.gmra.mxu0 %v2350
      %v3182 = vpop.f32.mrf.mxu0
      %v3183 = vadd.f32 %v2974, %v3182
      %3184 = vmatmul.f32.gmra.mxu0 %v2352
      %v3185 = vpop.f32.mrf.mxu0
      %v3186 = vadd.f32 %v2977, %v3185
      %3187 = vmatmul.f32.gmra.mxu0 %v2354
      %v3188 = vpop.f32.mrf.mxu0
      %v3189 = vadd.f32 %v2980, %v3188
      %3190 = vmatmul.f32.gmra.mxu0 %v2356
      %v3191 = vpop.f32.mrf.mxu0
      %v3192 = vadd.f32 %v2983, %v3191
      %3193 = vmatmul.f32.gmra.mxu0 %v2358
      %v3194 = vpop.f32.mrf.mxu0
      %v3195 = vadd.f32 %v2986, %v3194
      %3196 = vmatmul.f32.gmra.mxu0 %v2360
      %v3197 = vpop.f32.mrf.mxu0
      %v3198 = vadd.f32 %v2989, %v3197
      %3199 = vmatmul.f32.gmra.mxu0 %v2362
      %v3200 = vpop.f32.mrf.mxu0
      %v3201 = vadd.f32 %v2992, %v3200
      %3202 = vmatmul.f32.gmra.mxu0 %v2364
      %v3203 = vpop.f32.mrf.mxu0
      %v3204 = vadd.f32 %v2995, %v3203
      %3205 = vmatmul.f32.gmra.mxu0 %v2366
      %v3206 = vpop.f32.mrf.mxu0
      %v3207 = vadd.f32 %v2998, %v3206
      %3208 = vmatmul.f32.gmra.mxu0 %v2368
      %v3209 = vpop.f32.mrf.mxu0
      %v3210 = vadd.f32 %v3001, %v3209
      %3211 = vmatmul.f32.gmra.mxu0 %v2370
      %v3212 = vpop.f32.mrf.mxu0
      %v3213 = vadd.f32 %v3004, %v3212
      %3214 = vmatmul.f32.gmra.mxu0 %v2372
      %v3215 = vpop.f32.mrf.mxu0
      %v3216 = vadd.f32 %v3007, %v3215
      %3217 = vmatmul.f32.gmra.mxu0 %v2374
      %v3218 = vpop.f32.mrf.mxu0
      %v3219 = vadd.f32 %v3010, %v3218
      %3220 = vmatmul.f32.gmra.mxu0 %v2376
      %v3221 = vpop.f32.mrf.mxu0
      %v3222 = vadd.f32 %v3013, %v3221
      %3223 = vmatmul.f32.gmra.mxu0 %v2378
      %v3224 = vpop.f32.mrf.mxu0
      %v3225 = vadd.f32 %v3016, %v3224
      %3226 = vmatmul.f32.gmra.mxu0 %v2380
      %v3227 = vpop.f32.mrf.mxu0
      %v3228 = vadd.f32 %v3019, %v3227
      %3229 = vmatmul.f32.gmra.mxu0 %v2382
      %v3230 = vpop.f32.mrf.mxu0
      %v3231 = vadd.f32 %v3022, %v3230
      %3232 = vmatmul.f32.gmra.mxu0 %v2384
      %v3233 = vpop.f32.mrf.mxu0
      %v3234 = vadd.f32 %v3025, %v3233
      %3235 = vmatmul.f32.gmra.mxu0 %v2910
      %v3236 = vpop.f32.mrf.mxu0
      %v3237 = vadd.f32 %v3028, %v3236
      %3238 = vmatmul.f32.gmra.mxu0 %v2912
      %v3239 = vpop.f32.mrf.mxu0
      %v3240 = vadd.f32 %v3031, %v3239
      %3241 = vmatmul.f32.gmra.mxu0 %v2914
      %v3242 = vpop.f32.mrf.mxu0
      %v3243 = vadd.f32 %v3034, %v3242
      %3244 = vmatmul.f32.gmra.mxu0 %v2916
      %v3245 = vpop.f32.mrf.mxu0
      %v3246 = vadd.f32 %v3037, %v3245
      %3247 = vmatmul.f32.gmra.mxu0 %v2394
      %v3248 = vpop.f32.mrf.mxu0
      %v3249 = vadd.f32 %v3040, %v3248
      %3250 = vmatmul.f32.gmra.mxu0 %v2396
      %v3251 = vpop.f32.mrf.mxu0
      %v3252 = vadd.f32 %v3043, %v3251
      %3253 = vmatmul.f32.gmra.mxu0 %v2398
      %v3254 = vpop.f32.mrf.mxu0
      %v3255 = vadd.f32 %v3046, %v3254
      %3256 = vmatmul.f32.gmra.mxu0 %v2400
      %v3257 = vpop.f32.mrf.mxu0
      %v3258 = vadd.f32 %v3049, %v3257
      %3259 = vmatmul.f32.gmra.mxu0 %v2402
      %v3260 = vpop.f32.mrf.mxu0
      %v3261 = vadd.f32 %v3052, %v3260
      %3262 = vmatmul.f32.gmra.mxu0 %v2404
      %v3263 = vpop.f32.mrf.mxu0
      %v3264 = vadd.f32 %v3055, %v3263
      %3265 = vmatmul.f32.gmra.mxu0 %v2406
      %v3266 = vpop.f32.mrf.mxu0
      %v3267 = vadd.f32 %v3058, %v3266
      %3268 = vmatmul.f32.gmra.mxu0 %v2408
      %v3269 = vpop.f32.mrf.mxu0
      %v3270 = vadd.f32 %v3061, %v3269
      %3271 = vmatmul.f32.gmra.mxu0 %v2410
      %v3272 = vpop.f32.mrf.mxu0
      %v3273 = vadd.f32 %v3064, %v3272
      %3274 = vmatmul.f32.gmra.mxu0 %v2412
      %v3275 = vpop.f32.mrf.mxu0
      %v3276 = vadd.f32 %v3067, %v3275
      %3277 = vmatmul.f32.gmra.mxu0 %v2414
      %v3278 = vpop.f32.mrf.mxu0
      %v3279 = vadd.f32 %v3070, %v3278
      %3280 = vmatmul.f32.gmra.mxu0 %v2416
      %v3281 = vpop.f32.mrf.mxu0
      %v3282 = vadd.f32 %v3073, %v3281
      %3283 = vmatmul.f32.gmra.mxu0 %v2418
      %v3284 = vpop.f32.mrf.mxu0
      %v3285 = vadd.f32 %v3076, %v3284
      %3286 = vmatmul.f32.gmra.mxu0 %v2420
      %v3287 = vpop.f32.mrf.mxu0
      %v3288 = vadd.f32 %v3079, %v3287
      %3289 = vmatmul.f32.gmra.mxu0 %v2422
      %v3290 = vpop.f32.mrf.mxu0
      %v3291 = vadd.f32 %v3082, %v3290
      %3292 = vmatmul.f32.gmra.mxu0 %v2424
      %v3293 = vpop.f32.mrf.mxu0
      %v3294 = vadd.f32 %v3085, %v3293
      %3295 = vmatmul.f32.gmra.mxu0 %v2426
      %v3296 = vpop.f32.mrf.mxu0
      %v3297 = vadd.f32 %v3088, %v3296
      %3298 = vmatmul.f32.gmra.mxu0 %v2428
      %v3299 = vpop.f32.mrf.mxu0
      %v3300 = vadd.f32 %v3091, %v3299
      %3301 = vmatmul.f32.gmra.mxu0 %v2430
      %v3302 = vpop.f32.mrf.mxu0
      %v3303 = vadd.f32 %v3094, %v3302
      %3304 = vmatmul.f32.gmra.mxu0 %v2432
      %v3305 = vpop.f32.mrf.mxu0
      %v3306 = vadd.f32 %v3097, %v3305
      %3307 = vmatmul.f32.gmra.mxu0 %v2434
      %v3308 = vpop.f32.mrf.mxu0
      %v3309 = vadd.f32 %v3100, %v3308
      %3310 = vmatmul.f32.gmra.mxu0 %v2436
      %v3311 = vpop.f32.mrf.mxu0
      %v3312 = vadd.f32 %v3103, %v3311
      %3313 = vmatmul.f32.gmra.mxu0 %v2438
      %v3314 = vpop.f32.mrf.mxu0
      %v3315 = vadd.f32 %v3106, %v3314
      %3316 = vmatmul.f32.gmra.mxu0 %v2440
      %v3317 = vpop.f32.mrf.mxu0
      %v3318 = vadd.f32 %v3109, %v3317
      %3319 = vmatmul.f32.gmra.mxu0 %v2442
      %v3320 = vpop.f32.mrf.mxu0
      %v3321 = vadd.f32 %v3112, %v3320
      %3322 = vmatmul.f32.gmra.mxu0 %v2444
      %v3323 = vpop.f32.mrf.mxu0
      %v3324 = vadd.f32 %v3115, %v3323
      %3325 = vmatmul.f32.gmra.mxu0 %v2446
      %v3326 = vpop.f32.mrf.mxu0
      %v3327 = vadd.f32 %v3118, %v3326
      %3328 = vmatmul.f32.gmra.mxu0 %v2448
      %v3329 = vpop.f32.mrf.mxu0
      %v3330 = vadd.f32 %v3121, %v3329
      %3331 = vmatmul.f32.gmra.mxu0 %v2918
      %v3332 = vpop.f32.mrf.mxu0
      %v3333 = vadd.f32 %v3124, %v3332
      %3334 = vmatmul.f32.gmra.mxu0 %v2920
      %v3335 = vpop.f32.mrf.mxu0
      %v3336 = vadd.f32 %v3127, %v3335
      %3337 = vmatmul.f32.gmra.mxu0 %v2922
      %v3338 = vpop.f32.mrf.mxu0
      %v3339 = vadd.f32 %v3130, %v3338
      %3340 = vmatmul.f32.gmra.mxu0 %v2924
      %v3341 = vpop.f32.mrf.mxu0
      %v3342 = vadd.f32 %v3133, %v3341
      %3343 = vdwg.mxu0
      %s3344 = scalar_lea.vmem %s255, 640
      %v3345 = vld [vmem:[%s3344] sm:$0xff]
      %v3346 = vld [vmem:[%s3344 + $0x8] sm:$0xff]
      %v3347 = vld [vmem:[%s3344 + $0x10] sm:$0xff]
      %v3348 = vld [vmem:[%s3344 + $0x18] sm:$0xff]
      %v3349 = vld [vmem:[%s3344 + $0x20] sm:$0xff]
      %v3350 = vld [vmem:[%s3344 + $0x28] sm:$0xff]
      %v3351 = vld [vmem:[%s3344 + $0x30] sm:$0xff]
      %v3352 = vld [vmem:[%s3344 + $0x38] sm:$0xff]
      %v3353 = vld [vmem:[%s3344 + $0x40] sm:$0xff]
      %v3354 = vld [vmem:[%s3344 + $0x48] sm:$0xff]
      %v3355 = vld [vmem:[%s3344 + $0x50] sm:$0xff]
      %v3356 = vld [vmem:[%s3344 + $0x58] sm:$0xff]
      %v3357 = vld [vmem:[%s3344 + $0x60] sm:$0xff]
      %v3358 = vld [vmem:[%s3344 + $0x68] sm:$0xff]
      %v3359 = vld [vmem:[%s3344 + $0x70] sm:$0xff]
      %v3360 = vld [vmem:[%s3344 + $0x78] sm:$0xff]
      %v3361 = vld [vmem:[%s3344 + $0x80] sm:$0xff]
      %v3362 = vld [vmem:[%s3344 + $0x88] sm:$0xff]
      %v3363 = vld [vmem:[%s3344 + $0x90] sm:$0xff]
      %v3364 = vld [vmem:[%s3344 + $0x98] sm:$0xff]
      %v3365 = vsel %vm2038, %v1935, 0
      %v3367 = vsel %vm2038, %v1937, 0
      %v3369 = vsel %vm2038, %v2035, 0
      %v3371 = vsel %vm2038, %v2037, 0
      %3373 = vmatpush.msra.mxu0 %v3360
      %3374 = vmatpush.msra.mxu0 %v3359
      %3375 = vmatpush.msra.mxu0 %v3358
      %3376 = vmatpush.msra.mxu0 %v3357
      %3377 = vmatpush.msra.mxu0 %v3356
      %3378 = vmatpush.msra.mxu0 %v3355
      %3379 = vmatpush.msra.mxu0 %v3354
      %3380 = vmatpush.msra.mxu0 %v3353
      %3381 = vmatpush.msra.mxu0 %v3352
      %3382 = vmatpush.msra.mxu0 %v3351
      %3383 = vmatpush.msra.mxu0 %v3350
      %3384 = vmatpush.msra.mxu0 %v3349
      %3385 = vmatpush.msra.mxu0 %v3348
      %3386 = vmatpush.msra.mxu0 %v3347
      %3387 = vmatpush.msra.mxu0 %v3346
      %3388 = vmatpush.msra.mxu0 %v3345
      %3389 = vmatmul.f32.gmra.mxu0 %v2209
      %v3390 = vpop.f32.mrf.mxu0
      %v3391 = vadd.f32 0.0, %v3390
      %3392 = vmatmul.f32.gmra.mxu0 %v2210
      %v3393 = vpop.f32.mrf.mxu0
      %v3394 = vadd.f32 0.0, %v3393
      %3395 = vmatmul.f32.gmra.mxu0 %v2211
      %v3396 = vpop.f32.mrf.mxu0
      %v3397 = vadd.f32 0.0, %v3396
      %3398 = vmatmul.f32.gmra.mxu0 %v2212
      %v3399 = vpop.f32.mrf.mxu0
      %v3400 = vadd.f32 0.0, %v3399
      %3401 = vmatmul.f32.gmra.mxu0 %v2213
      %v3402 = vpop.f32.mrf.mxu0
      %v3403 = vadd.f32 0.0, %v3402
      %3404 = vmatmul.f32.gmra.mxu0 %v2214
      %v3405 = vpop.f32.mrf.mxu0
      %v3406 = vadd.f32 0.0, %v3405
      %3407 = vmatmul.f32.gmra.mxu0 %v2215
      %v3408 = vpop.f32.mrf.mxu0
      %v3409 = vadd.f32 0.0, %v3408
      %3410 = vmatmul.f32.gmra.mxu0 %v2216
      %v3411 = vpop.f32.mrf.mxu0
      %v3412 = vadd.f32 0.0, %v3411
      %3413 = vmatmul.f32.gmra.mxu0 %v2217
      %v3414 = vpop.f32.mrf.mxu0
      %v3415 = vadd.f32 0.0, %v3414
      %3416 = vmatmul.f32.gmra.mxu0 %v2218
      %v3417 = vpop.f32.mrf.mxu0
      %v3418 = vadd.f32 0.0, %v3417
      %3419 = vmatmul.f32.gmra.mxu0 %v2219
      %v3420 = vpop.f32.mrf.mxu0
      %v3421 = vadd.f32 0.0, %v3420
      %3422 = vmatmul.f32.gmra.mxu0 %v2220
      %v3423 = vpop.f32.mrf.mxu0
      %v3424 = vadd.f32 0.0, %v3423
      %3425 = vmatmul.f32.gmra.mxu0 %v2221
      %v3426 = vpop.f32.mrf.mxu0
      %v3427 = vadd.f32 0.0, %v3426
      %3428 = vmatmul.f32.gmra.mxu0 %v2222
      %v3429 = vpop.f32.mrf.mxu0
      %v3430 = vadd.f32 0.0, %v3429
      %3431 = vmatmul.f32.gmra.mxu0 %v2223
      %v3432 = vpop.f32.mrf.mxu0
      %v3433 = vadd.f32 0.0, %v3432
      %3434 = vmatmul.f32.gmra.mxu0 %v2224
      %v3435 = vpop.f32.mrf.mxu0
      %v3436 = vadd.f32 0.0, %v3435
      %3437 = vmatmul.f32.gmra.mxu0 %v2225
      %v3438 = vpop.f32.mrf.mxu0
      %v3439 = vadd.f32 0.0, %v3438
      %3440 = vmatmul.f32.gmra.mxu0 %v2226
      %v3441 = vpop.f32.mrf.mxu0
      %v3442 = vadd.f32 0.0, %v3441
      %3443 = vmatmul.f32.gmra.mxu0 %v2227
      %v3444 = vpop.f32.mrf.mxu0
      %v3445 = vadd.f32 0.0, %v3444
      %3446 = vmatmul.f32.gmra.mxu0 %v2228
      %v3447 = vpop.f32.mrf.mxu0
      %v3448 = vadd.f32 0.0, %v3447
      %3449 = vmatmul.f32.gmra.mxu0 %v2229
      %v3450 = vpop.f32.mrf.mxu0
      %v3451 = vadd.f32 0.0, %v3450
      %3452 = vmatmul.f32.gmra.mxu0 %v2230
      %v3453 = vpop.f32.mrf.mxu0
      %v3454 = vadd.f32 0.0, %v3453
      %3455 = vmatmul.f32.gmra.mxu0 %v2231
      %v3456 = vpop.f32.mrf.mxu0
      %v3457 = vadd.f32 0.0, %v3456
      %3458 = vmatmul.f32.gmra.mxu0 %v2232
      %v3459 = vpop.f32.mrf.mxu0
      %v3460 = vadd.f32 0.0, %v3459
      %3461 = vmatmul.f32.gmra.mxu0 %v2233
      %v3462 = vpop.f32.mrf.mxu0
      %v3463 = vadd.f32 0.0, %v3462
      %3464 = vmatmul.f32.gmra.mxu0 %v2234
      %v3465 = vpop.f32.mrf.mxu0
      %v3466 = vadd.f32 0.0, %v3465
      %3467 = vmatmul.f32.gmra.mxu0 %v2235
      %v3468 = vpop.f32.mrf.mxu0
      %v3469 = vadd.f32 0.0, %v3468
      %3470 = vmatmul.f32.gmra.mxu0 %v2236
      %v3471 = vpop.f32.mrf.mxu0
      %v3472 = vadd.f32 0.0, %v3471
      %3473 = vmatmul.f32.gmra.mxu0 %v2237
      %v3474 = vpop.f32.mrf.mxu0
      %v3475 = vadd.f32 0.0, %v3474
      %3476 = vmatmul.f32.gmra.mxu0 %v2238
      %v3477 = vpop.f32.mrf.mxu0
      %v3478 = vadd.f32 0.0, %v3477
      %3479 = vmatmul.f32.gmra.mxu0 %v2239
      %v3480 = vpop.f32.mrf.mxu0
      %v3481 = vadd.f32 0.0, %v3480
      %3482 = vmatmul.f32.gmra.mxu0 %v2240
      %v3483 = vpop.f32.mrf.mxu0
      %v3484 = vadd.f32 0.0, %v3483
      %3485 = vmatmul.f32.gmra.mxu0 %v2249
      %v3486 = vpop.f32.mrf.mxu0
      %v3487 = vadd.f32 0.0, %v3486
      %3488 = vmatmul.f32.gmra.mxu0 %v2250
      %v3489 = vpop.f32.mrf.mxu0
      %v3490 = vadd.f32 0.0, %v3489
      %3491 = vmatmul.f32.gmra.mxu0 %v2251
      %v3492 = vpop.f32.mrf.mxu0
      %v3493 = vadd.f32 0.0, %v3492
      %3494 = vmatmul.f32.gmra.mxu0 %v2252
      %v3495 = vpop.f32.mrf.mxu0
      %v3496 = vadd.f32 0.0, %v3495
      %3497 = vmatmul.f32.gmra.mxu0 %v2253
      %v3498 = vpop.f32.mrf.mxu0
      %v3499 = vadd.f32 0.0, %v3498
      %3500 = vmatmul.f32.gmra.mxu0 %v2254
      %v3501 = vpop.f32.mrf.mxu0
      %v3502 = vadd.f32 0.0, %v3501
      %3503 = vmatmul.f32.gmra.mxu0 %v2255
      %v3504 = vpop.f32.mrf.mxu0
      %v3505 = vadd.f32 0.0, %v3504
      %3506 = vmatmul.f32.gmra.mxu0 %v2256
      %v3507 = vpop.f32.mrf.mxu0
      %v3508 = vadd.f32 0.0, %v3507
      %3509 = vmatmul.f32.gmra.mxu0 %v2257
      %v3510 = vpop.f32.mrf.mxu0
      %v3511 = vadd.f32 0.0, %v3510
      %3512 = vmatmul.f32.gmra.mxu0 %v2258
      %v3513 = vpop.f32.mrf.mxu0
      %v3514 = vadd.f32 0.0, %v3513
      %3515 = vmatmul.f32.gmra.mxu0 %v2259
      %v3516 = vpop.f32.mrf.mxu0
      %v3517 = vadd.f32 0.0, %v3516
      %3518 = vmatmul.f32.gmra.mxu0 %v2260
      %v3519 = vpop.f32.mrf.mxu0
      %v3520 = vadd.f32 0.0, %v3519
      %3521 = vmatmul.f32.gmra.mxu0 %v2261
      %v3522 = vpop.f32.mrf.mxu0
      %v3523 = vadd.f32 0.0, %v3522
      %3524 = vmatmul.f32.gmra.mxu0 %v2262
      %v3525 = vpop.f32.mrf.mxu0
      %v3526 = vadd.f32 0.0, %v3525
      %3527 = vmatmul.f32.gmra.mxu0 %v2263
      %v3528 = vpop.f32.mrf.mxu0
      %v3529 = vadd.f32 0.0, %v3528
      %3530 = vmatmul.f32.gmra.mxu0 %v2264
      %v3531 = vpop.f32.mrf.mxu0
      %v3532 = vadd.f32 0.0, %v3531
      %3533 = vmatmul.f32.gmra.mxu0 %v2265
      %v3534 = vpop.f32.mrf.mxu0
      %v3535 = vadd.f32 0.0, %v3534
      %3536 = vmatmul.f32.gmra.mxu0 %v2266
      %v3537 = vpop.f32.mrf.mxu0
      %v3538 = vadd.f32 0.0, %v3537
      %3539 = vmatmul.f32.gmra.mxu0 %v2267
      %v3540 = vpop.f32.mrf.mxu0
      %v3541 = vadd.f32 0.0, %v3540
      %3542 = vmatmul.f32.gmra.mxu0 %v2268
      %v3543 = vpop.f32.mrf.mxu0
      %v3544 = vadd.f32 0.0, %v3543
      %3545 = vmatmul.f32.gmra.mxu0 %v2269
      %v3546 = vpop.f32.mrf.mxu0
      %v3547 = vadd.f32 0.0, %v3546
      %3548 = vmatmul.f32.gmra.mxu0 %v2270
      %v3549 = vpop.f32.mrf.mxu0
      %v3550 = vadd.f32 0.0, %v3549
      %3551 = vmatmul.f32.gmra.mxu0 %v2271
      %v3552 = vpop.f32.mrf.mxu0
      %v3553 = vadd.f32 0.0, %v3552
      %3554 = vmatmul.f32.gmra.mxu0 %v2272
      %v3555 = vpop.f32.mrf.mxu0
      %v3556 = vadd.f32 0.0, %v3555
      %3557 = vmatmul.f32.gmra.mxu0 %v2273
      %v3558 = vpop.f32.mrf.mxu0
      %v3559 = vadd.f32 0.0, %v3558
      %3560 = vmatmul.f32.gmra.mxu0 %v2274
      %v3561 = vpop.f32.mrf.mxu0
      %v3562 = vadd.f32 0.0, %v3561
      %3563 = vmatmul.f32.gmra.mxu0 %v2275
      %v3564 = vpop.f32.mrf.mxu0
      %v3565 = vadd.f32 0.0, %v3564
      %3566 = vmatmul.f32.gmra.mxu0 %v2276
      %v3567 = vpop.f32.mrf.mxu0
      %v3568 = vadd.f32 0.0, %v3567
      %3569 = vmatmul.f32.gmra.mxu0 %v2277
      %v3570 = vpop.f32.mrf.mxu0
      %v3571 = vadd.f32 0.0, %v3570
      %3572 = vmatmul.f32.gmra.mxu0 %v2278
      %v3573 = vpop.f32.mrf.mxu0
      %v3574 = vadd.f32 0.0, %v3573
      %3575 = vmatmul.f32.gmra.mxu0 %v2279
      %v3576 = vpop.f32.mrf.mxu0
      %v3577 = vadd.f32 0.0, %v3576
      %3578 = vmatmul.f32.gmra.mxu0 %v2280
      %v3579 = vpop.f32.mrf.mxu0
      %v3580 = vadd.f32 0.0, %v3579
      %3581 = vdwg.mxu0
      %3582 = vmatpush.msra.mxu0 0.0
      %3583 = vmatpush.msra.mxu0 0.0
      %3584 = vmatpush.msra.mxu0 0.0
      %3585 = vmatpush.msra.mxu0 0.0
      %3586 = vmatpush.msra.mxu0 0.0
      %3587 = vmatpush.msra.mxu0 0.0
      %3588 = vmatpush.msra.mxu0 0.0
      %3589 = vmatpush.msra.mxu0 0.0
      %3590 = vmatpush.msra.mxu0 0.0
      %3591 = vmatpush.msra.mxu0 0.0
      %3592 = vmatpush.msra.mxu0 0.0
      %3593 = vmatpush.msra.mxu0 0.0
      %3594 = vmatpush.msra.mxu0 %v3364
      %3595 = vmatpush.msra.mxu0 %v3363
      %3596 = vmatpush.msra.mxu0 %v3362
      %3597 = vmatpush.msra.mxu0 %v3361
      %3598 = vmatmul.f32.gmra.mxu0 %v2334
      %v3599 = vpop.f32.mrf.mxu0
      %v3600 = vadd.f32 %v3391, %v3599
      %3601 = vmatmul.f32.gmra.mxu0 %v2336
      %v3602 = vpop.f32.mrf.mxu0
      %v3603 = vadd.f32 %v3394, %v3602
      %3604 = vmatmul.f32.gmra.mxu0 %v2338
      %v3605 = vpop.f32.mrf.mxu0
      %v3606 = vadd.f32 %v3397, %v3605
      %3607 = vmatmul.f32.gmra.mxu0 %v2340
      %v3608 = vpop.f32.mrf.mxu0
      %v3609 = vadd.f32 %v3400, %v3608
      %3610 = vmatmul.f32.gmra.mxu0 %v2342
      %v3611 = vpop.f32.mrf.mxu0
      %v3612 = vadd.f32 %v3403, %v3611
      %3613 = vmatmul.f32.gmra.mxu0 %v2344
      %v3614 = vpop.f32.mrf.mxu0
      %v3615 = vadd.f32 %v3406, %v3614
      %3616 = vmatmul.f32.gmra.mxu0 %v2346
      %v3617 = vpop.f32.mrf.mxu0
      %v3618 = vadd.f32 %v3409, %v3617
      %3619 = vmatmul.f32.gmra.mxu0 %v2348
      %v3620 = vpop.f32.mrf.mxu0
      %v3621 = vadd.f32 %v3412, %v3620
      %3622 = vmatmul.f32.gmra.mxu0 %v2350
      %v3623 = vpop.f32.mrf.mxu0
      %v3624 = vadd.f32 %v3415, %v3623
      %3625 = vmatmul.f32.gmra.mxu0 %v2352
      %v3626 = vpop.f32.mrf.mxu0
      %v3627 = vadd.f32 %v3418, %v3626
      %3628 = vmatmul.f32.gmra.mxu0 %v2354
      %v3629 = vpop.f32.mrf.mxu0
      %v3630 = vadd.f32 %v3421, %v3629
      %3631 = vmatmul.f32.gmra.mxu0 %v2356
      %v3632 = vpop.f32.mrf.mxu0
      %v3633 = vadd.f32 %v3424, %v3632
      %3634 = vmatmul.f32.gmra.mxu0 %v2358
      %v3635 = vpop.f32.mrf.mxu0
      %v3636 = vadd.f32 %v3427, %v3635
      %3637 = vmatmul.f32.gmra.mxu0 %v2360
      %v3638 = vpop.f32.mrf.mxu0
      %v3639 = vadd.f32 %v3430, %v3638
      %3640 = vmatmul.f32.gmra.mxu0 %v2362
      %v3641 = vpop.f32.mrf.mxu0
      %v3642 = vadd.f32 %v3433, %v3641
      %3643 = vmatmul.f32.gmra.mxu0 %v2364
      %v3644 = vpop.f32.mrf.mxu0
      %v3645 = vadd.f32 %v3436, %v3644
      %3646 = vmatmul.f32.gmra.mxu0 %v2366
      %v3647 = vpop.f32.mrf.mxu0
      %v3648 = vadd.f32 %v3439, %v3647
      %3649 = vmatmul.f32.gmra.mxu0 %v2368
      %v3650 = vpop.f32.mrf.mxu0
      %v3651 = vadd.f32 %v3442, %v3650
      %3652 = vmatmul.f32.gmra.mxu0 %v2370
      %v3653 = vpop.f32.mrf.mxu0
      %v3654 = vadd.f32 %v3445, %v3653
      %3655 = vmatmul.f32.gmra.mxu0 %v2372
      %v3656 = vpop.f32.mrf.mxu0
      %v3657 = vadd.f32 %v3448, %v3656
      %3658 = vmatmul.f32.gmra.mxu0 %v2374
      %v3659 = vpop.f32.mrf.mxu0
      %v3660 = vadd.f32 %v3451, %v3659
      %3661 = vmatmul.f32.gmra.mxu0 %v2376
      %v3662 = vpop.f32.mrf.mxu0
      %v3663 = vadd.f32 %v3454, %v3662
      %3664 = vmatmul.f32.gmra.mxu0 %v2378
      %v3665 = vpop.f32.mrf.mxu0
      %v3666 = vadd.f32 %v3457, %v3665
      %3667 = vmatmul.f32.gmra.mxu0 %v2380
      %v3668 = vpop.f32.mrf.mxu0
      %v3669 = vadd.f32 %v3460, %v3668
      %3670 = vmatmul.f32.gmra.mxu0 %v2382
      %v3671 = vpop.f32.mrf.mxu0
      %v3672 = vadd.f32 %v3463, %v3671
      %3673 = vmatmul.f32.gmra.mxu0 %v2384
      %v3674 = vpop.f32.mrf.mxu0
      %v3675 = vadd.f32 %v3466, %v3674
      %3676 = vmatmul.f32.gmra.mxu0 %v2910
      %v3677 = vpop.f32.mrf.mxu0
      %v3678 = vadd.f32 %v3469, %v3677
      %3679 = vmatmul.f32.gmra.mxu0 %v2912
      %v3680 = vpop.f32.mrf.mxu0
      %v3681 = vadd.f32 %v3472, %v3680
      %3682 = vmatmul.f32.gmra.mxu0 %v2914
      %v3683 = vpop.f32.mrf.mxu0
      %v3684 = vadd.f32 %v3475, %v3683
      %3685 = vmatmul.f32.gmra.mxu0 %v2916
      %v3686 = vpop.f32.mrf.mxu0
      %v3687 = vadd.f32 %v3478, %v3686
      %3688 = vmatmul.f32.gmra.mxu0 %v3365
      %v3689 = vpop.f32.mrf.mxu0
      %v3690 = vadd.f32 %v3481, %v3689
      %3691 = vmatmul.f32.gmra.mxu0 %v3367
      %v3692 = vpop.f32.mrf.mxu0
      %v3693 = vadd.f32 %v3484, %v3692
      %3694 = vmatmul.f32.gmra.mxu0 %v2398
      %v3695 = vpop.f32.mrf.mxu0
      %v3696 = vadd.f32 %v3487, %v3695
      %3697 = vmatmul.f32.gmra.mxu0 %v2400
      %v3698 = vpop.f32.mrf.mxu0
      %v3699 = vadd.f32 %v3490, %v3698
      %3700 = vmatmul.f32.gmra.mxu0 %v2402
      %v3701 = vpop.f32.mrf.mxu0
      %v3702 = vadd.f32 %v3493, %v3701
      %3703 = vmatmul.f32.gmra.mxu0 %v2404
      %v3704 = vpop.f32.mrf.mxu0
      %v3705 = vadd.f32 %v3496, %v3704
      %3706 = vmatmul.f32.gmra.mxu0 %v2406
      %v3707 = vpop.f32.mrf.mxu0
      %v3708 = vadd.f32 %v3499, %v3707
      %3709 = vmatmul.f32.gmra.mxu0 %v2408
      %v3710 = vpop.f32.mrf.mxu0
      %v3711 = vadd.f32 %v3502, %v3710
      %3712 = vmatmul.f32.gmra.mxu0 %v2410
      %v3713 = vpop.f32.mrf.mxu0
      %v3714 = vadd.f32 %v3505, %v3713
      %3715 = vmatmul.f32.gmra.mxu0 %v2412
      %v3716 = vpop.f32.mrf.mxu0
      %v3717 = vadd.f32 %v3508, %v3716
      %3718 = vmatmul.f32.gmra.mxu0 %v2414
      %v3719 = vpop.f32.mrf.mxu0
      %v3720 = vadd.f32 %v3511, %v3719
      %3721 = vmatmul.f32.gmra.mxu0 %v2416
      %v3722 = vpop.f32.mrf.mxu0
      %v3723 = vadd.f32 %v3514, %v3722
      %3724 = vmatmul.f32.gmra.mxu0 %v2418
      %v3725 = vpop.f32.mrf.mxu0
      %v3726 = vadd.f32 %v3517, %v3725
      %3727 = vmatmul.f32.gmra.mxu0 %v2420
      %v3728 = vpop.f32.mrf.mxu0
      %v3729 = vadd.f32 %v3520, %v3728
      %3730 = vmatmul.f32.gmra.mxu0 %v2422
      %v3731 = vpop.f32.mrf.mxu0
      %v3732 = vadd.f32 %v3523, %v3731
      %3733 = vmatmul.f32.gmra.mxu0 %v2424
      %v3734 = vpop.f32.mrf.mxu0
      %v3735 = vadd.f32 %v3526, %v3734
      %3736 = vmatmul.f32.gmra.mxu0 %v2426
      %v3737 = vpop.f32.mrf.mxu0
      %v3738 = vadd.f32 %v3529, %v3737
      %3739 = vmatmul.f32.gmra.mxu0 %v2428
      %v3740 = vpop.f32.mrf.mxu0
      %v3741 = vadd.f32 %v3532, %v3740
      %3742 = vmatmul.f32.gmra.mxu0 %v2430
      %v3743 = vpop.f32.mrf.mxu0
      %v3744 = vadd.f32 %v3535, %v3743
      %3745 = vmatmul.f32.gmra.mxu0 %v2432
      %v3746 = vpop.f32.mrf.mxu0
      %v3747 = vadd.f32 %v3538, %v3746
      %3748 = vmatmul.f32.gmra.mxu0 %v2434
      %v3749 = vpop.f32.mrf.mxu0
      %v3750 = vadd.f32 %v3541, %v3749
      %3751 = vmatmul.f32.gmra.mxu0 %v2436
      %v3752 = vpop.f32.mrf.mxu0
      %v3753 = vadd.f32 %v3544, %v3752
      %3754 = vmatmul.f32.gmra.mxu0 %v2438
      %v3755 = vpop.f32.mrf.mxu0
      %v3756 = vadd.f32 %v3547, %v3755
      %3757 = vmatmul.f32.gmra.mxu0 %v2440
      %v3758 = vpop.f32.mrf.mxu0
      %v3759 = vadd.f32 %v3550, %v3758
      %3760 = vmatmul.f32.gmra.mxu0 %v2442
      %v3761 = vpop.f32.mrf.mxu0
      %v3762 = vadd.f32 %v3553, %v3761
      %3763 = vmatmul.f32.gmra.mxu0 %v2444
      %v3764 = vpop.f32.mrf.mxu0
      %v3765 = vadd.f32 %v3556, %v3764
      %3766 = vmatmul.f32.gmra.mxu0 %v2446
      %v3767 = vpop.f32.mrf.mxu0
      %v3768 = vadd.f32 %v3559, %v3767
      %3769 = vmatmul.f32.gmra.mxu0 %v2448
      %v3770 = vpop.f32.mrf.mxu0
      %v3771 = vadd.f32 %v3562, %v3770
      %3772 = vmatmul.f32.gmra.mxu0 %v2918
      %v3773 = vpop.f32.mrf.mxu0
      %v3774 = vadd.f32 %v3565, %v3773
      %3775 = vmatmul.f32.gmra.mxu0 %v2920
      %v3776 = vpop.f32.mrf.mxu0
      %v3777 = vadd.f32 %v3568, %v3776
      %3778 = vmatmul.f32.gmra.mxu0 %v2922
      %v3779 = vpop.f32.mrf.mxu0
      %v3780 = vadd.f32 %v3571, %v3779
      %3781 = vmatmul.f32.gmra.mxu0 %v2924
      %v3782 = vpop.f32.mrf.mxu0
      %v3783 = vadd.f32 %v3574, %v3782
      %3784 = vmatmul.f32.gmra.mxu0 %v3369
      %v3785 = vpop.f32.mrf.mxu0
      %v3786 = vadd.f32 %v3577, %v3785
      %3787 = vmatmul.f32.gmra.mxu0 %v3371
      %v3788 = vpop.f32.mrf.mxu0
      %v3789 = vadd.f32 %v3580, %v3788
      %3790 = vdwg.mxu0
      %v3791 = vsel %vm2038, %v1840, 0
      %v3793 = vsel %vm2038, %v1842, 0
      %v3795 = vsel %vm2038, %v1940, 0
      %v3797 = vsel %vm2038, %v1942, 0
      %3799 = vmatpush.msra.mxu0 %v2296
      %3800 = vmatpush.msra.mxu0 %v2295
      %3801 = vmatpush.msra.mxu0 %v2294
      %3802 = vmatpush.msra.mxu0 %v2293
      %3803 = vmatpush.msra.mxu0 %v2292
      %3804 = vmatpush.msra.mxu0 %v2291
      %3805 = vmatpush.msra.mxu0 %v2290
      %3806 = vmatpush.msra.mxu0 %v2289
      %3807 = vmatpush.msra.mxu0 %v2288
      %3808 = vmatpush.msra.mxu0 %v2287
      %3809 = vmatpush.msra.mxu0 %v2286
      %3810 = vmatpush.msra.mxu0 %v2285
      %3811 = vmatpush.msra.mxu0 %v2284
      %3812 = vmatpush.msra.mxu0 %v2283
      %3813 = vmatpush.msra.mxu0 %v2282
      %3814 = vmatpush.msra.mxu0 %v2281
      %3815 = vmatmul.f32.gmra.mxu0 %v2201
      %v3816 = vpop.f32.mrf.mxu0
      %v3817 = vadd.f32 %v2677, %v3816
      %3818 = vmatmul.f32.gmra.mxu0 %v2202
      %v3819 = vpop.f32.mrf.mxu0
      %v3820 = vadd.f32 %v2680, %v3819
      %3821 = vmatmul.f32.gmra.mxu0 %v2203
      %v3822 = vpop.f32.mrf.mxu0
      %v3823 = vadd.f32 %v2683, %v3822
      %3824 = vmatmul.f32.gmra.mxu0 %v2204
      %v3825 = vpop.f32.mrf.mxu0
      %v3826 = vadd.f32 %v2686, %v3825
      %3827 = vmatmul.f32.gmra.mxu0 %v2205
      %v3828 = vpop.f32.mrf.mxu0
      %v3829 = vadd.f32 %v2689, %v3828
      %3830 = vmatmul.f32.gmra.mxu0 %v2206
      %v3831 = vpop.f32.mrf.mxu0
      %v3832 = vadd.f32 %v2692, %v3831
      %3833 = vmatmul.f32.gmra.mxu0 %v2207
      %v3834 = vpop.f32.mrf.mxu0
      %v3835 = vadd.f32 %v2695, %v3834
      %3836 = vmatmul.f32.gmra.mxu0 %v2208
      %v3837 = vpop.f32.mrf.mxu0
      %v3838 = vadd.f32 %v2698, %v3837
      %3839 = vmatmul.f32.gmra.mxu0 %v2209
      %v3840 = vpop.f32.mrf.mxu0
      %v3841 = vadd.f32 %v2701, %v3840
      %3842 = vmatmul.f32.gmra.mxu0 %v2210
      %v3843 = vpop.f32.mrf.mxu0
      %v3844 = vadd.f32 %v2704, %v3843
      %3845 = vmatmul.f32.gmra.mxu0 %v2211
      %v3846 = vpop.f32.mrf.mxu0
      %v3847 = vadd.f32 %v2707, %v3846
      %3848 = vmatmul.f32.gmra.mxu0 %v2212
      %v3849 = vpop.f32.mrf.mxu0
      %v3850 = vadd.f32 %v2710, %v3849
      %3851 = vmatmul.f32.gmra.mxu0 %v2213
      %v3852 = vpop.f32.mrf.mxu0
      %v3853 = vadd.f32 %v2713, %v3852
      %3854 = vmatmul.f32.gmra.mxu0 %v2214
      %v3855 = vpop.f32.mrf.mxu0
      %v3856 = vadd.f32 %v2716, %v3855
      %3857 = vmatmul.f32.gmra.mxu0 %v2215
      %v3858 = vpop.f32.mrf.mxu0
      %v3859 = vadd.f32 %v2719, %v3858
      %3860 = vmatmul.f32.gmra.mxu0 %v2216
      %v3861 = vpop.f32.mrf.mxu0
      %v3862 = vadd.f32 %v2722, %v3861
      %3863 = vmatmul.f32.gmra.mxu0 %v2217
      %v3864 = vpop.f32.mrf.mxu0
      %v3865 = vadd.f32 %v2725, %v3864
      %3866 = vmatmul.f32.gmra.mxu0 %v2218
      %v3867 = vpop.f32.mrf.mxu0
      %v3868 = vadd.f32 %v2728, %v3867
      %3869 = vmatmul.f32.gmra.mxu0 %v2219
      %v3870 = vpop.f32.mrf.mxu0
      %v3871 = vadd.f32 %v2731, %v3870
      %3872 = vmatmul.f32.gmra.mxu0 %v2220
      %v3873 = vpop.f32.mrf.mxu0
      %v3874 = vadd.f32 %v2734, %v3873
      %3875 = vmatmul.f32.gmra.mxu0 %v2221
      %v3876 = vpop.f32.mrf.mxu0
      %v3877 = vadd.f32 %v2737, %v3876
      %3878 = vmatmul.f32.gmra.mxu0 %v2222
      %v3879 = vpop.f32.mrf.mxu0
      %v3880 = vadd.f32 %v2740, %v3879
      %3881 = vmatmul.f32.gmra.mxu0 %v2223
      %v3882 = vpop.f32.mrf.mxu0
      %v3883 = vadd.f32 %v2743, %v3882
      %3884 = vmatmul.f32.gmra.mxu0 %v2224
      %v3885 = vpop.f32.mrf.mxu0
      %v3886 = vadd.f32 %v2746, %v3885
      %3887 = vmatmul.f32.gmra.mxu0 %v2225
      %v3888 = vpop.f32.mrf.mxu0
      %v3889 = vadd.f32 %v2749, %v3888
      %3890 = vmatmul.f32.gmra.mxu0 %v2226
      %v3891 = vpop.f32.mrf.mxu0
      %v3892 = vadd.f32 %v2752, %v3891
      %3893 = vmatmul.f32.gmra.mxu0 %v2227
      %v3894 = vpop.f32.mrf.mxu0
      %v3895 = vadd.f32 %v2755, %v3894
      %3896 = vmatmul.f32.gmra.mxu0 %v2228
      %v3897 = vpop.f32.mrf.mxu0
      %v3898 = vadd.f32 %v2758, %v3897
      %3899 = vmatmul.f32.gmra.mxu0 %v2229
      %v3900 = vpop.f32.mrf.mxu0
      %v3901 = vadd.f32 %v2761, %v3900
      %3902 = vmatmul.f32.gmra.mxu0 %v2230
      %v3903 = vpop.f32.mrf.mxu0
      %v3904 = vadd.f32 %v2764, %v3903
      %3905 = vmatmul.f32.gmra.mxu0 %v2231
      %v3906 = vpop.f32.mrf.mxu0
      %v3907 = vadd.f32 %v2767, %v3906
      %3908 = vmatmul.f32.gmra.mxu0 %v2232
      %v3909 = vpop.f32.mrf.mxu0
      %v3910 = vadd.f32 %v2770, %v3909
      %3911 = vmatmul.f32.gmra.mxu0 %v2241
      %v3912 = vpop.f32.mrf.mxu0
      %v3913 = vadd.f32 %v2773, %v3912
      %3914 = vmatmul.f32.gmra.mxu0 %v2242
      %v3915 = vpop.f32.mrf.mxu0
      %v3916 = vadd.f32 %v2776, %v3915
      %3917 = vmatmul.f32.gmra.mxu0 %v2243
      %v3918 = vpop.f32.mrf.mxu0
      %v3919 = vadd.f32 %v2779, %v3918
      %3920 = vmatmul.f32.gmra.mxu0 %v2244
      %v3921 = vpop.f32.mrf.mxu0
      %v3922 = vadd.f32 %v2782, %v3921
      %3923 = vmatmul.f32.gmra.mxu0 %v2245
      %v3924 = vpop.f32.mrf.mxu0
      %v3925 = vadd.f32 %v2785, %v3924
      %3926 = vmatmul.f32.gmra.mxu0 %v2246
      %v3927 = vpop.f32.mrf.mxu0
      %v3928 = vadd.f32 %v2788, %v3927
      %3929 = vmatmul.f32.gmra.mxu0 %v2247
      %v3930 = vpop.f32.mrf.mxu0
      %v3931 = vadd.f32 %v2791, %v3930
      %3932 = vmatmul.f32.gmra.mxu0 %v2248
      %v3933 = vpop.f32.mrf.mxu0
      %v3934 = vadd.f32 %v2794, %v3933
      %3935 = vmatmul.f32.gmra.mxu0 %v2249
      %v3936 = vpop.f32.mrf.mxu0
      %v3937 = vadd.f32 %v2797, %v3936
      %3938 = vmatmul.f32.gmra.mxu0 %v2250
      %v3939 = vpop.f32.mrf.mxu0
      %v3940 = vadd.f32 %v2800, %v3939
      %3941 = vmatmul.f32.gmra.mxu0 %v2251
      %v3942 = vpop.f32.mrf.mxu0
      %v3943 = vadd.f32 %v2803, %v3942
      %3944 = vmatmul.f32.gmra.mxu0 %v2252
      %v3945 = vpop.f32.mrf.mxu0
      %v3946 = vadd.f32 %v2806, %v3945
      %3947 = vmatmul.f32.gmra.mxu0 %v2253
      %v3948 = vpop.f32.mrf.mxu0
      %v3949 = vadd.f32 %v2809, %v3948
      %3950 = vmatmul.f32.gmra.mxu0 %v2254
      %v3951 = vpop.f32.mrf.mxu0
      %v3952 = vadd.f32 %v2812, %v3951
      %3953 = vmatmul.f32.gmra.mxu0 %v2255
      %v3954 = vpop.f32.mrf.mxu0
      %v3955 = vadd.f32 %v2815, %v3954
      %3956 = vmatmul.f32.gmra.mxu0 %v2256
      %v3957 = vpop.f32.mrf.mxu0
      %v3958 = vadd.f32 %v2818, %v3957
      %3959 = vmatmul.f32.gmra.mxu0 %v2257
      %v3960 = vpop.f32.mrf.mxu0
      %v3961 = vadd.f32 %v2821, %v3960
      %3962 = vmatmul.f32.gmra.mxu0 %v2258
      %v3963 = vpop.f32.mrf.mxu0
      %v3964 = vadd.f32 %v2824, %v3963
      %3965 = vmatmul.f32.gmra.mxu0 %v2259
      %v3966 = vpop.f32.mrf.mxu0
      %v3967 = vadd.f32 %v2827, %v3966
      %3968 = vmatmul.f32.gmra.mxu0 %v2260
      %v3969 = vpop.f32.mrf.mxu0
      %v3970 = vadd.f32 %v2830, %v3969
      %3971 = vmatmul.f32.gmra.mxu0 %v2261
      %v3972 = vpop.f32.mrf.mxu0
      %v3973 = vadd.f32 %v2833, %v3972
      %3974 = vmatmul.f32.gmra.mxu0 %v2262
      %v3975 = vpop.f32.mrf.mxu0
      %v3976 = vadd.f32 %v2836, %v3975
      %3977 = vmatmul.f32.gmra.mxu0 %v2263
      %v3978 = vpop.f32.mrf.mxu0
      %v3979 = vadd.f32 %v2839, %v3978
      %3980 = vmatmul.f32.gmra.mxu0 %v2264
      %v3981 = vpop.f32.mrf.mxu0
      %v3982 = vadd.f32 %v2842, %v3981
      %3983 = vmatmul.f32.gmra.mxu0 %v2265
      %v3984 = vpop.f32.mrf.mxu0
      %v3985 = vadd.f32 %v2845, %v3984
      %3986 = vmatmul.f32.gmra.mxu0 %v2266
      %v3987 = vpop.f32.mrf.mxu0
      %v3988 = vadd.f32 %v2848, %v3987
      %3989 = vmatmul.f32.gmra.mxu0 %v2267
      %v3990 = vpop.f32.mrf.mxu0
      %v3991 = vadd.f32 %v2851, %v3990
      %3992 = vmatmul.f32.gmra.mxu0 %v2268
      %v3993 = vpop.f32.mrf.mxu0
      %v3994 = vadd.f32 %v2854, %v3993
      %3995 = vmatmul.f32.gmra.mxu0 %v2269
      %v3996 = vpop.f32.mrf.mxu0
      %v3997 = vadd.f32 %v2857, %v3996
      %3998 = vmatmul.f32.gmra.mxu0 %v2270
      %v3999 = vpop.f32.mrf.mxu0
      %v4000 = vadd.f32 %v2860, %v3999
      %4001 = vmatmul.f32.gmra.mxu0 %v2271
      %v4002 = vpop.f32.mrf.mxu0
      %v4003 = vadd.f32 %v2863, %v4002
      %4004 = vmatmul.f32.gmra.mxu0 %v2272
      %v4005 = vpop.f32.mrf.mxu0
      %v4006 = vadd.f32 %v2866, %v4005
      %4007 = vdwg.mxu0
      %4008 = vmatpush.msra.mxu0 0.0
      %4009 = vmatpush.msra.mxu0 0.0
      %4010 = vmatpush.msra.mxu0 0.0
      %4011 = vmatpush.msra.mxu0 0.0
      %4012 = vmatpush.msra.mxu0 0.0
      %4013 = vmatpush.msra.mxu0 0.0
      %4014 = vmatpush.msra.mxu0 0.0
      %4015 = vmatpush.msra.mxu0 0.0
      %4016 = vmatpush.msra.mxu0 0.0
      %4017 = vmatpush.msra.mxu0 0.0
      %4018 = vmatpush.msra.mxu0 0.0
      %4019 = vmatpush.msra.mxu0 0.0
      %4020 = vmatpush.msra.mxu0 %v2300
      %4021 = vmatpush.msra.mxu0 %v2299
      %4022 = vmatpush.msra.mxu0 %v2298
      %4023 = vmatpush.msra.mxu0 %v2297
      %4024 = vmatmul.f32.gmra.mxu0 %v3791
      %v4025 = vpop.f32.mrf.mxu0
      %v4026 = vadd.f32 %v3817, %v4025
      %4027 = vmatmul.f32.gmra.mxu0 %v3793
      %v4028 = vpop.f32.mrf.mxu0
      %v4029 = vadd.f32 %v3820, %v4028
      %4030 = vmatmul.f32.gmra.mxu0 %v2322
      %v4031 = vpop.f32.mrf.mxu0
      %v4032 = vadd.f32 %v3823, %v4031
      %4033 = vmatmul.f32.gmra.mxu0 %v2324
      %v4034 = vpop.f32.mrf.mxu0
      %v4035 = vadd.f32 %v3826, %v4034
      %4036 = vmatmul.f32.gmra.mxu0 %v2326
      %v4037 = vpop.f32.mrf.mxu0
      %v4038 = vadd.f32 %v3829, %v4037
      %4039 = vmatmul.f32.gmra.mxu0 %v2328
      %v4040 = vpop.f32.mrf.mxu0
      %v4041 = vadd.f32 %v3832, %v4040
      %4042 = vmatmul.f32.gmra.mxu0 %v2330
      %v4043 = vpop.f32.mrf.mxu0
      %v4044 = vadd.f32 %v3835, %v4043
      %4045 = vmatmul.f32.gmra.mxu0 %v2332
      %v4046 = vpop.f32.mrf.mxu0
      %v4047 = vadd.f32 %v3838, %v4046
      %4048 = vmatmul.f32.gmra.mxu0 %v2334
      %v4049 = vpop.f32.mrf.mxu0
      %v4050 = vadd.f32 %v3841, %v4049
      %4051 = vmatmul.f32.gmra.mxu0 %v2336
      %v4052 = vpop.f32.mrf.mxu0
      %v4053 = vadd.f32 %v3844, %v4052
      %4054 = vmatmul.f32.gmra.mxu0 %v2338
      %v4055 = vpop.f32.mrf.mxu0
      %v4056 = vadd.f32 %v3847, %v4055
      %4057 = vmatmul.f32.gmra.mxu0 %v2340
      %v4058 = vpop.f32.mrf.mxu0
      %v4059 = vadd.f32 %v3850, %v4058
      %4060 = vmatmul.f32.gmra.mxu0 %v2342
      %v4061 = vpop.f32.mrf.mxu0
      %v4062 = vadd.f32 %v3853, %v4061
      %4063 = vmatmul.f32.gmra.mxu0 %v2344
      %v4064 = vpop.f32.mrf.mxu0
      %v4065 = vadd.f32 %v3856, %v4064
      %4066 = vmatmul.f32.gmra.mxu0 %v2346
      %v4067 = vpop.f32.mrf.mxu0
      %v4068 = vadd.f32 %v3859, %v4067
      %4069 = vmatmul.f32.gmra.mxu0 %v2348
      %v4070 = vpop.f32.mrf.mxu0
      %v4071 = vadd.f32 %v3862, %v4070
      %4072 = vmatmul.f32.gmra.mxu0 %v2350
      %v4073 = vpop.f32.mrf.mxu0
      %v4074 = vadd.f32 %v3865, %v4073
      %4075 = vmatmul.f32.gmra.mxu0 %v2352
      %v4076 = vpop.f32.mrf.mxu0
      %v4077 = vadd.f32 %v3868, %v4076
      %4078 = vmatmul.f32.gmra.mxu0 %v2354
      %v4079 = vpop.f32.mrf.mxu0
      %v4080 = vadd.f32 %v3871, %v4079
      %4081 = vmatmul.f32.gmra.mxu0 %v2356
      %v4082 = vpop.f32.mrf.mxu0
      %v4083 = vadd.f32 %v3874, %v4082
      %4084 = vmatmul.f32.gmra.mxu0 %v2358
      %v4085 = vpop.f32.mrf.mxu0
      %v4086 = vadd.f32 %v3877, %v4085
      %4087 = vmatmul.f32.gmra.mxu0 %v2360
      %v4088 = vpop.f32.mrf.mxu0
      %v4089 = vadd.f32 %v3880, %v4088
      %4090 = vmatmul.f32.gmra.mxu0 %v2362
      %v4091 = vpop.f32.mrf.mxu0
      %v4092 = vadd.f32 %v3883, %v4091
      %4093 = vmatmul.f32.gmra.mxu0 %v2364
      %v4094 = vpop.f32.mrf.mxu0
      %v4095 = vadd.f32 %v3886, %v4094
      %4096 = vmatmul.f32.gmra.mxu0 %v2366
      %v4097 = vpop.f32.mrf.mxu0
      %v4098 = vadd.f32 %v3889, %v4097
      %4099 = vmatmul.f32.gmra.mxu0 %v2368
      %v4100 = vpop.f32.mrf.mxu0
      %v4101 = vadd.f32 %v3892, %v4100
      %4102 = vmatmul.f32.gmra.mxu0 %v2370
      %v4103 = vpop.f32.mrf.mxu0
      %v4104 = vadd.f32 %v3895, %v4103
      %4105 = vmatmul.f32.gmra.mxu0 %v2372
      %v4106 = vpop.f32.mrf.mxu0
      %v4107 = vadd.f32 %v3898, %v4106
      %4108 = vmatmul.f32.gmra.mxu0 %v2374
      %v4109 = vpop.f32.mrf.mxu0
      %v4110 = vadd.f32 %v3901, %v4109
      %4111 = vmatmul.f32.gmra.mxu0 %v2376
      %v4112 = vpop.f32.mrf.mxu0
      %v4113 = vadd.f32 %v3904, %v4112
      %4114 = vmatmul.f32.gmra.mxu0 %v2378
      %v4115 = vpop.f32.mrf.mxu0
      %v4116 = vadd.f32 %v3907, %v4115
      %4117 = vmatmul.f32.gmra.mxu0 %v2380
      %v4118 = vpop.f32.mrf.mxu0
      %v4119 = vadd.f32 %v3910, %v4118
      %4120 = vmatmul.f32.gmra.mxu0 %v3795
      %v4121 = vpop.f32.mrf.mxu0
      %v4122 = vadd.f32 %v3913, %v4121
      %4123 = vmatmul.f32.gmra.mxu0 %v3797
      %v4124 = vpop.f32.mrf.mxu0
      %v4125 = vadd.f32 %v3916, %v4124
      %4126 = vmatmul.f32.gmra.mxu0 %v2386
      %v4127 = vpop.f32.mrf.mxu0
      %v4128 = vadd.f32 %v3919, %v4127
      %4129 = vmatmul.f32.gmra.mxu0 %v2388
      %v4130 = vpop.f32.mrf.mxu0
      %v4131 = vadd.f32 %v3922, %v4130
      %4132 = vmatmul.f32.gmra.mxu0 %v2390
      %v4133 = vpop.f32.mrf.mxu0
      %v4134 = vadd.f32 %v3925, %v4133
      %4135 = vmatmul.f32.gmra.mxu0 %v2392
      %v4136 = vpop.f32.mrf.mxu0
      %v4137 = vadd.f32 %v3928, %v4136
      %4138 = vmatmul.f32.gmra.mxu0 %v2394
      %v4139 = vpop.f32.mrf.mxu0
      %v4140 = vadd.f32 %v3931, %v4139
      %4141 = vmatmul.f32.gmra.mxu0 %v2396
      %v4142 = vpop.f32.mrf.mxu0
      %v4143 = vadd.f32 %v3934, %v4142
      %4144 = vmatmul.f32.gmra.mxu0 %v2398
      %v4145 = vpop.f32.mrf.mxu0
      %v4146 = vadd.f32 %v3937, %v4145
      %4147 = vmatmul.f32.gmra.mxu0 %v2400
      %v4148 = vpop.f32.mrf.mxu0
      %v4149 = vadd.f32 %v3940, %v4148
      %4150 = vmatmul.f32.gmra.mxu0 %v2402
      %v4151 = vpop.f32.mrf.mxu0
      %v4152 = vadd.f32 %v3943, %v4151
      %4153 = vmatmul.f32.gmra.mxu0 %v2404
      %v4154 = vpop.f32.mrf.mxu0
      %v4155 = vadd.f32 %v3946, %v4154
      %4156 = vmatmul.f32.gmra.mxu0 %v2406
      %v4157 = vpop.f32.mrf.mxu0
      %v4158 = vadd.f32 %v3949, %v4157
      %4159 = vmatmul.f32.gmra.mxu0 %v2408
      %v4160 = vpop.f32.mrf.mxu0
      %v4161 = vadd.f32 %v3952, %v4160
      %4162 = vmatmul.f32.gmra.mxu0 %v2410
      %v4163 = vpop.f32.mrf.mxu0
      %v4164 = vadd.f32 %v3955, %v4163
      %4165 = vmatmul.f32.gmra.mxu0 %v2412
      %v4166 = vpop.f32.mrf.mxu0
      %v4167 = vadd.f32 %v3958, %v4166
      %4168 = vmatmul.f32.gmra.mxu0 %v2414
      %v4169 = vpop.f32.mrf.mxu0
      %v4170 = vadd.f32 %v3961, %v4169
      %4171 = vmatmul.f32.gmra.mxu0 %v2416
      %v4172 = vpop.f32.mrf.mxu0
      %v4173 = vadd.f32 %v3964, %v4172
      %4174 = vmatmul.f32.gmra.mxu0 %v2418
      %v4175 = vpop.f32.mrf.mxu0
      %v4176 = vadd.f32 %v3967, %v4175
      %4177 = vmatmul.f32.gmra.mxu0 %v2420
      %v4178 = vpop.f32.mrf.mxu0
      %v4179 = vadd.f32 %v3970, %v4178
      %4180 = vmatmul.f32.gmra.mxu0 %v2422
      %v4181 = vpop.f32.mrf.mxu0
      %v4182 = vadd.f32 %v3973, %v4181
      %4183 = vmatmul.f32.gmra.mxu0 %v2424
      %v4184 = vpop.f32.mrf.mxu0
      %v4185 = vadd.f32 %v3976, %v4184
      %4186 = vmatmul.f32.gmra.mxu0 %v2426
      %v4187 = vpop.f32.mrf.mxu0
      %v4188 = vadd.f32 %v3979, %v4187
      %4189 = vmatmul.f32.gmra.mxu0 %v2428
      %v4190 = vpop.f32.mrf.mxu0
      %v4191 = vadd.f32 %v3982, %v4190
      %4192 = vmatmul.f32.gmra.mxu0 %v2430
      %v4193 = vpop.f32.mrf.mxu0
      %v4194 = vadd.f32 %v3985, %v4193
      %4195 = vmatmul.f32.gmra.mxu0 %v2432
      %v4196 = vpop.f32.mrf.mxu0
      %v4197 = vadd.f32 %v3988, %v4196
      %4198 = vmatmul.f32.gmra.mxu0 %v2434
      %v4199 = vpop.f32.mrf.mxu0
      %v4200 = vadd.f32 %v3991, %v4199
      %4201 = vmatmul.f32.gmra.mxu0 %v2436
      %v4202 = vpop.f32.mrf.mxu0
      %v4203 = vadd.f32 %v3994, %v4202
      %4204 = vmatmul.f32.gmra.mxu0 %v2438
      %v4205 = vpop.f32.mrf.mxu0
      %v4206 = vadd.f32 %v3997, %v4205
      %4207 = vmatmul.f32.gmra.mxu0 %v2440
      %v4208 = vpop.f32.mrf.mxu0
      %v4209 = vadd.f32 %v4000, %v4208
      %4210 = vmatmul.f32.gmra.mxu0 %v2442
      %v4211 = vpop.f32.mrf.mxu0
      %v4212 = vadd.f32 %v4003, %v4211
      %4213 = vmatmul.f32.gmra.mxu0 %v2444
      %v4214 = vpop.f32.mrf.mxu0
      %v4215 = vadd.f32 %v4006, %v4214
      %4216 = vdwg.mxu0
      %4217 = vmatpush.msra.mxu0 %v2884
      %4218 = vmatpush.msra.mxu0 %v2883
      %4219 = vmatpush.msra.mxu0 %v2882
      %4220 = vmatpush.msra.mxu0 %v2881
      %4221 = vmatpush.msra.mxu0 %v2880
      %4222 = vmatpush.msra.mxu0 %v2879
      %4223 = vmatpush.msra.mxu0 %v2878
      %4224 = vmatpush.msra.mxu0 %v2877
      %4225 = vmatpush.msra.mxu0 %v2876
      %4226 = vmatpush.msra.mxu0 %v2875
      %4227 = vmatpush.msra.mxu0 %v2874
      %4228 = vmatpush.msra.mxu0 %v2873
      %4229 = vmatpush.msra.mxu0 %v2872
      %4230 = vmatpush.msra.mxu0 %v2871
      %4231 = vmatpush.msra.mxu0 %v2870
      %4232 = vmatpush.msra.mxu0 %v2869
      %4233 = vmatmul.f32.gmra.mxu0 %v2205
      %v4234 = vpop.f32.mrf.mxu0
      %v4235 = vadd.f32 %v3153, %v4234
      %4236 = vmatmul.f32.gmra.mxu0 %v2206
      %v4237 = vpop.f32.mrf.mxu0
      %v4238 = vadd.f32 %v3156, %v4237
      %4239 = vmatmul.f32.gmra.mxu0 %v2207
      %v4240 = vpop.f32.mrf.mxu0
      %v4241 = vadd.f32 %v3159, %v4240
      %4242 = vmatmul.f32.gmra.mxu0 %v2208
      %v4243 = vpop.f32.mrf.mxu0
      %v4244 = vadd.f32 %v3162, %v4243
      %4245 = vmatmul.f32.gmra.mxu0 %v2209
      %v4246 = vpop.f32.mrf.mxu0
      %v4247 = vadd.f32 %v3165, %v4246
      %4248 = vmatmul.f32.gmra.mxu0 %v2210
      %v4249 = vpop.f32.mrf.mxu0
      %v4250 = vadd.f32 %v3168, %v4249
      %4251 = vmatmul.f32.gmra.mxu0 %v2211
      %v4252 = vpop.f32.mrf.mxu0
      %v4253 = vadd.f32 %v3171, %v4252
      %4254 = vmatmul.f32.gmra.mxu0 %v2212
      %v4255 = vpop.f32.mrf.mxu0
      %v4256 = vadd.f32 %v3174, %v4255
      %4257 = vmatmul.f32.gmra.mxu0 %v2213
      %v4258 = vpop.f32.mrf.mxu0
      %v4259 = vadd.f32 %v3177, %v4258
      %4260 = vmatmul.f32.gmra.mxu0 %v2214
      %v4261 = vpop.f32.mrf.mxu0
      %v4262 = vadd.f32 %v3180, %v4261
      %4263 = vmatmul.f32.gmra.mxu0 %v2215
      %v4264 = vpop.f32.mrf.mxu0
      %v4265 = vadd.f32 %v3183, %v4264
      %4266 = vmatmul.f32.gmra.mxu0 %v2216
      %v4267 = vpop.f32.mrf.mxu0
      %v4268 = vadd.f32 %v3186, %v4267
      %4269 = vmatmul.f32.gmra.mxu0 %v2217
      %v4270 = vpop.f32.mrf.mxu0
      %v4271 = vadd.f32 %v3189, %v4270
      %4272 = vmatmul.f32.gmra.mxu0 %v2218
      %v4273 = vpop.f32.mrf.mxu0
      %v4274 = vadd.f32 %v3192, %v4273
      %4275 = vmatmul.f32.gmra.mxu0 %v2219
      %v4276 = vpop.f32.mrf.mxu0
      %v4277 = vadd.f32 %v3195, %v4276
      %4278 = vmatmul.f32.gmra.mxu0 %v2220
      %v4279 = vpop.f32.mrf.mxu0
      %v4280 = vadd.f32 %v3198, %v4279
      %4281 = vmatmul.f32.gmra.mxu0 %v2221
      %v4282 = vpop.f32.mrf.mxu0
      %v4283 = vadd.f32 %v3201, %v4282
      %4284 = vmatmul.f32.gmra.mxu0 %v2222
      %v4285 = vpop.f32.mrf.mxu0
      %v4286 = vadd.f32 %v3204, %v4285
      %4287 = vmatmul.f32.gmra.mxu0 %v2223
      %v4288 = vpop.f32.mrf.mxu0
      %v4289 = vadd.f32 %v3207, %v4288
      %4290 = vmatmul.f32.gmra.mxu0 %v2224
      %v4291 = vpop.f32.mrf.mxu0
      %v4292 = vadd.f32 %v3210, %v4291
      %4293 = vmatmul.f32.gmra.mxu0 %v2225
      %v4294 = vpop.f32.mrf.mxu0
      %v4295 = vadd.f32 %v3213, %v4294
      %4296 = vmatmul.f32.gmra.mxu0 %v2226
      %v4297 = vpop.f32.mrf.mxu0
      %v4298 = vadd.f32 %v3216, %v4297
      %4299 = vmatmul.f32.gmra.mxu0 %v2227
      %v4300 = vpop.f32.mrf.mxu0
      %v4301 = vadd.f32 %v3219, %v4300
      %4302 = vmatmul.f32.gmra.mxu0 %v2228
      %v4303 = vpop.f32.mrf.mxu0
      %v4304 = vadd.f32 %v3222, %v4303
      %4305 = vmatmul.f32.gmra.mxu0 %v2229
      %v4306 = vpop.f32.mrf.mxu0
      %v4307 = vadd.f32 %v3225, %v4306
      %4308 = vmatmul.f32.gmra.mxu0 %v2230
      %v4309 = vpop.f32.mrf.mxu0
      %v4310 = vadd.f32 %v3228, %v4309
      %4311 = vmatmul.f32.gmra.mxu0 %v2231
      %v4312 = vpop.f32.mrf.mxu0
      %v4313 = vadd.f32 %v3231, %v4312
      %4314 = vmatmul.f32.gmra.mxu0 %v2232
      %v4315 = vpop.f32.mrf.mxu0
      %v4316 = vadd.f32 %v3234, %v4315
      %4317 = vmatmul.f32.gmra.mxu0 %v2233
      %v4318 = vpop.f32.mrf.mxu0
      %v4319 = vadd.f32 %v3237, %v4318
      %4320 = vmatmul.f32.gmra.mxu0 %v2234
      %v4321 = vpop.f32.mrf.mxu0
      %v4322 = vadd.f32 %v3240, %v4321
      %4323 = vmatmul.f32.gmra.mxu0 %v2235
      %v4324 = vpop.f32.mrf.mxu0
      %v4325 = vadd.f32 %v3243, %v4324
      %4326 = vmatmul.f32.gmra.mxu0 %v2236
      %v4327 = vpop.f32.mrf.mxu0
      %v4328 = vadd.f32 %v3246, %v4327
      %4329 = vmatmul.f32.gmra.mxu0 %v2245
      %v4330 = vpop.f32.mrf.mxu0
      %v4331 = vadd.f32 %v3249, %v4330
      %4332 = vmatmul.f32.gmra.mxu0 %v2246
      %v4333 = vpop.f32.mrf.mxu0
      %v4334 = vadd.f32 %v3252, %v4333
      %4335 = vmatmul.f32.gmra.mxu0 %v2247
      %v4336 = vpop.f32.mrf.mxu0
      %v4337 = vadd.f32 %v3255, %v4336
      %4338 = vmatmul.f32.gmra.mxu0 %v2248
      %v4339 = vpop.f32.mrf.mxu0
      %v4340 = vadd.f32 %v3258, %v4339
      %4341 = vmatmul.f32.gmra.mxu0 %v2249
      %v4342 = vpop.f32.mrf.mxu0
      %v4343 = vadd.f32 %v3261, %v4342
      %4344 = vmatmul.f32.gmra.mxu0 %v2250
      %v4345 = vpop.f32.mrf.mxu0
      %v4346 = vadd.f32 %v3264, %v4345
      %4347 = vmatmul.f32.gmra.mxu0 %v2251
      %v4348 = vpop.f32.mrf.mxu0
      %v4349 = vadd.f32 %v3267, %v4348
      %4350 = vmatmul.f32.gmra.mxu0 %v2252
      %v4351 = vpop.f32.mrf.mxu0
      %v4352 = vadd.f32 %v3270, %v4351
      %4353 = vmatmul.f32.gmra.mxu0 %v2253
      %v4354 = vpop.f32.mrf.mxu0
      %v4355 = vadd.f32 %v3273, %v4354
      %4356 = vmatmul.f32.gmra.mxu0 %v2254
      %v4357 = vpop.f32.mrf.mxu0
      %v4358 = vadd.f32 %v3276, %v4357
      %4359 = vmatmul.f32.gmra.mxu0 %v2255
      %v4360 = vpop.f32.mrf.mxu0
      %v4361 = vadd.f32 %v3279, %v4360
      %4362 = vmatmul.f32.gmra.mxu0 %v2256
      %v4363 = vpop.f32.mrf.mxu0
      %v4364 = vadd.f32 %v3282, %v4363
      %4365 = vmatmul.f32.gmra.mxu0 %v2257
      %v4366 = vpop.f32.mrf.mxu0
      %v4367 = vadd.f32 %v3285, %v4366
      %4368 = vmatmul.f32.gmra.mxu0 %v2258
      %v4369 = vpop.f32.mrf.mxu0
      %v4370 = vadd.f32 %v3288, %v4369
      %4371 = vmatmul.f32.gmra.mxu0 %v2259
      %v4372 = vpop.f32.mrf.mxu0
      %v4373 = vadd.f32 %v3291, %v4372
      %4374 = vmatmul.f32.gmra.mxu0 %v2260
      %v4375 = vpop.f32.mrf.mxu0
      %v4376 = vadd.f32 %v3294, %v4375
      %4377 = vmatmul.f32.gmra.mxu0 %v2261
      %v4378 = vpop.f32.mrf.mxu0
      %v4379 = vadd.f32 %v3297, %v4378
      %4380 = vmatmul.f32.gmra.mxu0 %v2262
      %v4381 = vpop.f32.mrf.mxu0
      %v4382 = vadd.f32 %v3300, %v4381
      %4383 = vmatmul.f32.gmra.mxu0 %v2263
      %v4384 = vpop.f32.mrf.mxu0
      %v4385 = vadd.f32 %v3303, %v4384
      %4386 = vmatmul.f32.gmra.mxu0 %v2264
      %v4387 = vpop.f32.mrf.mxu0
      %v4388 = vadd.f32 %v3306, %v4387
      %4389 = vmatmul.f32.gmra.mxu0 %v2265
      %v4390 = vpop.f32.mrf.mxu0
      %v4391 = vadd.f32 %v3309, %v4390
      %4392 = vmatmul.f32.gmra.mxu0 %v2266
      %v4393 = vpop.f32.mrf.mxu0
      %v4394 = vadd.f32 %v3312, %v4393
      %4395 = vmatmul.f32.gmra.mxu0 %v2267
      %v4396 = vpop.f32.mrf.mxu0
      %v4397 = vadd.f32 %v3315, %v4396
      %4398 = vmatmul.f32.gmra.mxu0 %v2268
      %v4399 = vpop.f32.mrf.mxu0
      %v4400 = vadd.f32 %v3318, %v4399
      %4401 = vmatmul.f32.gmra.mxu0 %v2269
      %v4402 = vpop.f32.mrf.mxu0
      %v4403 = vadd.f32 %v3321, %v4402
      %4404 = vmatmul.f32.gmra.mxu0 %v2270
      %v4405 = vpop.f32.mrf.mxu0
      %v4406 = vadd.f32 %v3324, %v4405
      %4407 = vmatmul.f32.gmra.mxu0 %v2271
      %v4408 = vpop.f32.mrf.mxu0
      %v4409 = vadd.f32 %v3327, %v4408
      %4410 = vmatmul.f32.gmra.mxu0 %v2272
      %v4411 = vpop.f32.mrf.mxu0
      %v4412 = vadd.f32 %v3330, %v4411
      %4413 = vmatmul.f32.gmra.mxu0 %v2273
      %v4414 = vpop.f32.mrf.mxu0
      %v4415 = vadd.f32 %v3333, %v4414
      %4416 = vmatmul.f32.gmra.mxu0 %v2274
      %v4417 = vpop.f32.mrf.mxu0
      %v4418 = vadd.f32 %v3336, %v4417
      %4419 = vmatmul.f32.gmra.mxu0 %v2275
      %v4420 = vpop.f32.mrf.mxu0
      %v4421 = vadd.f32 %v3339, %v4420
      %4422 = vmatmul.f32.gmra.mxu0 %v2276
      %v4423 = vpop.f32.mrf.mxu0
      %v4424 = vadd.f32 %v3342, %v4423
      %4425 = vdwg.mxu0
      %4426 = vmatpush.msra.mxu0 0.0
      %4427 = vmatpush.msra.mxu0 0.0
      %4428 = vmatpush.msra.mxu0 0.0
      %4429 = vmatpush.msra.mxu0 0.0
      %4430 = vmatpush.msra.mxu0 0.0
      %4431 = vmatpush.msra.mxu0 0.0
      %4432 = vmatpush.msra.mxu0 0.0
      %4433 = vmatpush.msra.mxu0 0.0
      %4434 = vmatpush.msra.mxu0 0.0
      %4435 = vmatpush.msra.mxu0 0.0
      %4436 = vmatpush.msra.mxu0 0.0
      %4437 = vmatpush.msra.mxu0 0.0
      %4438 = vmatpush.msra.mxu0 %v2888
      %4439 = vmatpush.msra.mxu0 %v2887
      %4440 = vmatpush.msra.mxu0 %v2886
      %4441 = vmatpush.msra.mxu0 %v2885
      %4442 = vmatmul.f32.gmra.mxu0 %v2326
      %v4443 = vpop.f32.mrf.mxu0
      %v4444 = vadd.f32 %v4235, %v4443
      %4445 = vmatmul.f32.gmra.mxu0 %v2328
      %v4446 = vpop.f32.mrf.mxu0
      %v4447 = vadd.f32 %v4238, %v4446
      %4448 = vmatmul.f32.gmra.mxu0 %v2330
      %v4449 = vpop.f32.mrf.mxu0
      %v4450 = vadd.f32 %v4241, %v4449
      %4451 = vmatmul.f32.gmra.mxu0 %v2332
      %v4452 = vpop.f32.mrf.mxu0
      %v4453 = vadd.f32 %v4244, %v4452
      %4454 = vmatmul.f32.gmra.mxu0 %v2334
      %v4455 = vpop.f32.mrf.mxu0
      %v4456 = vadd.f32 %v4247, %v4455
      %4457 = vmatmul.f32.gmra.mxu0 %v2336
      %v4458 = vpop.f32.mrf.mxu0
      %v4459 = vadd.f32 %v4250, %v4458
      %4460 = vmatmul.f32.gmra.mxu0 %v2338
      %v4461 = vpop.f32.mrf.mxu0
      %v4462 = vadd.f32 %v4253, %v4461
      %4463 = vmatmul.f32.gmra.mxu0 %v2340
      %v4464 = vpop.f32.mrf.mxu0
      %v4465 = vadd.f32 %v4256, %v4464
      %4466 = vmatmul.f32.gmra.mxu0 %v2342
      %v4467 = vpop.f32.mrf.mxu0
      %v4468 = vadd.f32 %v4259, %v4467
      %4469 = vmatmul.f32.gmra.mxu0 %v2344
      %v4470 = vpop.f32.mrf.mxu0
      %v4471 = vadd.f32 %v4262, %v4470
      %4472 = vmatmul.f32.gmra.mxu0 %v2346
      %v4473 = vpop.f32.mrf.mxu0
      %v4474 = vadd.f32 %v4265, %v4473
      %4475 = vmatmul.f32.gmra.mxu0 %v2348
      %v4476 = vpop.f32.mrf.mxu0
      %v4477 = vadd.f32 %v4268, %v4476
      %4478 = vmatmul.f32.gmra.mxu0 %v2350
      %v4479 = vpop.f32.mrf.mxu0
      %v4480 = vadd.f32 %v4271, %v4479
      %4481 = vmatmul.f32.gmra.mxu0 %v2352
      %v4482 = vpop.f32.mrf.mxu0
      %v4483 = vadd.f32 %v4274, %v4482
      %4484 = vmatmul.f32.gmra.mxu0 %v2354
      %v4485 = vpop.f32.mrf.mxu0
      %v4486 = vadd.f32 %v4277, %v4485
      %4487 = vmatmul.f32.gmra.mxu0 %v2356
      %v4488 = vpop.f32.mrf.mxu0
      %v4489 = vadd.f32 %v4280, %v4488
      %4490 = vmatmul.f32.gmra.mxu0 %v2358
      %v4491 = vpop.f32.mrf.mxu0
      %v4492 = vadd.f32 %v4283, %v4491
      %4493 = vmatmul.f32.gmra.mxu0 %v2360
      %v4494 = vpop.f32.mrf.mxu0
      %v4495 = vadd.f32 %v4286, %v4494
      %4496 = vmatmul.f32.gmra.mxu0 %v2362
      %v4497 = vpop.f32.mrf.mxu0
      %v4498 = vadd.f32 %v4289, %v4497
      %4499 = vmatmul.f32.gmra.mxu0 %v2364
      %v4500 = vpop.f32.mrf.mxu0
      %v4501 = vadd.f32 %v4292, %v4500
      %4502 = vmatmul.f32.gmra.mxu0 %v2366
      %v4503 = vpop.f32.mrf.mxu0
      %v4504 = vadd.f32 %v4295, %v4503
      %4505 = vmatmul.f32.gmra.mxu0 %v2368
      %v4506 = vpop.f32.mrf.mxu0
      %v4507 = vadd.f32 %v4298, %v4506
      %4508 = vmatmul.f32.gmra.mxu0 %v2370
      %v4509 = vpop.f32.mrf.mxu0
      %v4510 = vadd.f32 %v4301, %v4509
      %4511 = vmatmul.f32.gmra.mxu0 %v2372
      %v4512 = vpop.f32.mrf.mxu0
      %v4513 = vadd.f32 %v4304, %v4512
      %4514 = vmatmul.f32.gmra.mxu0 %v2374
      %v4515 = vpop.f32.mrf.mxu0
      %v4516 = vadd.f32 %v4307, %v4515
      %4517 = vmatmul.f32.gmra.mxu0 %v2376
      %v4518 = vpop.f32.mrf.mxu0
      %v4519 = vadd.f32 %v4310, %v4518
      %4520 = vmatmul.f32.gmra.mxu0 %v2378
      %v4521 = vpop.f32.mrf.mxu0
      %v4522 = vadd.f32 %v4313, %v4521
      %4523 = vmatmul.f32.gmra.mxu0 %v2380
      %v4524 = vpop.f32.mrf.mxu0
      %v4525 = vadd.f32 %v4316, %v4524
      %4526 = vmatmul.f32.gmra.mxu0 %v2382
      %v4527 = vpop.f32.mrf.mxu0
      %v4528 = vadd.f32 %v4319, %v4527
      %4529 = vmatmul.f32.gmra.mxu0 %v2384
      %v4530 = vpop.f32.mrf.mxu0
      %v4531 = vadd.f32 %v4322, %v4530
      %4532 = vmatmul.f32.gmra.mxu0 %v2910
      %v4533 = vpop.f32.mrf.mxu0
      %v4534 = vadd.f32 %v4325, %v4533
      %4535 = vmatmul.f32.gmra.mxu0 %v2912
      %v4536 = vpop.f32.mrf.mxu0
      %v4537 = vadd.f32 %v4328, %v4536
      %4538 = vmatmul.f32.gmra.mxu0 %v2390
      %v4539 = vpop.f32.mrf.mxu0
      %v4540 = vadd.f32 %v4331, %v4539
      %4541 = vmatmul.f32.gmra.mxu0 %v2392
      %v4542 = vpop.f32.mrf.mxu0
      %v4543 = vadd.f32 %v4334, %v4542
      %4544 = vmatmul.f32.gmra.mxu0 %v2394
      %v4545 = vpop.f32.mrf.mxu0
      %v4546 = vadd.f32 %v4337, %v4545
      %4547 = vmatmul.f32.gmra.mxu0 %v2396
      %v4548 = vpop.f32.mrf.mxu0
      %v4549 = vadd.f32 %v4340, %v4548
      %4550 = vmatmul.f32.gmra.mxu0 %v2398
      %v4551 = vpop.f32.mrf.mxu0
      %v4552 = vadd.f32 %v4343, %v4551
      %4553 = vmatmul.f32.gmra.mxu0 %v2400
      %v4554 = vpop.f32.mrf.mxu0
      %v4555 = vadd.f32 %v4346, %v4554
      %4556 = vmatmul.f32.gmra.mxu0 %v2402
      %v4557 = vpop.f32.mrf.mxu0
      %v4558 = vadd.f32 %v4349, %v4557
      %4559 = vmatmul.f32.gmra.mxu0 %v2404
      %v4560 = vpop.f32.mrf.mxu0
      %v4561 = vadd.f32 %v4352, %v4560
      %4562 = vmatmul.f32.gmra.mxu0 %v2406
      %v4563 = vpop.f32.mrf.mxu0
      %v4564 = vadd.f32 %v4355, %v4563
      %4565 = vmatmul.f32.gmra.mxu0 %v2408
      %v4566 = vpop.f32.mrf.mxu0
      %v4567 = vadd.f32 %v4358, %v4566
      %4568 = vmatmul.f32.gmra.mxu0 %v2410
      %v4569 = vpop.f32.mrf.mxu0
      %v4570 = vadd.f32 %v4361, %v4569
      %4571 = vmatmul.f32.gmra.mxu0 %v2412
      %v4572 = vpop.f32.mrf.mxu0
      %v4573 = vadd.f32 %v4364, %v4572
      %4574 = vmatmul.f32.gmra.mxu0 %v2414
      %v4575 = vpop.f32.mrf.mxu0
      %v4576 = vadd.f32 %v4367, %v4575
      %4577 = vmatmul.f32.gmra.mxu0 %v2416
      %v4578 = vpop.f32.mrf.mxu0
      %v4579 = vadd.f32 %v4370, %v4578
      %4580 = vmatmul.f32.gmra.mxu0 %v2418
      %v4581 = vpop.f32.mrf.mxu0
      %v4582 = vadd.f32 %v4373, %v4581
      %4583 = vmatmul.f32.gmra.mxu0 %v2420
      %v4584 = vpop.f32.mrf.mxu0
      %v4585 = vadd.f32 %v4376, %v4584
      %4586 = vmatmul.f32.gmra.mxu0 %v2422
      %v4587 = vpop.f32.mrf.mxu0
      %v4588 = vadd.f32 %v4379, %v4587
      %4589 = vmatmul.f32.gmra.mxu0 %v2424
      %v4590 = vpop.f32.mrf.mxu0
      %v4591 = vadd.f32 %v4382, %v4590
      %4592 = vmatmul.f32.gmra.mxu0 %v2426
      %v4593 = vpop.f32.mrf.mxu0
      %v4594 = vadd.f32 %v4385, %v4593
      %4595 = vmatmul.f32.gmra.mxu0 %v2428
      %v4596 = vpop.f32.mrf.mxu0
      %v4597 = vadd.f32 %v4388, %v4596
      %4598 = vmatmul.f32.gmra.mxu0 %v2430
      %v4599 = vpop.f32.mrf.mxu0
      %v4600 = vadd.f32 %v4391, %v4599
      %4601 = vmatmul.f32.gmra.mxu0 %v2432
      %v4602 = vpop.f32.mrf.mxu0
      %v4603 = vadd.f32 %v4394, %v4602
      %4604 = vmatmul.f32.gmra.mxu0 %v2434
      %v4605 = vpop.f32.mrf.mxu0
      %v4606 = vadd.f32 %v4397, %v4605
      %4607 = vmatmul.f32.gmra.mxu0 %v2436
      %v4608 = vpop.f32.mrf.mxu0
      %v4609 = vadd.f32 %v4400, %v4608
      %4610 = vmatmul.f32.gmra.mxu0 %v2438
      %v4611 = vpop.f32.mrf.mxu0
      %v4612 = vadd.f32 %v4403, %v4611
      %4613 = vmatmul.f32.gmra.mxu0 %v2440
      %v4614 = vpop.f32.mrf.mxu0
      %v4615 = vadd.f32 %v4406, %v4614
      %4616 = vmatmul.f32.gmra.mxu0 %v2442
      %v4617 = vpop.f32.mrf.mxu0
      %v4618 = vadd.f32 %v4409, %v4617
      %4619 = vmatmul.f32.gmra.mxu0 %v2444
      %v4620 = vpop.f32.mrf.mxu0
      %v4621 = vadd.f32 %v4412, %v4620
      %4622 = vmatmul.f32.gmra.mxu0 %v2446
      %v4623 = vpop.f32.mrf.mxu0
      %v4624 = vadd.f32 %v4415, %v4623
      %4625 = vmatmul.f32.gmra.mxu0 %v2448
      %v4626 = vpop.f32.mrf.mxu0
      %v4627 = vadd.f32 %v4418, %v4626
      %4628 = vmatmul.f32.gmra.mxu0 %v2918
      %v4629 = vpop.f32.mrf.mxu0
      %v4630 = vadd.f32 %v4421, %v4629
      %4631 = vmatmul.f32.gmra.mxu0 %v2920
      %v4632 = vpop.f32.mrf.mxu0
      %v4633 = vadd.f32 %v4424, %v4632
      %4634 = vdwg.mxu0
      %v4635 = vadd.f32 %v4026, %v4444
      %v4636 = vadd.f32 %v4029, %v4447
      %v4637 = vadd.f32 %v4032, %v4450
      %v4638 = vadd.f32 %v4035, %v4453
      %v4639 = vadd.f32 %v4038, %v4456
      %v4640 = vadd.f32 %v4041, %v4459
      %v4641 = vadd.f32 %v4044, %v4462
      %v4642 = vadd.f32 %v4047, %v4465
      %v4643 = vadd.f32 %v4050, %v4468
      %v4644 = vadd.f32 %v4053, %v4471
      %v4645 = vadd.f32 %v4056, %v4474
      %v4646 = vadd.f32 %v4059, %v4477
      %v4647 = vadd.f32 %v4062, %v4480
      %v4648 = vadd.f32 %v4065, %v4483
      %v4649 = vadd.f32 %v4068, %v4486
      %v4650 = vadd.f32 %v4071, %v4489
      %v4651 = vadd.f32 %v4074, %v4492
      %v4652 = vadd.f32 %v4077, %v4495
      %v4653 = vadd.f32 %v4080, %v4498
      %v4654 = vadd.f32 %v4083, %v4501
      %v4655 = vadd.f32 %v4086, %v4504
      %v4656 = vadd.f32 %v4089, %v4507
      %v4657 = vadd.f32 %v4092, %v4510
      %v4658 = vadd.f32 %v4095, %v4513
      %v4659 = vadd.f32 %v4098, %v4516
      %v4660 = vadd.f32 %v4101, %v4519
      %v4661 = vadd.f32 %v4104, %v4522
      %v4662 = vadd.f32 %v4107, %v4525
      %v4663 = vadd.f32 %v4110, %v4528
      %v4664 = vadd.f32 %v4113, %v4531
      %v4665 = vadd.f32 %v4116, %v4534
      %v4666 = vadd.f32 %v4119, %v4537
      %v4667 = vadd.f32 %v4122, %v4540
      %v4668 = vadd.f32 %v4125, %v4543
      %v4669 = vadd.f32 %v4128, %v4546
      %v4670 = vadd.f32 %v4131, %v4549
      %v4671 = vadd.f32 %v4134, %v4552
      %v4672 = vadd.f32 %v4137, %v4555
      %v4673 = vadd.f32 %v4140, %v4558
      %v4674 = vadd.f32 %v4143, %v4561
      %v4675 = vadd.f32 %v4146, %v4564
      %v4676 = vadd.f32 %v4149, %v4567
      %v4677 = vadd.f32 %v4152, %v4570
      %v4678 = vadd.f32 %v4155, %v4573
      %v4679 = vadd.f32 %v4158, %v4576
      %v4680 = vadd.f32 %v4161, %v4579
      %v4681 = vadd.f32 %v4164, %v4582
      %v4682 = vadd.f32 %v4167, %v4585
      %v4683 = vadd.f32 %v4170, %v4588
      %v4684 = vadd.f32 %v4173, %v4591
      %v4685 = vadd.f32 %v4176, %v4594
      %v4686 = vadd.f32 %v4179, %v4597
      %v4687 = vadd.f32 %v4182, %v4600
      %v4688 = vadd.f32 %v4185, %v4603
      %v4689 = vadd.f32 %v4188, %v4606
      %v4690 = vadd.f32 %v4191, %v4609
      %v4691 = vadd.f32 %v4194, %v4612
      %v4692 = vadd.f32 %v4197, %v4615
      %v4693 = vadd.f32 %v4200, %v4618
      %v4694 = vadd.f32 %v4203, %v4621
      %v4695 = vadd.f32 %v4206, %v4624
      %v4696 = vadd.f32 %v4209, %v4627
      %v4697 = vadd.f32 %v4212, %v4630
      %v4698 = vadd.f32 %v4215, %v4633
      %v4699 = vadd.f32 %v4635, %v3600
      %v4700 = vadd.f32 %v4636, %v3603
      %v4701 = vadd.f32 %v4637, %v3606
      %v4702 = vadd.f32 %v4638, %v3609
      %v4703 = vadd.f32 %v4639, %v3612
      %v4704 = vadd.f32 %v4640, %v3615
      %v4705 = vadd.f32 %v4641, %v3618
      %v4706 = vadd.f32 %v4642, %v3621
      %v4707 = vadd.f32 %v4643, %v3624
      %v4708 = vadd.f32 %v4644, %v3627
      %v4709 = vadd.f32 %v4645, %v3630
      %v4710 = vadd.f32 %v4646, %v3633
      %v4711 = vadd.f32 %v4647, %v3636
      %v4712 = vadd.f32 %v4648, %v3639
      %v4713 = vadd.f32 %v4649, %v3642
      %v4714 = vadd.f32 %v4650, %v3645
      %v4715 = vadd.f32 %v4651, %v3648
      %v4716 = vadd.f32 %v4652, %v3651
      %v4717 = vadd.f32 %v4653, %v3654
      %v4718 = vadd.f32 %v4654, %v3657
      %v4719 = vadd.f32 %v4655, %v3660
      %v4720 = vadd.f32 %v4656, %v3663
      %v4721 = vadd.f32 %v4657, %v3666
      %v4722 = vadd.f32 %v4658, %v3669
      %v4723 = vadd.f32 %v4659, %v3672
      %v4724 = vadd.f32 %v4660, %v3675
      %v4725 = vadd.f32 %v4661, %v3678
      %v4726 = vadd.f32 %v4662, %v3681
      %v4727 = vadd.f32 %v4663, %v3684
      %v4728 = vadd.f32 %v4664, %v3687
      %v4729 = vadd.f32 %v4665, %v3690
      %v4730 = vadd.f32 %v4666, %v3693
      %v4731 = vadd.f32 %v4667, %v3696
      %v4732 = vadd.f32 %v4668, %v3699
      %v4733 = vadd.f32 %v4669, %v3702
      %v4734 = vadd.f32 %v4670, %v3705
      %v4735 = vadd.f32 %v4671, %v3708
      %v4736 = vadd.f32 %v4672, %v3711
      %v4737 = vadd.f32 %v4673, %v3714
      %v4738 = vadd.f32 %v4674, %v3717
      %v4739 = vadd.f32 %v4675, %v3720
      %v4740 = vadd.f32 %v4676, %v3723
      %v4741 = vadd.f32 %v4677, %v3726
      %v4742 = vadd.f32 %v4678, %v3729
      %v4743 = vadd.f32 %v4679, %v3732
      %v4744 = vadd.f32 %v4680, %v3735
      %v4745 = vadd.f32 %v4681, %v3738
      %v4746 = vadd.f32 %v4682, %v3741
      %v4747 = vadd.f32 %v4683, %v3744
      %v4748 = vadd.f32 %v4684, %v3747
      %v4749 = vadd.f32 %v4685, %v3750
      %v4750 = vadd.f32 %v4686, %v3753
      %v4751 = vadd.f32 %v4687, %v3756
      %v4752 = vadd.f32 %v4688, %v3759
      %v4753 = vadd.f32 %v4689, %v3762
      %v4754 = vadd.f32 %v4690, %v3765
      %v4755 = vadd.f32 %v4691, %v3768
      %v4756 = vadd.f32 %v4692, %v3771
      %v4757 = vadd.f32 %v4693, %v3774
      %v4758 = vadd.f32 %v4694, %v3777
      %v4759 = vadd.f32 %v4695, %v3780
      %v4760 = vadd.f32 %v4696, %v3783
      %v4761 = vadd.f32 %v4697, %v3786
      %v4762 = vadd.f32 %v4698, %v3789
      %v4763 = vld [vmem:[%s261] sm:$0x1]
      %v4765 = vperm.slane %v4763, 0
      %v4767 = vadd.f32 %v4699, %v4765
      %v4768 = vadd.f32 %v4700, %v4765
      %v4769 = vadd.f32 %v4701, %v4765
      %v4770 = vadd.f32 %v4702, %v4765
      %v4771 = vadd.f32 %v4703, %v4765
      %v4772 = vadd.f32 %v4704, %v4765
      %v4773 = vadd.f32 %v4705, %v4765
      %v4774 = vadd.f32 %v4706, %v4765
      %v4775 = vadd.f32 %v4707, %v4765
      %v4776 = vadd.f32 %v4708, %v4765
      %v4777 = vadd.f32 %v4709, %v4765
      %v4778 = vadd.f32 %v4710, %v4765
      %v4779 = vadd.f32 %v4711, %v4765
      %v4780 = vadd.f32 %v4712, %v4765
      %v4781 = vadd.f32 %v4713, %v4765
      %v4782 = vadd.f32 %v4714, %v4765
      %v4783 = vadd.f32 %v4715, %v4765
      %v4784 = vadd.f32 %v4716, %v4765
      %v4785 = vadd.f32 %v4717, %v4765
      %v4786 = vadd.f32 %v4718, %v4765
      %v4787 = vadd.f32 %v4719, %v4765
      %v4788 = vadd.f32 %v4720, %v4765
      %v4789 = vadd.f32 %v4721, %v4765
      %v4790 = vadd.f32 %v4722, %v4765
      %v4791 = vadd.f32 %v4723, %v4765
      %v4792 = vadd.f32 %v4724, %v4765
      %v4793 = vadd.f32 %v4725, %v4765
      %v4794 = vadd.f32 %v4726, %v4765
      %v4795 = vadd.f32 %v4727, %v4765
      %v4796 = vadd.f32 %v4728, %v4765
      %v4797 = vadd.f32 %v4729, %v4765
      %v4798 = vadd.f32 %v4730, %v4765
      %v4799 = vadd.f32 %v4731, %v4765
      %v4800 = vadd.f32 %v4732, %v4765
      %v4801 = vadd.f32 %v4733, %v4765
      %v4802 = vadd.f32 %v4734, %v4765
      %v4803 = vadd.f32 %v4735, %v4765
      %v4804 = vadd.f32 %v4736, %v4765
      %v4805 = vadd.f32 %v4737, %v4765
      %v4806 = vadd.f32 %v4738, %v4765
      %v4807 = vadd.f32 %v4739, %v4765
      %v4808 = vadd.f32 %v4740, %v4765
      %v4809 = vadd.f32 %v4741, %v4765
      %v4810 = vadd.f32 %v4742, %v4765
      %v4811 = vadd.f32 %v4743, %v4765
      %v4812 = vadd.f32 %v4744, %v4765
      %v4813 = vadd.f32 %v4745, %v4765
      %v4814 = vadd.f32 %v4746, %v4765
      %v4815 = vadd.f32 %v4747, %v4765
      %v4816 = vadd.f32 %v4748, %v4765
      %v4817 = vadd.f32 %v4749, %v4765
      %v4818 = vadd.f32 %v4750, %v4765
      %v4819 = vadd.f32 %v4751, %v4765
      %v4820 = vadd.f32 %v4752, %v4765
      %v4821 = vadd.f32 %v4753, %v4765
      %v4822 = vadd.f32 %v4754, %v4765
      %v4823 = vadd.f32 %v4755, %v4765
      %v4824 = vadd.f32 %v4756, %v4765
      %v4825 = vadd.f32 %v4757, %v4765
      %v4826 = vadd.f32 %v4758, %v4765
      %v4827 = vadd.f32 %v4759, %v4765
      %v4828 = vadd.f32 %v4760, %v4765
      %v4829 = vadd.f32 %v4761, %v4765
      %v4830 = vadd.f32 %v4762, %v4765
      %4831 = vst [vmem:[%s271] sm:$0xff] %v4767
      %4832 = vst [vmem:[%s271 + $0x8] sm:$0xff] %v4768
      %4833 = vst [vmem:[%s271 + $0x10] sm:$0xff] %v4769
      %4834 = vst [vmem:[%s271 + $0x18] sm:$0xff] %v4770
      %4835 = vst [vmem:[%s271 + $0x20] sm:$0xff] %v4771
      %4836 = vst [vmem:[%s271 + $0x28] sm:$0xff] %v4772
      %4837 = vst [vmem:[%s271 + $0x30] sm:$0xff] %v4773
      %4838 = vst [vmem:[%s271 + $0x38] sm:$0xff] %v4774
      %4839 = vst [vmem:[%s271 + $0x40] sm:$0xff] %v4775
      %4840 = vst [vmem:[%s271 + $0x48] sm:$0xff] %v4776
      %4841 = vst [vmem:[%s271 + $0x50] sm:$0xff] %v4777
      %4842 = vst [vmem:[%s271 + $0x58] sm:$0xff] %v4778
      %4843 = vst [vmem:[%s271 + $0x60] sm:$0xff] %v4779
      %4844 = vst [vmem:[%s271 + $0x68] sm:$0xff] %v4780
      %4845 = vst [vmem:[%s271 + $0x70] sm:$0xff] %v4781
      %4846 = vst [vmem:[%s271 + $0x78] sm:$0xff] %v4782
      %4847 = vst [vmem:[%s271 + $0x80] sm:$0xff] %v4783
      %4848 = vst [vmem:[%s271 + $0x88] sm:$0xff] %v4784
      %4849 = vst [vmem:[%s271 + $0x90] sm:$0xff] %v4785
      %4850 = vst [vmem:[%s271 + $0x98] sm:$0xff] %v4786
      %4851 = vst [vmem:[%s271 + $0xa0] sm:$0xff] %v4787
      %4852 = vst [vmem:[%s271 + $0xa8] sm:$0xff] %v4788
      %4853 = vst [vmem:[%s271 + $0xb0] sm:$0xff] %v4789
      %4854 = vst [vmem:[%s271 + $0xb8] sm:$0xff] %v4790
      %4855 = vst [vmem:[%s271 + $0xc0] sm:$0xff] %v4791
      %4856 = vst [vmem:[%s271 + $0xc8] sm:$0xff] %v4792
      %4857 = vst [vmem:[%s271 + $0xd0] sm:$0xff] %v4793
      %4858 = vst [vmem:[%s271 + $0xd8] sm:$0xff] %v4794
      %4859 = vst [vmem:[%s271 + $0xe0] sm:$0xff] %v4795
      %4860 = vst [vmem:[%s271 + $0xe8] sm:$0xff] %v4796
      %4861 = vst [vmem:[%s271 + $0xf0] sm:$0xff] %v4797
      %4862 = vst [vmem:[%s271 + $0xf8] sm:$0xff] %v4798
      %4863 = vst [vmem:[%s271 + $0x100] sm:$0xff] %v4799
      %4864 = vst [vmem:[%s271 + $0x108] sm:$0xff] %v4800
      %4865 = vst [vmem:[%s271 + $0x110] sm:$0xff] %v4801
      %4866 = vst [vmem:[%s271 + $0x118] sm:$0xff] %v4802
      %4867 = vst [vmem:[%s271 + $0x120] sm:$0xff] %v4803
      %4868 = vst [vmem:[%s271 + $0x128] sm:$0xff] %v4804
      %4869 = vst [vmem:[%s271 + $0x130] sm:$0xff] %v4805
      %4870 = vst [vmem:[%s271 + $0x138] sm:$0xff] %v4806
      %4871 = vst [vmem:[%s271 + $0x140] sm:$0xff] %v4807
      %4872 = vst [vmem:[%s271 + $0x148] sm:$0xff] %v4808
      %4873 = vst [vmem:[%s271 + $0x150] sm:$0xff] %v4809
      %4874 = vst [vmem:[%s271 + $0x158] sm:$0xff] %v4810
      %4875 = vst [vmem:[%s271 + $0x160] sm:$0xff] %v4811
      %4876 = vst [vmem:[%s271 + $0x168] sm:$0xff] %v4812
      %4877 = vst [vmem:[%s271 + $0x170] sm:$0xff] %v4813
      %4878 = vst [vmem:[%s271 + $0x178] sm:$0xff] %v4814
      %4879 = vst [vmem:[%s271 + $0x180] sm:$0xff] %v4815
      %4880 = vst [vmem:[%s271 + $0x188] sm:$0xff] %v4816
      %4881 = vst [vmem:[%s271 + $0x190] sm:$0xff] %v4817
      %4882 = vst [vmem:[%s271 + $0x198] sm:$0xff] %v4818
      %4883 = vst [vmem:[%s271 + $0x1a0] sm:$0xff] %v4819
      %4884 = vst [vmem:[%s271 + $0x1a8] sm:$0xff] %v4820
      %4885 = vst [vmem:[%s271 + $0x1b0] sm:$0xff] %v4821
      %4886 = vst [vmem:[%s271 + $0x1b8] sm:$0xff] %v4822
      %4887 = vst [vmem:[%s271 + $0x1c0] sm:$0xff] %v4823
      %4888 = vst [vmem:[%s271 + $0x1c8] sm:$0xff] %v4824
      %4889 = vst [vmem:[%s271 + $0x1d0] sm:$0xff] %v4825
      %4890 = vst [vmem:[%s271 + $0x1d8] sm:$0xff] %v4826
      %4891 = vst [vmem:[%s271 + $0x1e0] sm:$0xff] %v4827
      %4892 = vst [vmem:[%s271 + $0x1e8] sm:$0xff] %v4828
      %4893 = vst [vmem:[%s271 + $0x1f0] sm:$0xff] %v4829
      %4894 = vst [vmem:[%s271 + $0x1f8] sm:$0xff] %v4830
      %s4895 = sadd.s32 %s20, %s19
      %s4896 = smul.u32 2, %s4895
      %p4897 = scmp.lt.s32.totalorder %s4896, 9
      %s4898 = scalar_select %p4897, %s4896, 9
      %p4899 = scmp.lt.s32.totalorder %s21, 0
      %s4900 = scalar_select %p4899, %s21, 0
      %s4901 = smul.addr %s4898, 32
      %s4902 = sadd.s32 %s4900, %s4901
      %s4903 = smul.addr %s4902, 8
      %s4904 = scalar_lea.vmem %s3, %s4903
      // Predicated region
      $region33: #{_forward_impl.1} parent=31 // pred_check
        %p4905 = pneg %p139
      $region34: #{_forward_impl.1} parent=31 // pred_check_branch
        %4907 = sbr.rel (%p4905) target = $region36
      $region35: #{_forward_impl.1} parent=31 // pred_region
        %s4908 = sadd.s32 %s20, %s19
        %s4909 = smul.u32 2, %s4908
      $region36: #{_forward_impl.1} parent=31 // pred_fallthru
        _
    $region32: #{_forward_impl.1} parent=5 // pred_fallthru
      _
    %p4910 = scmp.le.s32.totalorder 2, %s9
    // Predicated region
    $region37: #{_forward_impl.1} parent=5 // pred_check
      %p4911 = pneg %p4910
    $region38: #{_forward_impl.1} parent=5 // pred_check_branch
      %4913 = sbr.rel (%p4911) target = $region40
    $region39: #{_forward_impl.1} parent=5 // pred_region
      %s4914 = ssub.s32 %s9, 2
      // Predicated region
      $region41: #{_forward_impl.1} parent=39 // pred_check
        %p4915 = pneg %p145
      $region42: #{_forward_impl.1} parent=39 // pred_check_branch
        %4917 = sbr.rel (%p4915) target = $region44
      $region43: #{_forward_impl.1} parent=39 // pred_region
        %s4918 = sadd.s32 %s23, %s22
        %s4919 = smul.u32 2, %s4918
        %p4920 = scmp.lt.s32.totalorder %s4919, 9
        %s4921 = scalar_select %p4920, %s4919, 9
        %p4922 = scmp.lt.s32.totalorder %s24, 0
        %s4923 = scalar_select %p4922, %s24, 0
        %s4924 = smul.addr %s4921, 32
        %s4925 = sadd.s32 %s4923, %s4924
        %s4926 = smul.addr %s4925, 8
        %s4927 = scalar_lea.vmem %s3, %s4926
      $region44: #{_forward_impl.1} parent=39 // pred_fallthru
        _
    $region40: #{_forward_impl.1} parent=5 // pred_fallthru
      _
  $region6: #{_forward_impl.1} parent=0 // loop_footer
    %s13 = sadd.s32 1, %s9
  $region7: #{_forward_impl.1} parent=0 // loop_footer_branch
    %8 = sbr.rel target = $region3
  $region8: #{_forward_impl.1} parent=0 // loop_exit
    _

</llo_original>
